<compile_context>
chip_gen: v5e
topology: v5e:2x2
jax: 0.10.0
libtpu: 0.0.40
codegen_flags: <defaults>
</compile_context>

<pallas_src>
import functools

import jax
import jax.numpy as jnp
from jax import lax
from jax.experimental import pallas as pl
from jax.experimental.pallas import tpu as pltpu

LANE = 128


def _round_up(x, m):
    return (x + m - 1) // m * m


def _cdiv(a, b):
    return (a + b - 1) // b


def _resblock_kernel(xp_ref, w1_ref, b1_ref, w2_ref, ws_ref, bo_ref,
                     out_ref, h1p_ref, *, cin, cout, t1, t2):
    """One grid step = NB images.

    xp_ref : (NB, H+2, W+2, GW) bf16  zero-padded input, channels replicated
                                      t1x at stride cin inside the lane group
    w1_ref : (K1, GW) bf16  conv_1 weight, grouped-im2col rows, columns hold
                            the conv_1 output replicated t2x at stride cout
    b1_ref : (1, GW)  f32   conv_1 bias (replicated t2x)
    w2_ref : (K2, CO) bf16  conv_2 weight, grouped-im2col rows
    ws_ref : (GW, CO) bf16  1x1 skip conv weight (rows [0, cin) real)
    bo_ref : (1, CO)  f32   conv_2 bias + skip bias
    out_ref: (NB, H, W, CO) f32
    h1p_ref: (NB, H+2, W+2, GW) bf16 scratch; holds relu(x) first, then the
             zero-padded replicated conv_1 activation (halo stays zero).
    """
    NB, H, W, CO = out_ref.shape
    GW = xp_ref.shape[-1]
    M = NB * H * W
    lanes = lax.broadcasted_iota(jnp.int32, (1, GW), 1)

    def build_lhs(buf_ref, unit, taps_per_group):
        """Grouped compact im2col LHS: (M, ceil(9/t)*GW)."""
        n_groups = _cdiv(9, taps_per_group)
        groups = []
        for g in range(n_groups):
            acc = None
            for j in range(taps_per_group):
                tap = g * taps_per_group + j
                if tap >= 9:
                    break
                dy, dx = tap // 3, tap % 3
                win = buf_ref[:, dy:dy + H, dx:dx + W, :].reshape(M, GW)
                mask = (lanes >= j * unit) & (lanes < (j + 1) * unit)
                acc = jnp.where(mask, win, 0.0 if acc is None else acc)
            groups.append(acc)
        return groups[0] if n_groups == 1 else jnp.concatenate(groups, axis=-1)

    # ---- conv_1: ReLU once into the padded buffer; halo = relu(0) = 0 -------
    h1p_ref[...] = jnp.maximum(xp_ref[...], 0.0)
    lhs1 = build_lhs(h1p_ref, cin, t1)
    h1 = jnp.maximum(
        jnp.dot(lhs1, w1_ref[...], preferred_element_type=jnp.float32)
        + b1_ref[...], 0.0)                                   # bn_2=Identity, ReLU

    # ---- conv_2: overwrite only the interior; the zero halo is already there
    h1p_ref[:, 1:H + 1, 1:W + 1, :] = (
        h1.reshape(NB, H, W, GW).astype(h1p_ref.dtype))
    lhs2 = build_lhs(h1p_ref, cout, t2)
    y = jnp.dot(lhs2, w2_ref[...], preferred_element_type=jnp.float32)

    # ---- skip: 1x1 conv on the RAW (un-activated) input (interior of xp) ----
    x_raw = xp_ref[:, 1:H + 1, 1:W + 1, :].reshape(M, GW)
    skip = jnp.dot(x_raw, ws_ref[...], preferred_element_type=jnp.float32)

    out_ref[...] = (y + skip + bo_ref[...]).reshape(NB, H, W, CO).astype(out_ref.dtype)


def preact_resblock_pallas(x_nchw, w1_oihw, b1, w2_oihw, b2, ws_oihw, bs,
                           *, compute_dtype=jnp.bfloat16):
    """PreActResBlock forward. x_nchw: (N, Cin, H, W) f32; weights in PyTorch
    OIHW layout (already spectral-normalized). Returns (N, Cout, H, W) f32."""
    N, Cin, H, W = x_nchw.shape
    Cout = w1_oihw.shape[0]

    # ---- grouped-compact im2col geometry ------------------------------------
    def min_group_width(c):
        t = max(1, min(9, LANE // c))
        return _round_up(c * t, LANE)

    GW = max(min_group_width(Cin), min_group_width(Cout))   # lane-group width
    t1 = max(1, min(9, GW // Cin))                           # taps/group, conv_1
    t2 = max(1, min(9, GW // Cout))                          # taps/group, conv_2
    ng1, ng2 = _cdiv(9, t1), _cdiv(9, t2)
    K1, K2 = ng1 * GW, ng2 * GW
    CO = _round_up(Cout, LANE)

    # ---- generation-aware VMEM / batch-block policy --------------------------
    try:
        phys_vmem = int(pltpu.get_tpu_info().vmem_capacity_bytes)
    except Exception:
        phys_vmem = 64 * 1024 * 1024          # conservative (v7x-like) fallback
    vmem_limit = max(32 * 1024 * 1024, min(phys_vmem // 2, 96 * 1024 * 1024))
    two_core_like = phys_vmem <= 64 * 1024 * 1024            # v7x: 2 TCs, 64 MiB

    bpe = jnp.dtype(compute_dtype).itemsize

    def est_vmem(nb):
        xp_blk = nb * (H + 2) * (W + 2) * GW * bpe
        out_blk = nb * H * W * CO * 4
        wts = (K1 * GW + K2 * CO + GW * CO) * bpe + (GW + CO) * 4
        scratch = nb * (H + 2) * (W + 2) * GW * bpe
        temps = nb * H * W * (K1 + K2) * bpe + 2 * nb * H * W * (GW + CO) * 4
        return 2 * xp_blk + 2 * out_blk + 2 * wts + scratch + temps

    nb_max = min(N, 32)
    if two_core_like and N >= 2:
        nb_max = min(nb_max, max(1, N // 2))   # keep >=2 grid steps for 2 cores
    NB = 1
    for cand in range(nb_max, 0, -1):
        if N % cand == 0 and est_vmem(cand) <= int(vmem_limit * 0.7):
            NB = cand
            break

    # ---- inputs: NHWC, channel replication, fused spatial+lane pad ----------
    x_nhwc = jnp.transpose(x_nchw, (0, 2, 3, 1)).astype(compute_dtype)
    x_rep = jnp.concatenate([x_nhwc] * t1, axis=-1) if t1 > 1 else x_nhwc
    xp = jnp.pad(x_rep, ((0, 0), (1, 1), (1, 1), (0, GW - t1 * Cin)))

    # ---- weights: grouped-compact im2col layout ------------------------------
    def pack3x3(w_oihw, tpg_in, out_rep, out_width):
        co_, ci_ = w_oihw.shape[0], w_oihw.shape[1]
        ng = _cdiv(9, tpg_in)
        w = jnp.transpose(w_oihw, (2, 3, 1, 0)).reshape(9, ci_, co_)  # (tap,ci,co)
        w = jnp.pad(w, ((0, ng * tpg_in - 9), (0, 0), (0, 0)))
        w = w.reshape(ng, tpg_in, ci_, co_)
        w = jnp.broadcast_to(w[:, :, :, None, :], (ng, tpg_in, ci_, out_rep, co_))
        w = w.reshape(ng, tpg_in * ci_, out_rep * co_)
        w = jnp.pad(w, ((0, 0), (0, GW - tpg_in * ci_),
                        (0, out_width - out_rep * co_)))
        return w.reshape(ng * GW, out_width).astype(compute_dtype)

    w1_p = pack3x3(w1_oihw, t1, t2, GW)            # conv_1 (output replicated t2x)
    w2_p = pack3x3(w2_oihw, t2, 1, CO)             # conv_2
    ws_p = jnp.pad(jnp.transpose(ws_oihw[:, :, 0, 0], (1, 0)),
                   ((0, GW - Cin), (0, CO - Cout))).astype(compute_dtype)

    b1_p = jnp.pad(jnp.tile(b1, t2), (0, GW - t2 * Cout)
                   ).reshape(1, GW).astype(jnp.float32)
    bo_p = jnp.pad(b2 + bs, (0, CO - Cout)).reshape(1, CO).astype(jnp.float32)

    kernel = functools.partial(_resblock_kernel, cin=Cin, cout=Cout, t1=t1, t2=t2)

    out_nhwc = pl.pallas_call(
        kernel,
        out_shape=jax.ShapeDtypeStruct((N, H, W, CO), jnp.float32),
        grid_spec=pltpu.PrefetchScalarGridSpec(
            num_scalar_prefetch=0,
            grid=(N // NB,),
            in_specs=[
                pl.BlockSpec((NB, H + 2, W + 2, GW), lambda n: (n, 0, 0, 0)),
                pl.BlockSpec((K1, GW), lambda n: (0, 0)),
                pl.BlockSpec((1, GW), lambda n: (0, 0)),
                pl.BlockSpec((K2, CO), lambda n: (0, 0)),
                pl.BlockSpec((GW, CO), lambda n: (0, 0)),
                pl.BlockSpec((1, CO), lambda n: (0, 0)),
            ],
            out_specs=pl.BlockSpec((NB, H, W, CO), lambda n: (n, 0, 0, 0)),
            scratch_shapes=[
                pltpu.VMEM((NB, H + 2, W + 2, GW), compute_dtype),
            ],
        ),
        compiler_params=pltpu.CompilerParams(
            dimension_semantics=("parallel",),
            vmem_limit_bytes=int(vmem_limit),
        ),
    )(xp, w1_p, b1_p, w2_p, ws_p, bo_p)

    out = out_nhwc[..., :Cout]
    return jnp.transpose(out, (0, 3, 1, 2))


# ---------------- glue: spectral norm + pure-JAX reference -------------------

def spectral_normalize(w_oihw, key, n_iter=20, eps=1e-12):
    """nn.utils.spectral_norm semantics: w / sigma(w.reshape(out, -1))."""
    out_c = w_oihw.shape[0]
    w_mat = w_oihw.reshape(out_c, -1)
    u = jax.random.normal(key, (out_c,), dtype=jnp.float32)
    u = u / (jnp.linalg.norm(u) + eps)
    v = None
    for _ in range(n_iter):
        v = w_mat.T @ u
        v = v / (jnp.linalg.norm(v) + eps)
        u = w_mat @ v
        u = u / (jnp.linalg.norm(u) + eps)
    sigma = u @ (w_mat @ v)
    return w_oihw / sigma


def reference_forward(x_nchw, w1_oihw, b1, w2_oihw, b2, ws_oihw, bs,
                      compute_dtype=jnp.bfloat16):
    """Reference mirroring the kernel's bf16-operand / f32-accumulate policy."""
    q = lambda t: t.astype(compute_dtype).astype(jnp.float32)
    x, w1, w2, ws = q(x_nchw), q(w1_oihw), q(w2_oihw), q(ws_oihw)
    dn = ('NCHW', 'OIHW', 'NCHW')
    hi = lax.Precision.HIGHEST
    a = jnp.maximum(x, 0.0)
    h1 = lax.conv_general_dilated(a, w1, (1, 1), ((1, 1), (1, 1)),
                                  dimension_numbers=dn, precision=hi)
    h1 = jnp.maximum(h1 + b1[None, :, None, None], 0.0)
    h1 = q(h1)                         # kernel feeds conv_2 a bf16 h1
    y = lax.conv_general_dilated(h1, w2, (1, 1), ((1, 1), (1, 1)),
                                 dimension_numbers=dn, precision=hi)
    y = y + b2[None, :, None, None]
    skip = lax.conv_general_dilated(x, ws, (1, 1), ((0, 0), (0, 0)),
                                    dimension_numbers=dn, precision=hi)
    skip = skip + bs[None, :, None, None]
    return y + skip


if __name__ == "__main__":
    def run_case(key, N, Cin, Cout, H, W):
        ks = jax.random.split(key, 10)
        x = jax.random.normal(ks[0], (N, Cin, H, W), dtype=jnp.float32)
        w1 = 0.1 * jax.random.normal(ks[1], (Cout, Cin, 3, 3), jnp.float32)
        b1 = 0.1 * jax.random.normal(ks[2], (Cout,), jnp.float32)
        w2 = 0.1 * jax.random.normal(ks[3], (Cout, Cout, 3, 3), jnp.float32)
        b2 = 0.1 * jax.random.normal(ks[4], (Cout,), jnp.float32)
        ws = 0.1 * jax.random.normal(ks[5], (Cout, Cin, 1, 1), jnp.float32)
        bs = 0.1 * jax.random.normal(ks[6], (Cout,), jnp.float32)
        # spectral_norm on all three convs (as in the PyTorch module)
        w1 = spectral_normalize(w1, ks[7])
        w2 = spectral_normalize(w2, ks[8])
        ws = spectral_normalize(ws, ks[9])

        fwd = jax.jit(preact_resblock_pallas)
        out = jax.block_until_ready(fwd(x, w1, b1, w2, b2, ws, bs))
        ref = reference_forward(x, w1, b1, w2, b2, ws, bs)
        assert out.shape == (N, Cout, H, W)
        max_err = float(jnp.max(jnp.abs(out - ref)))
        assert jnp.allclose(out, ref, rtol=1e-2, atol=1e-2), max_err

    key = jax.random.PRNGKey(0)
    k1, k2 = jax.random.split(key)
    # primary case: tiny channels -> single-group compact im2col (K = 128)
    run_case(k1, N=2, Cin=4, Cout=8, H=16, W=16)
    # secondary case: exercises the multi-group path (3 / 5 taps per group)
    run_case(k2, N=2, Cin=40, Cout=24, H=8, W=8)

    print("KERNEL_OK")
</pallas_src>

<mosaic_0001>
module attributes {stable_mosaic.version = 11 : i64} {
  func.func @_resblock_kernel(%arg0: i32, %arg1: memref<1x18x18x128xbf16, #tpu.memory_space<vmem>>, %arg2: memref<128x128xbf16, #tpu.memory_space<vmem>>, %arg3: memref<1x128xf32, #tpu.memory_space<vmem>>, %arg4: memref<128x128xbf16, #tpu.memory_space<vmem>>, %arg5: memref<128x128xbf16, #tpu.memory_space<vmem>>, %arg6: memref<1x128xf32, #tpu.memory_space<vmem>>, %arg7: memref<1x16x16x128xf32, #tpu.memory_space<vmem>>, %arg8: memref<1x18x18x128xbf16, #tpu.memory_space<vmem>>) attributes {dimension_semantics = [#tpu.dimension_semantics<parallel>], iteration_bounds = array<i64: 2>, scalar_prefetch = 0 : i64, scratch_operands = 1 : i64, tpu.core_type = #tpu.core_type<tc>, window_params = [{transform_indices = @transform_0, window_bounds = array<i64: 1, 18, 18, 128>}, {pipeline_mode = #tpu.pipeline_mode<synchronous>, transform_indices = @transform_1, window_bounds = array<i64: 128, 128>}, {pipeline_mode = #tpu.pipeline_mode<synchronous>, transform_indices = @transform_2, window_bounds = array<i64: 1, 128>}, {pipeline_mode = #tpu.pipeline_mode<synchronous>, transform_indices = @transform_3, window_bounds = array<i64: 128, 128>}, {pipeline_mode = #tpu.pipeline_mode<synchronous>, transform_indices = @transform_4, window_bounds = array<i64: 128, 128>}, {pipeline_mode = #tpu.pipeline_mode<synchronous>, transform_indices = @transform_5, window_bounds = array<i64: 1, 128>}, {transform_indices = @transform_6, window_bounds = array<i64: 1, 16, 16, 128>}]} {
    %0 = tpu.iota {dimensions = array<i32: 1>} : vector<1x128xi32>
    %c0 = arith.constant 0 : index
    %c0_0 = arith.constant 0 : index
    %c0_1 = arith.constant 0 : index
    %c0_2 = arith.constant 0 : index
    %1 = vector.load %arg1[%c0, %c0_0, %c0_1, %c0_2] : memref<1x18x18x128xbf16, #tpu.memory_space<vmem>>, vector<1x18x18x128xbf16>
    %cst = arith.constant 0.000000e+00 : bf16
    %2 = vector.broadcast %cst : bf16 to vector<1x18x18x128xbf16>
    %3 = arith.maximumf %1, %2 : vector<1x18x18x128xbf16>
    %c0_3 = arith.constant 0 : index
    %c0_4 = arith.constant 0 : index
    %c0_5 = arith.constant 0 : index
    %c0_6 = arith.constant 0 : index
    %4 = vector.load %arg8[%c0_3, %c0_4, %c0_5, %c0_6] : memref<1x18x18x128xbf16, #tpu.memory_space<vmem>>, vector<1x18x18x128xbf16>
    tpu.vector_store %arg8[%c0_3, %c0_4, %c0_5, %c0_6], %3 {strides = array<i32>} : memref<1x18x18x128xbf16, #tpu.memory_space<vmem>>, vector<1x18x18x128xbf16>,
    %c0_7 = arith.constant 0 : index
    %c0_8 = arith.constant 0 : index
    %c0_9 = arith.constant 0 : index
    %c0_10 = arith.constant 0 : index
    %5 = vector.load %arg8[%c0_7, %c0_8, %c0_9, %c0_10] : memref<1x18x18x128xbf16, #tpu.memory_space<vmem>>, vector<1x16x16x128xbf16>
    %6 = vector.shape_cast %5 : vector<1x16x16x128xbf16> to vector<256x128xbf16>
    %c0_i32 = arith.constant 0 : i32
    %7 = vector.broadcast %c0_i32 : i32 to vector<1x128xi32>
    %8 = arith.cmpi sge, %0, %7 : vector<1x128xi32>
    %c4_i32 = arith.constant 4 : i32
    %9 = vector.broadcast %c4_i32 : i32 to vector<1x128xi32>
    %10 = arith.cmpi slt, %0, %9 : vector<1x128xi32>
    %11 = arith.andi %8, %10 : vector<1x128xi1>
    %cst_11 = arith.constant 0.000000e+00 : f32
    %12 = arith.truncf %cst_11 : f32 to bf16
    %13 = vector.shape_cast %11 : vector<1x128xi1> to vector<1x128xi1>
    %14 = vector.broadcast %13 : vector<1x128xi1> to vector<256x128xi1>
    %15 = vector.broadcast %12 : bf16 to vector<256x128xbf16>
    %16 = arith.select %14, %6, %15 : vector<256x128xi1>, vector<256x128xbf16>
    %c0_12 = arith.constant 0 : index
    %c0_13 = arith.constant 0 : index
    %c1 = arith.constant 1 : index
    %c0_14 = arith.constant 0 : index
    %17 = vector.load %arg8[%c0_12, %c0_13, %c1, %c0_14] : memref<1x18x18x128xbf16, #tpu.memory_space<vmem>>, vector<1x16x16x128xbf16>
    %18 = vector.shape_cast %17 : vector<1x16x16x128xbf16> to vector<256x128xbf16>
    %c4_i32_15 = arith.constant 4 : i32
    %19 = vector.broadcast %c4_i32_15 : i32 to vector<1x128xi32>
    %20 = arith.cmpi sge, %0, %19 : vector<1x128xi32>
    %c8_i32 = arith.constant 8 : i32
    %21 = vector.broadcast %c8_i32 : i32 to vector<1x128xi32>
    %22 = arith.cmpi slt, %0, %21 : vector<1x128xi32>
    %23 = arith.andi %20, %22 : vector<1x128xi1>
    %24 = vector.shape_cast %23 : vector<1x128xi1> to vector<1x128xi1>
    %25 = vector.broadcast %24 : vector<1x128xi1> to vector<256x128xi1>
    %26 = arith.select %25, %18, %16 : vector<256x128xi1>, vector<256x128xbf16>
    %c0_16 = arith.constant 0 : index
    %c0_17 = arith.constant 0 : index
    %c2 = arith.constant 2 : index
    %c0_18 = arith.constant 0 : index
    %27 = vector.load %arg8[%c0_16, %c0_17, %c2, %c0_18] : memref<1x18x18x128xbf16, #tpu.memory_space<vmem>>, vector<1x16x16x128xbf16>
    %28 = vector.shape_cast %27 : vector<1x16x16x128xbf16> to vector<256x128xbf16>
    %c8_i32_19 = arith.constant 8 : i32
    %29 = vector.broadcast %c8_i32_19 : i32 to vector<1x128xi32>
    %30 = arith.cmpi sge, %0, %29 : vector<1x128xi32>
    %c12_i32 = arith.constant 12 : i32
    %31 = vector.broadcast %c12_i32 : i32 to vector<1x128xi32>
    %32 = arith.cmpi slt, %0, %31 : vector<1x128xi32>
    %33 = arith.andi %30, %32 : vector<1x128xi1>
    %34 = vector.shape_cast %33 : vector<1x128xi1> to vector<1x128xi1>
    %35 = vector.broadcast %34 : vector<1x128xi1> to vector<256x128xi1>
    %36 = arith.select %35, %28, %26 : vector<256x128xi1>, vector<256x128xbf16>
    %c0_20 = arith.constant 0 : index
    %c1_21 = arith.constant 1 : index
    %c0_22 = arith.constant 0 : index
    %c0_23 = arith.constant 0 : index
    %37 = vector.load %arg8[%c0_20, %c1_21, %c0_22, %c0_23] : memref<1x18x18x128xbf16, #tpu.memory_space<vmem>>, vector<1x16x16x128xbf16>
    %38 = vector.shape_cast %37 : vector<1x16x16x128xbf16> to vector<256x128xbf16>
    %c12_i32_24 = arith.constant 12 : i32
    %39 = vector.broadcast %c12_i32_24 : i32 to vector<1x128xi32>
    %40 = arith.cmpi sge, %0, %39 : vector<1x128xi32>
    %c16_i32 = arith.constant 16 : i32
    %41 = vector.broadcast %c16_i32 : i32 to vector<1x128xi32>
    %42 = arith.cmpi slt, %0, %41 : vector<1x128xi32>
    %43 = arith.andi %40, %42 : vector<1x128xi1>
    %44 = vector.shape_cast %43 : vector<1x128xi1> to vector<1x128xi1>
    %45 = vector.broadcast %44 : vector<1x128xi1> to vector<256x128xi1>
    %46 = arith.select %45, %38, %36 : vector<256x128xi1>, vector<256x128xbf16>
    %c0_25 = arith.constant 0 : index
    %c1_26 = arith.constant 1 : index
    %c1_27 = arith.constant 1 : index
    %c0_28 = arith.constant 0 : index
    %47 = vector.load %arg8[%c0_25, %c1_26, %c1_27, %c0_28] : memref<1x18x18x128xbf16, #tpu.memory_space<vmem>>, vector<1x16x16x128xbf16>
    %48 = vector.shape_cast %47 : vector<1x16x16x128xbf16> to vector<256x128xbf16>
    %c16_i32_29 = arith.constant 16 : i32
    %49 = vector.broadcast %c16_i32_29 : i32 to vector<1x128xi32>
    %50 = arith.cmpi sge, %0, %49 : vector<1x128xi32>
    %c20_i32 = arith.constant 20 : i32
    %51 = vector.broadcast %c20_i32 : i32 to vector<1x128xi32>
    %52 = arith.cmpi slt, %0, %51 : vector<1x128xi32>
    %53 = arith.andi %50, %52 : vector<1x128xi1>
    %54 = vector.shape_cast %53 : vector<1x128xi1> to vector<1x128xi1>
    %55 = vector.broadcast %54 : vector<1x128xi1> to vector<256x128xi1>
    %56 = arith.select %55, %48, %46 : vector<256x128xi1>, vector<256x128xbf16>
    %c0_30 = arith.constant 0 : index
    %c1_31 = arith.constant 1 : index
    %c2_32 = arith.constant 2 : index
    %c0_33 = arith.constant 0 : index
    %57 = vector.load %arg8[%c0_30, %c1_31, %c2_32, %c0_33] : memref<1x18x18x128xbf16, #tpu.memory_space<vmem>>, vector<1x16x16x128xbf16>
    %58 = vector.shape_cast %57 : vector<1x16x16x128xbf16> to vector<256x128xbf16>
    %c20_i32_34 = arith.constant 20 : i32
    %59 = vector.broadcast %c20_i32_34 : i32 to vector<1x128xi32>
    %60 = arith.cmpi sge, %0, %59 : vector<1x128xi32>
    %c24_i32 = arith.constant 24 : i32
    %61 = vector.broadcast %c24_i32 : i32 to vector<1x128xi32>
    %62 = arith.cmpi slt, %0, %61 : vector<1x128xi32>
    %63 = arith.andi %60, %62 : vector<1x128xi1>
    %64 = vector.shape_cast %63 : vector<1x128xi1> to vector<1x128xi1>
    %65 = vector.broadcast %64 : vector<1x128xi1> to vector<256x128xi1>
    %66 = arith.select %65, %58, %56 : vector<256x128xi1>, vector<256x128xbf16>
    %c0_35 = arith.constant 0 : index
    %c2_36 = arith.constant 2 : index
    %c0_37 = arith.constant 0 : index
    %c0_38 = arith.constant 0 : index
    %67 = vector.load %arg8[%c0_35, %c2_36, %c0_37, %c0_38] : memref<1x18x18x128xbf16, #tpu.memory_space<vmem>>, vector<1x16x16x128xbf16>
    %68 = vector.shape_cast %67 : vector<1x16x16x128xbf16> to vector<256x128xbf16>
    %c24_i32_39 = arith.constant 24 : i32
    %69 = vector.broadcast %c24_i32_39 : i32 to vector<1x128xi32>
    %70 = arith.cmpi sge, %0, %69 : vector<1x128xi32>
    %c28_i32 = arith.constant 28 : i32
    %71 = vector.broadcast %c28_i32 : i32 to vector<1x128xi32>
    %72 = arith.cmpi slt, %0, %71 : vector<1x128xi32>
    %73 = arith.andi %70, %72 : vector<1x128xi1>
    %74 = vector.shape_cast %73 : vector<1x128xi1> to vector<1x128xi1>
    %75 = vector.broadcast %74 : vector<1x128xi1> to vector<256x128xi1>
    %76 = arith.select %75, %68, %66 : vector<256x128xi1>, vector<256x128xbf16>
    %c0_40 = arith.constant 0 : index
    %c2_41 = arith.constant 2 : index
    %c1_42 = arith.constant 1 : index
    %c0_43 = arith.constant 0 : index
    %77 = vector.load %arg8[%c0_40, %c2_41, %c1_42, %c0_43] : memref<1x18x18x128xbf16, #tpu.memory_space<vmem>>, vector<1x16x16x128xbf16>
    %78 = vector.shape_cast %77 : vector<1x16x16x128xbf16> to vector<256x128xbf16>
    %c28_i32_44 = arith.constant 28 : i32
    %79 = vector.broadcast %c28_i32_44 : i32 to vector<1x128xi32>
    %80 = arith.cmpi sge, %0, %79 : vector<1x128xi32>
    %c32_i32 = arith.constant 32 : i32
    %81 = vector.broadcast %c32_i32 : i32 to vector<1x128xi32>
    %82 = arith.cmpi slt, %0, %81 : vector<1x128xi32>
    %83 = arith.andi %80, %82 : vector<1x128xi1>
    %84 = vector.shape_cast %83 : vector<1x128xi1> to vector<1x128xi1>
    %85 = vector.broadcast %84 : vector<1x128xi1> to vector<256x128xi1>
    %86 = arith.select %85, %78, %76 : vector<256x128xi1>, vector<256x128xbf16>
    %c0_45 = arith.constant 0 : index
    %c2_46 = arith.constant 2 : index
    %c2_47 = arith.constant 2 : index
    %c0_48 = arith.constant 0 : index
    %87 = vector.load %arg8[%c0_45, %c2_46, %c2_47, %c0_48] : memref<1x18x18x128xbf16, #tpu.memory_space<vmem>>, vector<1x16x16x128xbf16>
    %88 = vector.shape_cast %87 : vector<1x16x16x128xbf16> to vector<256x128xbf16>
    %c32_i32_49 = arith.constant 32 : i32
    %89 = vector.broadcast %c32_i32_49 : i32 to vector<1x128xi32>
    %90 = arith.cmpi sge, %0, %89 : vector<1x128xi32>
    %c36_i32 = arith.constant 36 : i32
    %91 = vector.broadcast %c36_i32 : i32 to vector<1x128xi32>
    %92 = arith.cmpi slt, %0, %91 : vector<1x128xi32>
    %93 = arith.andi %90, %92 : vector<1x128xi1>
    %94 = vector.shape_cast %93 : vector<1x128xi1> to vector<1x128xi1>
    %95 = vector.broadcast %94 : vector<1x128xi1> to vector<256x128xi1>
    %96 = arith.select %95, %88, %86 : vector<256x128xi1>, vector<256x128xbf16>
    %c0_50 = arith.constant 0 : index
    %c0_51 = arith.constant 0 : index
    %97 = vector.load %arg2[%c0_50, %c0_51] : memref<128x128xbf16, #tpu.memory_space<vmem>>, vector<128x128xbf16>
    %cst_52 = arith.constant dense<0.000000e+00> : vector<256x128xf32>
    %98 = tpu.matmul %96, %97, %cst_52 {dimension_numbers = #tpu.dot_dimension_numbers<[1], [0], [0], [1], [0, 0, 1, 1], [], []>} : vector<256x128xbf16>, vector<128x128xbf16>, vector<256x128xf32> -> vector<256x128xf32>
    %c0_53 = arith.constant 0 : index
    %c0_54 = arith.constant 0 : index
    %99 = vector.load %arg3[%c0_53, %c0_54] : memref<1x128xf32, #tpu.memory_space<vmem>>, vector<1x128xf32>
    %100 = vector.broadcast %99 : vector<1x128xf32> to vector<256x128xf32>
    %101 = arith.addf %98, %100 : vector<256x128xf32>
    %cst_55 = arith.constant 0.000000e+00 : f32
    %102 = vector.broadcast %cst_55 : f32 to vector<256x128xf32>
    %103 = arith.maximumf %101, %102 : vector<256x128xf32>
    %104 = vector.shape_cast %103 : vector<256x128xf32> to vector<1x16x16x128xf32>
    %105 = arith.truncf %104 : vector<1x16x16x128xf32> to vector<1x16x16x128xbf16>
    %c0_56 = arith.constant 0 : index
    %c1_57 = arith.constant 1 : index
    %c1_58 = arith.constant 1 : index
    %c0_59 = arith.constant 0 : index
    %106 = vector.load %arg8[%c0_56, %c1_57, %c1_58, %c0_59] : memref<1x18x18x128xbf16, #tpu.memory_space<vmem>>, vector<1x16x16x128xbf16>
    tpu.vector_store %arg8[%c0_56, %c1_57, %c1_58, %c0_59], %105 {strides = array<i32>} : memref<1x18x18x128xbf16, #tpu.memory_space<vmem>>, vector<1x16x16x128xbf16>,
    %c0_60 = arith.constant 0 : index
    %c0_61 = arith.constant 0 : index
    %c0_62 = arith.constant 0 : index
    %c0_63 = arith.constant 0 : index
    %107 = vector.load %arg8[%c0_60, %c0_61, %c0_62, %c0_63] : memref<1x18x18x128xbf16, #tpu.memory_space<vmem>>, vector<1x16x16x128xbf16>
    %108 = vector.shape_cast %107 : vector<1x16x16x128xbf16> to vector<256x128xbf16>
    %c0_i32_64 = arith.constant 0 : i32
    %109 = vector.broadcast %c0_i32_64 : i32 to vector<1x128xi32>
    %110 = arith.cmpi sge, %0, %109 : vector<1x128xi32>
    %c8_i32_65 = arith.constant 8 : i32
    %111 = vector.broadcast %c8_i32_65 : i32 to vector<1x128xi32>
    %112 = arith.cmpi slt, %0, %111 : vector<1x128xi32>
    %113 = arith.andi %110, %112 : vector<1x128xi1>
    %cst_66 = arith.constant 0.000000e+00 : f32
    %114 = arith.truncf %cst_66 : f32 to bf16
    %115 = vector.shape_cast %113 : vector<1x128xi1> to vector<1x128xi1>
    %116 = vector.broadcast %115 : vector<1x128xi1> to vector<256x128xi1>
    %117 = vector.broadcast %114 : bf16 to vector<256x128xbf16>
    %118 = arith.select %116, %108, %117 : vector<256x128xi1>, vector<256x128xbf16>
    %c0_67 = arith.constant 0 : index
    %c0_68 = arith.constant 0 : index
    %c1_69 = arith.constant 1 : index
    %c0_70 = arith.constant 0 : index
    %119 = vector.load %arg8[%c0_67, %c0_68, %c1_69, %c0_70] : memref<1x18x18x128xbf16, #tpu.memory_space<vmem>>, vector<1x16x16x128xbf16>
    %120 = vector.shape_cast %119 : vector<1x16x16x128xbf16> to vector<256x128xbf16>
    %c8_i32_71 = arith.constant 8 : i32
    %121 = vector.broadcast %c8_i32_71 : i32 to vector<1x128xi32>
    %122 = arith.cmpi sge, %0, %121 : vector<1x128xi32>
    %c16_i32_72 = arith.constant 16 : i32
    %123 = vector.broadcast %c16_i32_72 : i32 to vector<1x128xi32>
    %124 = arith.cmpi slt, %0, %123 : vector<1x128xi32>
    %125 = arith.andi %122, %124 : vector<1x128xi1>
    %126 = vector.shape_cast %125 : vector<1x128xi1> to vector<1x128xi1>
    %127 = vector.broadcast %126 : vector<1x128xi1> to vector<256x128xi1>
    %128 = arith.select %127, %120, %118 : vector<256x128xi1>, vector<256x128xbf16>
    %c0_73 = arith.constant 0 : index
    %c0_74 = arith.constant 0 : index
    %c2_75 = arith.constant 2 : index
    %c0_76 = arith.constant 0 : index
    %129 = vector.load %arg8[%c0_73, %c0_74, %c2_75, %c0_76] : memref<1x18x18x128xbf16, #tpu.memory_space<vmem>>, vector<1x16x16x128xbf16>
    %130 = vector.shape_cast %129 : vector<1x16x16x128xbf16> to vector<256x128xbf16>
    %c16_i32_77 = arith.constant 16 : i32
    %131 = vector.broadcast %c16_i32_77 : i32 to vector<1x128xi32>
    %132 = arith.cmpi sge, %0, %131 : vector<1x128xi32>
    %c24_i32_78 = arith.constant 24 : i32
    %133 = vector.broadcast %c24_i32_78 : i32 to vector<1x128xi32>
    %134 = arith.cmpi slt, %0, %133 : vector<1x128xi32>
    %135 = arith.andi %132, %134 : vector<1x128xi1>
    %136 = vector.shape_cast %135 : vector<1x128xi1> to vector<1x128xi1>
    %137 = vector.broadcast %136 : vector<1x128xi1> to vector<256x128xi1>
    %138 = arith.select %137, %130, %128 : vector<256x128xi1>, vector<256x128xbf16>
    %c0_79 = arith.constant 0 : index
    %c1_80 = arith.constant 1 : index
    %c0_81 = arith.constant 0 : index
    %c0_82 = arith.constant 0 : index
    %139 = vector.load %arg8[%c0_79, %c1_80, %c0_81, %c0_82] : memref<1x18x18x128xbf16, #tpu.memory_space<vmem>>, vector<1x16x16x128xbf16>
    %140 = vector.shape_cast %139 : vector<1x16x16x128xbf16> to vector<256x128xbf16>
    %c24_i32_83 = arith.constant 24 : i32
    %141 = vector.broadcast %c24_i32_83 : i32 to vector<1x128xi32>
    %142 = arith.cmpi sge, %0, %141 : vector<1x128xi32>
    %c32_i32_84 = arith.constant 32 : i32
    %143 = vector.broadcast %c32_i32_84 : i32 to vector<1x128xi32>
    %144 = arith.cmpi slt, %0, %143 : vector<1x128xi32>
    %145 = arith.andi %142, %144 : vector<1x128xi1>
    %146 = vector.shape_cast %145 : vector<1x128xi1> to vector<1x128xi1>
    %147 = vector.broadcast %146 : vector<1x128xi1> to vector<256x128xi1>
    %148 = arith.select %147, %140, %138 : vector<256x128xi1>, vector<256x128xbf16>
    %c0_85 = arith.constant 0 : index
    %c1_86 = arith.constant 1 : index
    %c1_87 = arith.constant 1 : index
    %c0_88 = arith.constant 0 : index
    %149 = vector.load %arg8[%c0_85, %c1_86, %c1_87, %c0_88] : memref<1x18x18x128xbf16, #tpu.memory_space<vmem>>, vector<1x16x16x128xbf16>
    %150 = vector.shape_cast %149 : vector<1x16x16x128xbf16> to vector<256x128xbf16>
    %c32_i32_89 = arith.constant 32 : i32
    %151 = vector.broadcast %c32_i32_89 : i32 to vector<1x128xi32>
    %152 = arith.cmpi sge, %0, %151 : vector<1x128xi32>
    %c40_i32 = arith.constant 40 : i32
    %153 = vector.broadcast %c40_i32 : i32 to vector<1x128xi32>
    %154 = arith.cmpi slt, %0, %153 : vector<1x128xi32>
    %155 = arith.andi %152, %154 : vector<1x128xi1>
    %156 = vector.shape_cast %155 : vector<1x128xi1> to vector<1x128xi1>
    %157 = vector.broadcast %156 : vector<1x128xi1> to vector<256x128xi1>
    %158 = arith.select %157, %150, %148 : vector<256x128xi1>, vector<256x128xbf16>
    %c0_90 = arith.constant 0 : index
    %c1_91 = arith.constant 1 : index
    %c2_92 = arith.constant 2 : index
    %c0_93 = arith.constant 0 : index
    %159 = vector.load %arg8[%c0_90, %c1_91, %c2_92, %c0_93] : memref<1x18x18x128xbf16, #tpu.memory_space<vmem>>, vector<1x16x16x128xbf16>
    %160 = vector.shape_cast %159 : vector<1x16x16x128xbf16> to vector<256x128xbf16>
    %c40_i32_94 = arith.constant 40 : i32
    %161 = vector.broadcast %c40_i32_94 : i32 to vector<1x128xi32>
    %162 = arith.cmpi sge, %0, %161 : vector<1x128xi32>
    %c48_i32 = arith.constant 48 : i32
    %163 = vector.broadcast %c48_i32 : i32 to vector<1x128xi32>
    %164 = arith.cmpi slt, %0, %163 : vector<1x128xi32>
    %165 = arith.andi %162, %164 : vector<1x128xi1>
    %166 = vector.shape_cast %165 : vector<1x128xi1> to vector<1x128xi1>
    %167 = vector.broadcast %166 : vector<1x128xi1> to vector<256x128xi1>
    %168 = arith.select %167, %160, %158 : vector<256x128xi1>, vector<256x128xbf16>
    %c0_95 = arith.constant 0 : index
    %c2_96 = arith.constant 2 : index
    %c0_97 = arith.constant 0 : index
    %c0_98 = arith.constant 0 : index
    %169 = vector.load %arg8[%c0_95, %c2_96, %c0_97, %c0_98] : memref<1x18x18x128xbf16, #tpu.memory_space<vmem>>, vector<1x16x16x128xbf16>
    %170 = vector.shape_cast %169 : vector<1x16x16x128xbf16> to vector<256x128xbf16>
    %c48_i32_99 = arith.constant 48 : i32
    %171 = vector.broadcast %c48_i32_99 : i32 to vector<1x128xi32>
    %172 = arith.cmpi sge, %0, %171 : vector<1x128xi32>
    %c56_i32 = arith.constant 56 : i32
    %173 = vector.broadcast %c56_i32 : i32 to vector<1x128xi32>
    %174 = arith.cmpi slt, %0, %173 : vector<1x128xi32>
    %175 = arith.andi %172, %174 : vector<1x128xi1>
    %176 = vector.shape_cast %175 : vector<1x128xi1> to vector<1x128xi1>
    %177 = vector.broadcast %176 : vector<1x128xi1> to vector<256x128xi1>
    %178 = arith.select %177, %170, %168 : vector<256x128xi1>, vector<256x128xbf16>
    %c0_100 = arith.constant 0 : index
    %c2_101 = arith.constant 2 : index
    %c1_102 = arith.constant 1 : index
    %c0_103 = arith.constant 0 : index
    %179 = vector.load %arg8[%c0_100, %c2_101, %c1_102, %c0_103] : memref<1x18x18x128xbf16, #tpu.memory_space<vmem>>, vector<1x16x16x128xbf16>
    %180 = vector.shape_cast %179 : vector<1x16x16x128xbf16> to vector<256x128xbf16>
    %c56_i32_104 = arith.constant 56 : i32
    %181 = vector.broadcast %c56_i32_104 : i32 to vector<1x128xi32>
    %182 = arith.cmpi sge, %0, %181 : vector<1x128xi32>
    %c64_i32 = arith.constant 64 : i32
    %183 = vector.broadcast %c64_i32 : i32 to vector<1x128xi32>
    %184 = arith.cmpi slt, %0, %183 : vector<1x128xi32>
    %185 = arith.andi %182, %184 : vector<1x128xi1>
    %186 = vector.shape_cast %185 : vector<1x128xi1> to vector<1x128xi1>
    %187 = vector.broadcast %186 : vector<1x128xi1> to vector<256x128xi1>
    %188 = arith.select %187, %180, %178 : vector<256x128xi1>, vector<256x128xbf16>
    %c0_105 = arith.constant 0 : index
    %c2_106 = arith.constant 2 : index
    %c2_107 = arith.constant 2 : index
    %c0_108 = arith.constant 0 : index
    %189 = vector.load %arg8[%c0_105, %c2_106, %c2_107, %c0_108] : memref<1x18x18x128xbf16, #tpu.memory_space<vmem>>, vector<1x16x16x128xbf16>
    %190 = vector.shape_cast %189 : vector<1x16x16x128xbf16> to vector<256x128xbf16>
    %c64_i32_109 = arith.constant 64 : i32
    %191 = vector.broadcast %c64_i32_109 : i32 to vector<1x128xi32>
    %192 = arith.cmpi sge, %0, %191 : vector<1x128xi32>
    %c72_i32 = arith.constant 72 : i32
    %193 = vector.broadcast %c72_i32 : i32 to vector<1x128xi32>
    %194 = arith.cmpi slt, %0, %193 : vector<1x128xi32>
    %195 = arith.andi %192, %194 : vector<1x128xi1>
    %196 = vector.shape_cast %195 : vector<1x128xi1> to vector<1x128xi1>
    %197 = vector.broadcast %196 : vector<1x128xi1> to vector<256x128xi1>
    %198 = arith.select %197, %190, %188 : vector<256x128xi1>, vector<256x128xbf16>
    %c0_110 = arith.constant 0 : index
    %c0_111 = arith.constant 0 : index
    %199 = vector.load %arg4[%c0_110, %c0_111] : memref<128x128xbf16, #tpu.memory_space<vmem>>, vector<128x128xbf16>
    %cst_112 = arith.constant dense<0.000000e+00> : vector<256x128xf32>
    %200 = tpu.matmul %198, %199, %cst_112 {dimension_numbers = #tpu.dot_dimension_numbers<[1], [0], [0], [1], [0, 0, 1, 1], [], []>} : vector<256x128xbf16>, vector<128x128xbf16>, vector<256x128xf32> -> vector<256x128xf32>
    %c0_113 = arith.constant 0 : index
    %c1_114 = arith.constant 1 : index
    %c1_115 = arith.constant 1 : index
    %c0_116 = arith.constant 0 : index
    %201 = vector.load %arg1[%c0_113, %c1_114, %c1_115, %c0_116] : memref<1x18x18x128xbf16, #tpu.memory_space<vmem>>, vector<1x16x16x128xbf16>
    %202 = vector.shape_cast %201 : vector<1x16x16x128xbf16> to vector<256x128xbf16>
    %c0_117 = arith.constant 0 : index
    %c0_118 = arith.constant 0 : index
    %203 = vector.load %arg5[%c0_117, %c0_118] : memref<128x128xbf16, #tpu.memory_space<vmem>>, vector<128x128xbf16>
    %cst_119 = arith.constant dense<0.000000e+00> : vector<256x128xf32>
    %204 = tpu.matmul %202, %203, %cst_119 {dimension_numbers = #tpu.dot_dimension_numbers<[1], [0], [0], [1], [0, 0, 1, 1], [], []>} : vector<256x128xbf16>, vector<128x128xbf16>, vector<256x128xf32> -> vector<256x128xf32>
    %205 = arith.addf %200, %204 : vector<256x128xf32>
    %c0_120 = arith.constant 0 : index
    %c0_121 = arith.constant 0 : index
    %206 = vector.load %arg6[%c0_120, %c0_121] : memref<1x128xf32, #tpu.memory_space<vmem>>, vector<1x128xf32>
    %207 = vector.broadcast %206 : vector<1x128xf32> to vector<256x128xf32>
    %208 = arith.addf %205, %207 : vector<256x128xf32>
    %209 = vector.shape_cast %208 : vector<256x128xf32> to vector<1x16x16x128xf32>
    %c0_122 = arith.constant 0 : index
    %c0_123 = arith.constant 0 : index
    %c0_124 = arith.constant 0 : index
    %c0_125 = arith.constant 0 : index
    %210 = vector.load %arg7[%c0_122, %c0_123, %c0_124, %c0_125] : memref<1x16x16x128xf32, #tpu.memory_space<vmem>>, vector<1x16x16x128xf32>
    tpu.vector_store %arg7[%c0_122, %c0_123, %c0_124, %c0_125], %209 {strides = array<i32>} : memref<1x16x16x128xf32, #tpu.memory_space<vmem>>, vector<1x16x16x128xf32>,
    return
  }
  func.func @transform_0(%arg0: i32) -> (i32, i32, i32, i32) {
    %c0_i32 = arith.constant 0 : i32
    %c0_i32_0 = arith.constant 0 : i32
    %c0_i32_1 = arith.constant 0 : i32
    %c0_i32_2 = arith.constant 0 : i32
    return %arg0, %c0_i32, %c0_i32_0, %c0_i32_1 : i32, i32, i32, i32
  }
  func.func @transform_1(%arg0: i32) -> (i32, i32) {
    %c0_i32 = arith.constant 0 : i32
    %c0_i32_0 = arith.constant 0 : i32
    %c0_i32_1 = arith.constant 0 : i32
    return %c0_i32, %c0_i32_0 : i32, i32
  }
  func.func @transform_2(%arg0: i32) -> (i32, i32) {
    %c0_i32 = arith.constant 0 : i32
    %c0_i32_0 = arith.constant 0 : i32
    %c0_i32_1 = arith.constant 0 : i32
    return %c0_i32, %c0_i32_0 : i32, i32
  }
  func.func @transform_3(%arg0: i32) -> (i32, i32) {
    %c0_i32 = arith.constant 0 : i32
    %c0_i32_0 = arith.constant 0 : i32
    %c0_i32_1 = arith.constant 0 : i32
    return %c0_i32, %c0_i32_0 : i32, i32
  }
  func.func @transform_4(%arg0: i32) -> (i32, i32) {
    %c0_i32 = arith.constant 0 : i32
    %c0_i32_0 = arith.constant 0 : i32
    %c0_i32_1 = arith.constant 0 : i32
    return %c0_i32, %c0_i32_0 : i32, i32
  }
  func.func @transform_5(%arg0: i32) -> (i32, i32) {
    %c0_i32 = arith.constant 0 : i32
    %c0_i32_0 = arith.constant 0 : i32
    %c0_i32_1 = arith.constant 0 : i32
    return %c0_i32, %c0_i32_0 : i32, i32
  }
  func.func @transform_6(%arg0: i32) -> (i32, i32, i32, i32) {
    %c0_i32 = arith.constant 0 : i32
    %c0_i32_0 = arith.constant 0 : i32
    %c0_i32_1 = arith.constant 0 : i32
    %c0_i32_2 = arith.constant 0 : i32
    return %arg0, %c0_i32, %c0_i32_0, %c0_i32_1 : i32, i32, i32, i32
  }
}

</mosaic_0001>

<llo_original>
// kernel: tile.8
$region0: #{tile.8}
  #allocation2 [shape = 's32[1]{0}', space=sflag, size = 0x4, scoped, tag = 'scoped memory for tile.8']
  %s0 = inlined_call_operand.hbm [shape: f32[8], index: 0, kind: input, shape index: {}]
  %s1 = inlined_call_operand.vmem [shape: f32[9,8], index: 1, kind: output, shape index: {}]
  $region1: #{tile.8} parent=0
    #allocation0 [shape = 'u8[512]{0}', space=vmem, size = 0x400, scoped, tag = 'operand span for operand 0']
    #allocation1 [shape = 's32[1]{0}', space=sflag, size = 0x4, scoped, tag = 'scoped memory for tile.8']
    %2 = vsyncpa [#allocation1], 0
    // Predicated region
    $region2: #{tile.8} parent=1 // pred_check
      _
    $region3: #{tile.8} parent=1 // pred_check_branch
      %4 = sbr.rel (0) target = $region5
    $region4: #{tile.8} parent=1 // pred_region
      %6 = vsyncadd [#allocation1], 0
      %s8 = sshll.u32 %s0, 4
      %s9 = int_to_ptr.hbm [resolvable:$true] %s8
      %s10 = sshll.u32 [#allocation0], 4
      %s11 = int_to_ptr.vmem [resolvable:$true] %s10
      %13 = dma.hbm_to_vmem [thread:$0]  %s9, 16, %s11, [#allocation1]
    $region5: #{tile.8} parent=1 // pred_fallthru
      _
    // Predicated region
    $region6: #{tile.8} parent=1 // pred_check
      _
    $region7: #{tile.8} parent=1 // pred_check_branch
      %15 = sbr.rel (0) target = $region9
    $region8: #{tile.8} parent=1 // pred_region
      %17 = dma.done [#allocation1], 16
    $region9: #{tile.8} parent=1 // pred_fallthru
      _
    %v18 = vld [vmem:[#allocation0] ss:$0 sm:$0xff]
    %19 = vst [vmem:[%s1] sm:$0xff] %v18
    %s20 = scalar_lea.vmem %s1, 8
    %21 = vst [vmem:[%s20] sm:$0xff] %v18
    %22 = vsyncpa [#allocation1], 1

// kernel: tile.9
$region0: #{tile.9}
  %s0 = inlined_call_operand.vmem [shape: f32[9,8], index: 0, kind: input, shape index: {}]
  %s1 = inlined_call_operand.vmem [shape: f32[72], index: 1, kind: output, shape index: {}]
  $region1: #{tile.9} parent=0
    #allocation0 [shape = 'u8[4096]{0}', space=vmem, size = 0x1000, scoped, tag = 'scoped mem for output reshape']
    %v2 = vld [vmem:[%s0] sm:$0x1]
    %vm3 = vcmask 64512
    %4 = vst.msk [vmem:[#allocation0] sm:$0x1] %vm3, %v2
    %s5 = scalar_lea.vmem %s0, 8
    %v6 = vld [vmem:[%s5] sm:$0x1]
    %7 = vrot.lane.b32.xlu0 %v6, 64
    %v8 = vpop.permute.xlu0 %7
    %vm9 = vcmask 589312
    %10 = vst.msk [vmem:[#allocation0] sm:$0x1] %vm9, %v8
    %s11 = scalar_lea.vmem %s0, 7
    %v12 = vld [vmem:[%s11] sm:$0x1]
    %13 = vrot.lane.b32.xlu0 %v12, 56
    %v14 = vpop.permute.xlu0 %13
    %vm15 = vcmask 523712
    %16 = vst.msk [vmem:[#allocation0] sm:$0x1] %vm15, %v14
    %s17 = scalar_lea.vmem %s0, 6
    %v18 = vld [vmem:[%s17] sm:$0x1]
    %19 = vrot.lane.b32.xlu0 %v18, 48
    %v20 = vpop.permute.xlu0 %19
    %vm21 = vcmask 458112
    %22 = vst.msk [vmem:[#allocation0] sm:$0x1] %vm21, %v20
    %s23 = scalar_lea.vmem %s0, 5
    %v24 = vld [vmem:[%s23] sm:$0x1]
    %25 = vrot.lane.b32.xlu0 %v24, 40
    %v26 = vpop.permute.xlu0 %25
    %vm27 = vcmask 392512
    %28 = vst.msk [vmem:[#allocation0] sm:$0x1] %vm27, %v26
    %s29 = scalar_lea.vmem %s0, 4
    %v30 = vld [vmem:[%s29] sm:$0x1]
    %31 = vrot.lane.b32.xlu0 %v30, 32
    %v32 = vpop.permute.xlu0 %31
    %vm33 = vcmask 326912
    %34 = vst.msk [vmem:[#allocation0] sm:$0x1] %vm33, %v32
    %s35 = scalar_lea.vmem %s0, 3
    %v36 = vld [vmem:[%s35] sm:$0x1]
    %37 = vrot.lane.b32.xlu0 %v36, 24
    %v38 = vpop.permute.xlu0 %37
    %vm39 = vcmask 261312
    %40 = vst.msk [vmem:[#allocation0] sm:$0x1] %vm39, %v38
    %s41 = scalar_lea.vmem %s0, 2
    %v42 = vld [vmem:[%s41] sm:$0x1]
    %43 = vrot.lane.b32.xlu0 %v42, 16
    %v44 = vpop.permute.xlu0 %43
    %vm45 = vcmask 195712
    %46 = vst.msk [vmem:[#allocation0] sm:$0x1] %vm45, %v44
    %s47 = scalar_lea.vmem %s0, 1
    %v48 = vld [vmem:[%s47] sm:$0x1]
    %49 = vrot.lane.b32.xlu0 %v48, 8
    %v50 = vpop.permute.xlu0 %49
    %vm51 = vcmask 130112
    %52 = vst.msk [vmem:[#allocation0] sm:$0x1] %vm51, %v50
    %s54 = ssub.s32 2, 1
    %v55 = vld [vmem:[#allocation0] sm:%s54]
    %s57 = ssub.s32 2, 1
    %58 = vst [vmem:[%s1] sm:%s57] %v55

// kernel: preact_resblock_pallas.1
$region0: #{preact_resblock_pallas.1}
  #allocation0 [shape = 'u32[]', space=smem, size = 0x4, offset = 0x4, fixed_abs, tag = 'smem constant byte address 0x4 - core index']
  #allocation1 [shape = 'u32[72,128]{1,0:T(1,128)}', space=vmem, size = 0x9000, scoped, tag = 'internal scratch']
  #allocation2 [shape = 'bf16[1,18,18,128]{3,2,1,0:T(8,128)(2,1)}', space=vmem, size = 0x1b000, scoped, tag = 'scratch operand']
  %s0 = inlined_call_operand.vmem [shape: bf16[2,18,18,128], index: 0, kind: input, shape index: {}]
  %s1 = inlined_call_operand.vmem [shape: bf16[128,128], index: 1, kind: input, shape index: {}]
  %s2 = inlined_call_operand.vmem [shape: f32[1,128], index: 2, kind: input, shape index: {}]
  %s3 = inlined_call_operand.vmem [shape: bf16[128,128], index: 3, kind: input, shape index: {}]
  %s4 = inlined_call_operand.vmem [shape: bf16[128,128], index: 4, kind: input, shape index: {}]
  %s5 = inlined_call_operand.vmem [shape: f32[1,128], index: 5, kind: input, shape index: {}]
  %s6 = inlined_call_operand.vmem [shape: f32[2,16,16,128], index: 6, kind: output, shape index: {}]
  %s7 = sld [smem:[#allocation0]]
  $region57: #{preact_resblock_pallas.1} parent=0
    _
  %s9 = ssub.s32 1, %s7
  %s10 = scalar_select 0, %s9, %s7
  loop: start=0, step=1, limit=4
  $region2: #{preact_resblock_pallas.1} parent=0 // loop_pre_header
    _
  $region3: #{preact_resblock_pallas.1} parent=0 // loop_header
    %s12 = sphi 0, %s16
    %p13 = scmp.ge.s32.totalorder %s12, 4
    %s22 = sphi 0, %s24
    %s25 = sphi 0, %s22
    %s26 = sphi 0, %s25
    %s42 = sphi 0, %s26
    %s46 = sphi 0, %s46
    %s48 = sphi 0, %s46
    %s49 = sphi 0, %s48
    %s63 = sphi 0, %s49
    %s67 = sphi 0, %s67
    %s69 = sphi 0, %s67
    %s70 = sphi 0, %s69
    %s84 = sphi 0, %s70
    %s88 = sphi 0, %s88
    %s90 = sphi 0, %s88
    %s91 = sphi 0, %s90
    %s105 = sphi 0, %s91
    %s109 = sphi 0, %s109
    %s111 = sphi 0, %s109
    %s112 = sphi 0, %s111
    %s126 = sphi 0, %s112
    %s130 = sphi 0, %s130
    %s132 = sphi 0, %s130
    %s133 = sphi 0, %s132
    %s147 = sphi 0, %s133
    %s153 = sphi 0, %s155
    %s156 = sphi 0, %s153
    %s157 = sphi 0, %s156
    %s173 = sphi 0, %s157
  $region4: #{preact_resblock_pallas.1} parent=0 // loop_header_branch
    %15 = sbr.rel (%p13) target = $region8
  $region5: #{preact_resblock_pallas.1} parent=0 // loop_body
    %s17 = ssub.s32 %s12, 1
    %s18 = ssub.s32 %s12, 2
    %s19 = sadd.s32 %s12, 1
    %s20 = ssub.s32 %s12, %s19
    %p21 = scmp.eq.s32.totalorder %s20, 0
    %s23 = sadd.s32 %s22, 1
    %s24 = scalar_select %p21, %s22, %s23
    %p27 = pneg %p21
    %p28 = scmp.eq.s32.totalorder %s12, 1
    %p29 = por %p27, %p28
    %p30 = scmp.ne.s32.totalorder %s22, %s25
    %p31 = scmp.eq.s32.totalorder %s12, 0
    %p32 = por %p30, %p31
    %p33 = scmp.ne.s32.totalorder %s22, %s25
    %p34 = scmp.eq.s32.totalorder %s17, 1
    %p35 = por %p33, %p34
    %p36 = scmp.ne.s32.totalorder %s25, %s26
    %p37 = scmp.eq.s32.totalorder %s17, 0
    %p38 = por %p36, %p37
    %p39 = scmp.ne.s32.totalorder %s25, %s26
    %p40 = scmp.eq.s32.totalorder %s18, 1
    %p41 = por %p39, %p40
    %p43 = scmp.ne.s32.totalorder %s26, %s42
    %p44 = scmp.eq.s32.totalorder %s18, 0
    %p45 = por %p43, %p44
    %s47 = sadd.s32 %s46, 1
    %p50 = scmp.eq.s32.totalorder %s12, 1
    %p51 = scmp.ne.s32.totalorder %s46, %s48
    %p52 = scmp.eq.s32.totalorder %s12, 0
    %p53 = por %p51, %p52
    %p54 = scmp.ne.s32.totalorder %s46, %s48
    %p55 = scmp.eq.s32.totalorder %s17, 1
    %p56 = por %p54, %p55
    %p57 = scmp.ne.s32.totalorder %s48, %s49
    %p58 = scmp.eq.s32.totalorder %s17, 0
    %p59 = por %p57, %p58
    %p60 = scmp.ne.s32.totalorder %s48, %s49
    %p61 = scmp.eq.s32.totalorder %s18, 1
    %p62 = por %p60, %p61
    %p64 = scmp.ne.s32.totalorder %s49, %s63
    %p65 = scmp.eq.s32.totalorder %s18, 0
    %p66 = por %p64, %p65
    %s68 = sadd.s32 %s67, 1
    %p71 = scmp.eq.s32.totalorder %s12, 1
    %p72 = scmp.ne.s32.totalorder %s67, %s69
    %p73 = scmp.eq.s32.totalorder %s12, 0
    %p74 = por %p72, %p73
    %p75 = scmp.ne.s32.totalorder %s67, %s69
    %p76 = scmp.eq.s32.totalorder %s17, 1
    %p77 = por %p75, %p76
    %p78 = scmp.ne.s32.totalorder %s69, %s70
    %p79 = scmp.eq.s32.totalorder %s17, 0
    %p80 = por %p78, %p79
    %p81 = scmp.ne.s32.totalorder %s69, %s70
    %p82 = scmp.eq.s32.totalorder %s18, 1
    %p83 = por %p81, %p82
    %p85 = scmp.ne.s32.totalorder %s70, %s84
    %p86 = scmp.eq.s32.totalorder %s18, 0
    %p87 = por %p85, %p86
    %s89 = sadd.s32 %s88, 1
    %p92 = scmp.eq.s32.totalorder %s12, 1
    %p93 = scmp.ne.s32.totalorder %s88, %s90
    %p94 = scmp.eq.s32.totalorder %s12, 0
    %p95 = por %p93, %p94
    %p96 = scmp.ne.s32.totalorder %s88, %s90
    %p97 = scmp.eq.s32.totalorder %s17, 1
    %p98 = por %p96, %p97
    %p99 = scmp.ne.s32.totalorder %s90, %s91
    %p100 = scmp.eq.s32.totalorder %s17, 0
    %p101 = por %p99, %p100
    %p102 = scmp.ne.s32.totalorder %s90, %s91
    %p103 = scmp.eq.s32.totalorder %s18, 1
    %p104 = por %p102, %p103
    %p106 = scmp.ne.s32.totalorder %s91, %s105
    %p107 = scmp.eq.s32.totalorder %s18, 0
    %p108 = por %p106, %p107
    %s110 = sadd.s32 %s109, 1
    %p113 = scmp.eq.s32.totalorder %s12, 1
    %p114 = scmp.ne.s32.totalorder %s109, %s111
    %p115 = scmp.eq.s32.totalorder %s12, 0
    %p116 = por %p114, %p115
    %p117 = scmp.ne.s32.totalorder %s109, %s111
    %p118 = scmp.eq.s32.totalorder %s17, 1
    %p119 = por %p117, %p118
    %p120 = scmp.ne.s32.totalorder %s111, %s112
    %p121 = scmp.eq.s32.totalorder %s17, 0
    %p122 = por %p120, %p121
    %p123 = scmp.ne.s32.totalorder %s111, %s112
    %p124 = scmp.eq.s32.totalorder %s18, 1
    %p125 = por %p123, %p124
    %p127 = scmp.ne.s32.totalorder %s112, %s126
    %p128 = scmp.eq.s32.totalorder %s18, 0
    %p129 = por %p127, %p128
    %s131 = sadd.s32 %s130, 1
    %p134 = scmp.eq.s32.totalorder %s12, 1
    %p135 = scmp.ne.s32.totalorder %s130, %s132
    %p136 = scmp.eq.s32.totalorder %s12, 0
    %p137 = por %p135, %p136
    %p138 = scmp.ne.s32.totalorder %s130, %s132
    %p139 = scmp.eq.s32.totalorder %s17, 1
    %p140 = por %p138, %p139
    %p141 = scmp.ne.s32.totalorder %s132, %s133
    %p142 = scmp.eq.s32.totalorder %s17, 0
    %p143 = por %p141, %p142
    %p144 = scmp.ne.s32.totalorder %s132, %s133
    %p145 = scmp.eq.s32.totalorder %s18, 1
    %p146 = por %p144, %p145
    %p148 = scmp.ne.s32.totalorder %s133, %s147
    %p149 = scmp.eq.s32.totalorder %s18, 0
    %p150 = por %p148, %p149
    %s151 = ssub.s32 %s12, %s19
    %p152 = scmp.eq.s32.totalorder %s151, 0
    %s154 = sadd.s32 %s153, 1
    %s155 = scalar_select %p152, %s153, %s154
    %p158 = pneg %p152
    %p159 = scmp.eq.s32.totalorder %s12, 1
    %p160 = por %p158, %p159
    %p161 = scmp.ne.s32.totalorder %s153, %s156
    %p162 = scmp.eq.s32.totalorder %s12, 0
    %p163 = por %p161, %p162
    %p164 = scmp.ne.s32.totalorder %s153, %s156
    %p165 = scmp.eq.s32.totalorder %s17, 1
    %p166 = por %p164, %p165
    %p167 = scmp.ne.s32.totalorder %s156, %s157
    %p168 = scmp.eq.s32.totalorder %s17, 0
    %p169 = por %p167, %p168
    %p170 = scmp.ne.s32.totalorder %s156, %s157
    %p171 = scmp.eq.s32.totalorder %s18, 1
    %p172 = por %p170, %p171
    %p174 = scmp.ne.s32.totalorder %s157, %s173
    %p175 = scmp.eq.s32.totalorder %s18, 0
    %p176 = por %p174, %p175
    %p177 = scmp.le.s32.totalorder 1, %s12
    %p178 = scmp.lt.s32.totalorder %s12, 3
    %p179 = pnand %p177, %p178
    %p180 = pneg %p179
    // Predicated region
    $region9: #{preact_resblock_pallas.1} parent=5 // pred_check
      _
    $region10: #{preact_resblock_pallas.1} parent=5 // pred_check_branch
      %182 = sbr.rel (%p179) target = $region12
    $region11: #{preact_resblock_pallas.1} parent=5 // pred_region
      %s183 = ssub.s32 %s12, 1
      // Predicated region
      $region13: #{preact_resblock_pallas.1} parent=11 // pred_check
        %p184 = pneg %p59
      $region14: #{preact_resblock_pallas.1} parent=11 // pred_check_branch
        %186 = sbr.rel (%p184) target = $region16
      $region15: #{preact_resblock_pallas.1} parent=11 // pred_region
        _
      $region16: #{preact_resblock_pallas.1} parent=11 // pred_fallthru
        _
      // Predicated region
      $region17: #{preact_resblock_pallas.1} parent=11 // pred_check
        %p187 = pneg %p80
      $region18: #{preact_resblock_pallas.1} parent=11 // pred_check_branch
        %189 = sbr.rel (%p187) target = $region20
      $region19: #{preact_resblock_pallas.1} parent=11 // pred_region
        _
      $region20: #{preact_resblock_pallas.1} parent=11 // pred_fallthru
        _
      // Predicated region
      $region21: #{preact_resblock_pallas.1} parent=11 // pred_check
        %p190 = pneg %p101
      $region22: #{preact_resblock_pallas.1} parent=11 // pred_check_branch
        %192 = sbr.rel (%p190) target = $region24
      $region23: #{preact_resblock_pallas.1} parent=11 // pred_region
        _
      $region24: #{preact_resblock_pallas.1} parent=11 // pred_fallthru
        _
      // Predicated region
      $region25: #{preact_resblock_pallas.1} parent=11 // pred_check
        %p193 = pneg %p122
      $region26: #{preact_resblock_pallas.1} parent=11 // pred_check_branch
        %195 = sbr.rel (%p193) target = $region28
      $region27: #{preact_resblock_pallas.1} parent=11 // pred_region
        _
      $region28: #{preact_resblock_pallas.1} parent=11 // pred_fallthru
        _
      // Predicated region
      $region29: #{preact_resblock_pallas.1} parent=11 // pred_check
        %p196 = pneg %p143
      $region30: #{preact_resblock_pallas.1} parent=11 // pred_check_branch
        %198 = sbr.rel (%p196) target = $region32
      $region31: #{preact_resblock_pallas.1} parent=11 // pred_region
        _
      $region32: #{preact_resblock_pallas.1} parent=11 // pred_fallthru
        _
    $region12: #{preact_resblock_pallas.1} parent=5 // pred_fallthru
      _
    %p199 = scmp.lt.s32.totalorder %s12, 2
    // Predicated region
    $region33: #{preact_resblock_pallas.1} parent=5 // pred_check
      %p200 = pneg %p199
    $region34: #{preact_resblock_pallas.1} parent=5 // pred_check_branch
      %202 = sbr.rel (%p200) target = $region36
    $region35: #{preact_resblock_pallas.1} parent=5 // pred_region
      // Predicated region
      $region37: #{preact_resblock_pallas.1} parent=35 // pred_check
        %p203 = pneg %p32
      $region38: #{preact_resblock_pallas.1} parent=35 // pred_check_branch
        %205 = sbr.rel (%p203) target = $region40
      $region39: #{preact_resblock_pallas.1} parent=35 // pred_region
        %p206 = scmp.lt.s32.totalorder %s12, 1
        %s207 = scalar_select %p206, %s12, 1
        %s208 = smul.addr %s207, 54
        %s209 = smul.addr %s208, 4
        %s210 = scalar_lea.vmem %s0, %s209
      $region40: #{preact_resblock_pallas.1} parent=35 // pred_fallthru
        _
    $region36: #{preact_resblock_pallas.1} parent=5 // pred_fallthru
      _
    %p211 = scmp.le.s32.totalorder 1, %s12
    %p212 = scmp.lt.s32.totalorder %s12, 3
    %p213 = pnand %p211, %p212
    %p214 = pneg %p213
    // Predicated region
    $region41: #{preact_resblock_pallas.1} parent=5 // pred_check
      _
    $region42: #{preact_resblock_pallas.1} parent=5 // pred_check_branch
      %216 = sbr.rel (%p213) target = $region44
    $region43: #{preact_resblock_pallas.1} parent=5 // pred_region
      %s217 = ssub.s32 %s12, 1
      %p218 = scmp.lt.s32.totalorder %s17, 1
      %s219 = scalar_select %p218, %s17, 1
      %s220 = smul.addr %s219, 54
      %s221 = smul.addr %s220, 4
      %s222 = scalar_lea.vmem %s0, %s221
      %p223 = pneg %p38
      %p224 = pneg %p35
      %p225 = pneg %p59
      %p226 = pneg %p56
      %p227 = pneg %p80
      %p228 = pneg %p77
      %p229 = pneg %p101
      %p230 = pneg %p98
      %p231 = pneg %p122
      %p232 = pneg %p119
      %p233 = pneg %p143
      %p234 = pneg %p140
      %p235 = pneg %p169
      %p236 = pneg %p166
      %p237 = scmp.lt.s32.totalorder %s17, 1
      %s238 = scalar_select %p237, %s17, 1
      %s239 = smul.addr %s238, 32
      %s240 = smul.addr %s239, 8
      %s241 = scalar_lea.vmem %s6, %s240
      %p242 = scmp.lt.s32.totalorder %s17, 1
      %s243 = scalar_select %p242, %s17, 1
      %s244 = smul.addr %s243, 54
      %s245 = smul.addr %s244, 4
      %s246 = scalar_lea.vmem %s0, %s245
      %p247 = scmp.lt.s32.totalorder %s17, 1
      %s248 = scalar_select %p247, %s17, 1
      %s249 = smul.addr %s248, 32
      %s250 = smul.addr %s249, 8
      %s251 = scalar_lea.vmem %s6, %s250
      %v253 = vlaneseq
      %v254 = vand.u32 %v253, 127
      %v255 = vld [vmem:[%s246] sm:$0xf]
      %v256 = vld [vmem:[%s246 + $0x4] sm:$0xf]
      %v257 = vld [vmem:[%s246 + $0x8] sm:$0x1]
      %v258 = vld [vmem:[%s246 + $0xc] sm:$0xf]
      %v259 = vld [vmem:[%s246 + $0x10] sm:$0xf]
      %v260 = vld [vmem:[%s246 + $0x14] sm:$0x1]
      %v261 = vld [vmem:[%s246 + $0x18] sm:$0xf]
      %v262 = vld [vmem:[%s246 + $0x1c] sm:$0xf]
      %v263 = vld [vmem:[%s246 + $0x20] sm:$0x1]
      %v264 = vld [vmem:[%s246 + $0x24] sm:$0xf]
      %v265 = vld [vmem:[%s246 + $0x28] sm:$0xf]
      %v266 = vld [vmem:[%s246 + $0x2c] sm:$0x1]
      %v267 = vld [vmem:[%s246 + $0x30] sm:$0xf]
      %v268 = vld [vmem:[%s246 + $0x34] sm:$0xf]
      %v269 = vld [vmem:[%s246 + $0x38] sm:$0x1]
      %v270 = vld [vmem:[%s246 + $0x3c] sm:$0xf]
      %v271 = vld [vmem:[%s246 + $0x40] sm:$0xf]
      %v272 = vld [vmem:[%s246 + $0x44] sm:$0x1]
      %v273 = vld [vmem:[%s246 + $0x48] sm:$0xf]
      %v274 = vld [vmem:[%s246 + $0x4c] sm:$0xf]
      %v275 = vld [vmem:[%s246 + $0x50] sm:$0x1]
      %v276 = vld [vmem:[%s246 + $0x54] sm:$0xf]
      %v277 = vld [vmem:[%s246 + $0x58] sm:$0xf]
      %v278 = vld [vmem:[%s246 + $0x5c] sm:$0x1]
      %v279 = vld [vmem:[%s246 + $0x60] sm:$0xf]
      %v280 = vld [vmem:[%s246 + $0x64] sm:$0xf]
      %v281 = vld [vmem:[%s246 + $0x68] sm:$0x1]
      %v282 = vld [vmem:[%s246 + $0x6c] sm:$0xf]
      %v283 = vld [vmem:[%s246 + $0x70] sm:$0xf]
      %v284 = vld [vmem:[%s246 + $0x74] sm:$0x1]
      %v285 = vld [vmem:[%s246 + $0x78] sm:$0xf]
      %v286 = vld [vmem:[%s246 + $0x7c] sm:$0xf]
      %v287 = vld [vmem:[%s246 + $0x80] sm:$0x1]
      %v288 = vld [vmem:[%s246 + $0x84] sm:$0xf]
      %v289 = vld [vmem:[%s246 + $0x88] sm:$0xf]
      %v290 = vld [vmem:[%s246 + $0x8c] sm:$0x1]
      %v291 = vld [vmem:[%s246 + $0x90] sm:$0xf]
      %v292 = vld [vmem:[%s246 + $0x94] sm:$0xf]
      %v293 = vld [vmem:[%s246 + $0x98] sm:$0x1]
      %v294 = vld [vmem:[%s246 + $0x9c] sm:$0xf]
      %v295 = vld [vmem:[%s246 + $0xa0] sm:$0xf]
      %v296 = vld [vmem:[%s246 + $0xa4] sm:$0x1]
      %v297 = vld [vmem:[%s246 + $0xa8] sm:$0xf]
      %v298 = vld [vmem:[%s246 + $0xac] sm:$0xf]
      %v299 = vld [vmem:[%s246 + $0xb0] sm:$0x1]
      %v300 = vld [vmem:[%s246 + $0xb4] sm:$0xf]
      %v301 = vld [vmem:[%s246 + $0xb8] sm:$0xf]
      %v302 = vld [vmem:[%s246 + $0xbc] sm:$0x1]
      %v303 = vld [vmem:[%s246 + $0xc0] sm:$0xf]
      %v304 = vld [vmem:[%s246 + $0xc4] sm:$0xf]
      %v305 = vld [vmem:[%s246 + $0xc8] sm:$0x1]
      %v306 = vld [vmem:[%s246 + $0xcc] sm:$0xf]
      %v307 = vld [vmem:[%s246 + $0xd0] sm:$0xf]
      %v308 = vld [vmem:[%s246 + $0xd4] sm:$0x1]
      %v309 = vunpack.c.l.bf16 %v255
      %v310 = vunpack.c.l.bf16 %v256
      %v311 = vunpack.c.l.bf16 %v257
      %v312 = vunpack.c.l.bf16 %v258
      %v313 = vunpack.c.l.bf16 %v259
      %v314 = vunpack.c.l.bf16 %v260
      %v315 = vunpack.c.l.bf16 %v261
      %v316 = vunpack.c.l.bf16 %v262
      %v317 = vunpack.c.l.bf16 %v263
      %v318 = vunpack.c.l.bf16 %v264
      %v319 = vunpack.c.l.bf16 %v265
      %v320 = vunpack.c.l.bf16 %v266
      %v321 = vunpack.c.l.bf16 %v267
      %v322 = vunpack.c.l.bf16 %v268
      %v323 = vunpack.c.l.bf16 %v269
      %v324 = vunpack.c.l.bf16 %v270
      %v325 = vunpack.c.l.bf16 %v271
      %v326 = vunpack.c.l.bf16 %v272
      %v327 = vunpack.c.l.bf16 %v273
      %v328 = vunpack.c.l.bf16 %v274
      %v329 = vunpack.c.l.bf16 %v275
      %v330 = vunpack.c.l.bf16 %v276
      %v331 = vunpack.c.l.bf16 %v277
      %v332 = vunpack.c.l.bf16 %v278
      %v333 = vunpack.c.l.bf16 %v279
      %v334 = vunpack.c.l.bf16 %v280
      %v335 = vunpack.c.l.bf16 %v281
      %v336 = vunpack.c.l.bf16 %v282
      %v337 = vunpack.c.l.bf16 %v283
      %v338 = vunpack.c.l.bf16 %v284
      %v339 = vunpack.c.l.bf16 %v285
      %v340 = vunpack.c.l.bf16 %v286
      %v341 = vunpack.c.l.bf16 %v287
      %v342 = vunpack.c.l.bf16 %v288
      %v343 = vunpack.c.l.bf16 %v289
      %v344 = vunpack.c.l.bf16 %v290
      %v345 = vunpack.c.l.bf16 %v291
      %v346 = vunpack.c.l.bf16 %v292
      %v347 = vunpack.c.l.bf16 %v293
      %v348 = vunpack.c.l.bf16 %v294
      %v349 = vunpack.c.l.bf16 %v295
      %v350 = vunpack.c.l.bf16 %v296
      %v351 = vunpack.c.l.bf16 %v297
      %v352 = vunpack.c.l.bf16 %v298
      %v353 = vunpack.c.l.bf16 %v299
      %v354 = vunpack.c.l.bf16 %v300
      %v355 = vunpack.c.l.bf16 %v301
      %v356 = vunpack.c.l.bf16 %v302
      %v357 = vunpack.c.l.bf16 %v303
      %v358 = vunpack.c.l.bf16 %v304
      %v359 = vunpack.c.l.bf16 %v305
      %v360 = vunpack.c.l.bf16 %v306
      %v361 = vunpack.c.l.bf16 %v307
      %v362 = vunpack.c.l.bf16 %v308
      %v363 = vmax.f32 %v309, 0.0
      %v364 = vmax.f32 %v310, 0.0
      %v365 = vmax.f32 %v311, 0.0
      %v366 = vmax.f32 %v312, 0.0
      %v367 = vmax.f32 %v313, 0.0
      %v368 = vmax.f32 %v314, 0.0
      %v369 = vmax.f32 %v315, 0.0
      %v370 = vmax.f32 %v316, 0.0
      %v371 = vmax.f32 %v317, 0.0
      %v372 = vmax.f32 %v318, 0.0
      %v373 = vmax.f32 %v319, 0.0
      %v374 = vmax.f32 %v320, 0.0
      %v375 = vmax.f32 %v321, 0.0
      %v376 = vmax.f32 %v322, 0.0
      %v377 = vmax.f32 %v323, 0.0
      %v378 = vmax.f32 %v324, 0.0
      %v379 = vmax.f32 %v325, 0.0
      %v380 = vmax.f32 %v326, 0.0
      %v381 = vmax.f32 %v327, 0.0
      %v382 = vmax.f32 %v328, 0.0
      %v383 = vmax.f32 %v329, 0.0
      %v384 = vmax.f32 %v330, 0.0
      %v385 = vmax.f32 %v331, 0.0
      %v386 = vmax.f32 %v332, 0.0
      %v387 = vmax.f32 %v333, 0.0
      %v388 = vmax.f32 %v334, 0.0
      %v389 = vmax.f32 %v335, 0.0
      %v390 = vmax.f32 %v336, 0.0
      %v391 = vmax.f32 %v337, 0.0
      %v392 = vmax.f32 %v338, 0.0
      %v393 = vmax.f32 %v339, 0.0
      %v394 = vmax.f32 %v340, 0.0
      %v395 = vmax.f32 %v341, 0.0
      %v396 = vmax.f32 %v342, 0.0
      %v397 = vmax.f32 %v343, 0.0
      %v398 = vmax.f32 %v344, 0.0
      %v399 = vmax.f32 %v345, 0.0
      %v400 = vmax.f32 %v346, 0.0
      %v401 = vmax.f32 %v347, 0.0
      %v402 = vmax.f32 %v348, 0.0
      %v403 = vmax.f32 %v349, 0.0
      %v404 = vmax.f32 %v350, 0.0
      %v405 = vmax.f32 %v351, 0.0
      %v406 = vmax.f32 %v352, 0.0
      %v407 = vmax.f32 %v353, 0.0
      %v408 = vmax.f32 %v354, 0.0
      %v409 = vmax.f32 %v355, 0.0
      %v410 = vmax.f32 %v356, 0.0
      %v411 = vmax.f32 %v357, 0.0
      %v412 = vmax.f32 %v358, 0.0
      %v413 = vmax.f32 %v359, 0.0
      %v414 = vmax.f32 %v360, 0.0
      %v415 = vmax.f32 %v361, 0.0
      %v416 = vmax.f32 %v362, 0.0
      %v417 = vpack.c.bf16 %v363, %v363
      %v418 = vpack.c.bf16 %v364, %v364
      %v419 = vpack.c.bf16 %v365, %v365
      %v420 = vpack.c.bf16 %v366, %v366
      %v421 = vpack.c.bf16 %v367, %v367
      %v422 = vpack.c.bf16 %v368, %v368
      %v423 = vpack.c.bf16 %v369, %v369
      %v424 = vpack.c.bf16 %v370, %v370
      %v425 = vpack.c.bf16 %v371, %v371
      %v426 = vpack.c.bf16 %v372, %v372
      %v427 = vpack.c.bf16 %v373, %v373
      %v428 = vpack.c.bf16 %v374, %v374
      %v429 = vpack.c.bf16 %v375, %v375
      %v430 = vpack.c.bf16 %v376, %v376
      %v431 = vpack.c.bf16 %v377, %v377
      %v432 = vpack.c.bf16 %v378, %v378
      %v433 = vpack.c.bf16 %v379, %v379
      %v434 = vpack.c.bf16 %v380, %v380
      %v435 = vpack.c.bf16 %v381, %v381
      %v436 = vpack.c.bf16 %v382, %v382
      %v437 = vpack.c.bf16 %v383, %v383
      %v438 = vpack.c.bf16 %v384, %v384
      %v439 = vpack.c.bf16 %v385, %v385
      %v440 = vpack.c.bf16 %v386, %v386
      %v441 = vpack.c.bf16 %v387, %v387
      %v442 = vpack.c.bf16 %v388, %v388
      %v443 = vpack.c.bf16 %v389, %v389
      %v444 = vpack.c.bf16 %v390, %v390
      %v445 = vpack.c.bf16 %v391, %v391
      %v446 = vpack.c.bf16 %v392, %v392
      %v447 = vpack.c.bf16 %v393, %v393
      %v448 = vpack.c.bf16 %v394, %v394
      %v449 = vpack.c.bf16 %v395, %v395
      %v450 = vpack.c.bf16 %v396, %v396
      %v451 = vpack.c.bf16 %v397, %v397
      %v452 = vpack.c.bf16 %v398, %v398
      %v453 = vpack.c.bf16 %v399, %v399
      %v454 = vpack.c.bf16 %v400, %v400
      %v455 = vpack.c.bf16 %v401, %v401
      %v456 = vpack.c.bf16 %v402, %v402
      %v457 = vpack.c.bf16 %v403, %v403
      %v458 = vpack.c.bf16 %v404, %v404
      %v459 = vpack.c.bf16 %v405, %v405
      %v460 = vpack.c.bf16 %v406, %v406
      %v461 = vpack.c.bf16 %v407, %v407
      %v462 = vpack.c.bf16 %v408, %v408
      %v463 = vpack.c.bf16 %v409, %v409
      %v464 = vpack.c.bf16 %v410, %v410
      %v465 = vpack.c.bf16 %v411, %v411
      %v466 = vpack.c.bf16 %v412, %v412
      %v467 = vpack.c.bf16 %v413, %v413
      %v468 = vpack.c.bf16 %v414, %v414
      %v469 = vpack.c.bf16 %v415, %v415
      %v470 = vpack.c.bf16 %v416, %v416
      %471 = vst [vmem:[#allocation2] sm:$0xf] %v417
      %472 = vst [vmem:[#allocation2 + $0x4] sm:$0xf] %v418
      %473 = vst [vmem:[#allocation2 + $0x8] sm:$0x1] %v419
      %474 = vst [vmem:[#allocation2 + $0xc] sm:$0xf] %v420
      %475 = vst [vmem:[#allocation2 + $0x10] sm:$0xf] %v421
      %476 = vst [vmem:[#allocation2 + $0x14] sm:$0x1] %v422
      %477 = vst [vmem:[#allocation2 + $0x18] sm:$0xf] %v423
      %478 = vst [vmem:[#allocation2 + $0x1c] sm:$0xf] %v424
      %479 = vst [vmem:[#allocation2 + $0x20] sm:$0x1] %v425
      %480 = vst [vmem:[#allocation2 + $0x24] sm:$0xf] %v426
      %481 = vst [vmem:[#allocation2 + $0x28] sm:$0xf] %v427
      %482 = vst [vmem:[#allocation2 + $0x2c] sm:$0x1] %v428
      %483 = vst [vmem:[#allocation2 + $0x30] sm:$0xf] %v429
      %484 = vst [vmem:[#allocation2 + $0x34] sm:$0xf] %v430
      %485 = vst [vmem:[#allocation2 + $0x38] sm:$0x1] %v431
      %486 = vst [vmem:[#allocation2 + $0x3c] sm:$0xf] %v432
      %487 = vst [vmem:[#allocation2 + $0x40] sm:$0xf] %v433
      %488 = vst [vmem:[#allocation2 + $0x44] sm:$0x1] %v434
      %489 = vst [vmem:[#allocation2 + $0x48] sm:$0xf] %v435
      %490 = vst [vmem:[#allocation2 + $0x4c] sm:$0xf] %v436
      %491 = vst [vmem:[#allocation2 + $0x50] sm:$0x1] %v437
      %492 = vst [vmem:[#allocation2 + $0x54] sm:$0xf] %v438
      %493 = vst [vmem:[#allocation2 + $0x58] sm:$0xf] %v439
      %494 = vst [vmem:[#allocation2 + $0x5c] sm:$0x1] %v440
      %495 = vst [vmem:[#allocation2 + $0x60] sm:$0xf] %v441
      %496 = vst [vmem:[#allocation2 + $0x64] sm:$0xf] %v442
      %497 = vst [vmem:[#allocation2 + $0x68] sm:$0x1] %v443
      %498 = vst [vmem:[#allocation2 + $0x6c] sm:$0xf] %v444
      %499 = vst [vmem:[#allocation2 + $0x70] sm:$0xf] %v445
      %500 = vst [vmem:[#allocation2 + $0x74] sm:$0x1] %v446
      %501 = vst [vmem:[#allocation2 + $0x78] sm:$0xf] %v447
      %502 = vst [vmem:[#allocation2 + $0x7c] sm:$0xf] %v448
      %503 = vst [vmem:[#allocation2 + $0x80] sm:$0x1] %v449
      %504 = vst [vmem:[#allocation2 + $0x84] sm:$0xf] %v450
      %505 = vst [vmem:[#allocation2 + $0x88] sm:$0xf] %v451
      %506 = vst [vmem:[#allocation2 + $0x8c] sm:$0x1] %v452
      %507 = vst [vmem:[#allocation2 + $0x90] sm:$0xf] %v453
      %508 = vst [vmem:[#allocation2 + $0x94] sm:$0xf] %v454
      %509 = vst [vmem:[#allocation2 + $0x98] sm:$0x1] %v455
      %510 = vst [vmem:[#allocation2 + $0x9c] sm:$0xf] %v456
      %511 = vst [vmem:[#allocation2 + $0xa0] sm:$0xf] %v457
      %512 = vst [vmem:[#allocation2 + $0xa4] sm:$0x1] %v458
      %513 = vst [vmem:[#allocation2 + $0xa8] sm:$0xf] %v459
      %514 = vst [vmem:[#allocation2 + $0xac] sm:$0xf] %v460
      %515 = vst [vmem:[#allocation2 + $0xb0] sm:$0x1] %v461
      %516 = vst [vmem:[#allocation2 + $0xb4] sm:$0xf] %v462
      %517 = vst [vmem:[#allocation2 + $0xb8] sm:$0xf] %v463
      %518 = vst [vmem:[#allocation2 + $0xbc] sm:$0x1] %v464
      %519 = vst [vmem:[#allocation2 + $0xc0] sm:$0xf] %v465
      %520 = vst [vmem:[#allocation2 + $0xc4] sm:$0xf] %v466
      %521 = vst [vmem:[#allocation2 + $0xc8] sm:$0x1] %v467
      %522 = vst [vmem:[#allocation2 + $0xcc] sm:$0xf] %v468
      %523 = vst [vmem:[#allocation2 + $0xd0] sm:$0xf] %v469
      %524 = vst [vmem:[#allocation2 + $0xd4] sm:$0x1] %v470
      %v525 = vld [vmem:[#allocation2] sm:$0xf]
      %v526 = vld [vmem:[#allocation2 + $0x4] sm:$0xf]
      %v527 = vld [vmem:[#allocation2 + $0xc] sm:$0xf]
      %v528 = vld [vmem:[#allocation2 + $0x10] sm:$0xf]
      %v529 = vld [vmem:[#allocation2 + $0x18] sm:$0xf]
      %v530 = vld [vmem:[#allocation2 + $0x1c] sm:$0xf]
      %v531 = vld [vmem:[#allocation2 + $0x24] sm:$0xf]
      %v532 = vld [vmem:[#allocation2 + $0x28] sm:$0xf]
      %v533 = vld [vmem:[#allocation2 + $0x30] sm:$0xf]
      %v534 = vld [vmem:[#allocation2 + $0x34] sm:$0xf]
      %v535 = vld [vmem:[#allocation2 + $0x3c] sm:$0xf]
      %v536 = vld [vmem:[#allocation2 + $0x40] sm:$0xf]
      %v537 = vld [vmem:[#allocation2 + $0x48] sm:$0xf]
      %v538 = vld [vmem:[#allocation2 + $0x4c] sm:$0xf]
      %v539 = vld [vmem:[#allocation2 + $0x54] sm:$0xf]
      %v540 = vld [vmem:[#allocation2 + $0x58] sm:$0xf]
      %v541 = vld [vmem:[#allocation2 + $0x60] sm:$0xf]
      %v542 = vld [vmem:[#allocation2 + $0x64] sm:$0xf]
      %v543 = vld [vmem:[#allocation2 + $0x6c] sm:$0xf]
      %v544 = vld [vmem:[#allocation2 + $0x70] sm:$0xf]
      %v545 = vld [vmem:[#allocation2 + $0x78] sm:$0xf]
      %v546 = vld [vmem:[#allocation2 + $0x7c] sm:$0xf]
      %v547 = vld [vmem:[#allocation2 + $0x84] sm:$0xf]
      %v548 = vld [vmem:[#allocation2 + $0x88] sm:$0xf]
      %v549 = vld [vmem:[#allocation2 + $0x90] sm:$0xf]
      %v550 = vld [vmem:[#allocation2 + $0x94] sm:$0xf]
      %v551 = vld [vmem:[#allocation2 + $0x9c] sm:$0xf]
      %v552 = vld [vmem:[#allocation2 + $0xa0] sm:$0xf]
      %v553 = vld [vmem:[#allocation2 + $0xa8] sm:$0xf]
      %v554 = vld [vmem:[#allocation2 + $0xac] sm:$0xf]
      %v555 = vld [vmem:[#allocation2 + $0xb4] sm:$0xf]
      %v556 = vld [vmem:[#allocation2 + $0xb8] sm:$0xf]
      %vm557 = vcmp.ge.s32.totalorder %v254, 0
      %vm558 = vcmp.lt.s32.totalorder %v254, 4
      %vm559 = vmand %vm557, %vm558
      %v560 = vsel %vm559, 1, 0
      %vm561 = vcmp.eq.s32.totalorder %v560, 1
      %vm562 = vmpackc.low %vm561, %vm561
      %v563 = vsel %vm562, %v525, 0
      %v564 = vsel %vm562, %v526, 0
      %v565 = vsel %vm562, %v527, 0
      %v566 = vsel %vm562, %v528, 0
      %v567 = vsel %vm562, %v529, 0
      %v568 = vsel %vm562, %v530, 0
      %v569 = vsel %vm562, %v531, 0
      %v570 = vsel %vm562, %v532, 0
      %v571 = vsel %vm562, %v533, 0
      %v572 = vsel %vm562, %v534, 0
      %v573 = vsel %vm562, %v535, 0
      %v574 = vsel %vm562, %v536, 0
      %v575 = vsel %vm562, %v537, 0
      %v576 = vsel %vm562, %v538, 0
      %v577 = vsel %vm562, %v539, 0
      %v578 = vsel %vm562, %v540, 0
      %v579 = vsel %vm562, %v541, 0
      %v580 = vsel %vm562, %v542, 0
      %v581 = vsel %vm562, %v543, 0
      %v582 = vsel %vm562, %v544, 0
      %v583 = vsel %vm562, %v545, 0
      %v584 = vsel %vm562, %v546, 0
      %v585 = vsel %vm562, %v547, 0
      %v586 = vsel %vm562, %v548, 0
      %v587 = vsel %vm562, %v549, 0
      %v588 = vsel %vm562, %v550, 0
      %v589 = vsel %vm562, %v551, 0
      %v590 = vsel %vm562, %v552, 0
      %v591 = vsel %vm562, %v553, 0
      %v592 = vsel %vm562, %v554, 0
      %v593 = vsel %vm562, %v555, 0
      %v594 = vsel %vm562, %v556, 0
      %v595 = vld [vmem:[#allocation2 + $0x8] sm:$0x1]
      %v596 = vld [vmem:[#allocation2 + $0x14] sm:$0x1]
      %v597 = vld [vmem:[#allocation2 + $0x20] sm:$0x1]
      %v598 = vld [vmem:[#allocation2 + $0x2c] sm:$0x1]
      %v599 = vld [vmem:[#allocation2 + $0x38] sm:$0x1]
      %v600 = vld [vmem:[#allocation2 + $0x44] sm:$0x1]
      %v601 = vld [vmem:[#allocation2 + $0x50] sm:$0x1]
      %v602 = vld [vmem:[#allocation2 + $0x5c] sm:$0x1]
      %v603 = vld [vmem:[#allocation2 + $0x68] sm:$0x1]
      %v604 = vld [vmem:[#allocation2 + $0x74] sm:$0x1]
      %v605 = vld [vmem:[#allocation2 + $0x80] sm:$0x1]
      %v606 = vld [vmem:[#allocation2 + $0x8c] sm:$0x1]
      %v607 = vld [vmem:[#allocation2 + $0x98] sm:$0x1]
      %v608 = vld [vmem:[#allocation2 + $0xa4] sm:$0x1]
      %v609 = vld [vmem:[#allocation2 + $0xb0] sm:$0x1]
      %v610 = vld [vmem:[#allocation2 + $0xbc] sm:$0x1]
      %vm611 = vsmask.f32 3328
      %vm612 = vsmask.f32 7440
      %vm613 = vmor %vm611, %vm612
      %v615 = vshrl.u32 %v525, 16
      %v617 = vrot.slane %v615, 4
      %v618 = vshll.u32 %v525, 16
      %v620 = vrot.slane %v618, 5
      %v621 = vor.u32 %v617, %v620
      %v622 = vrot.slane %v621, 4
      %v624 = vshll.u32 %v526, 16
      %v626 = vrot.slane %v624, 5
      %v627 = vsel %vm613, %v622, %v626
      %v628 = vshrl.u32 %v526, 16
      %v630 = vrot.slane %v628, 4
      %v631 = vor.u32 %v630, %v626
      %v632 = vrot.slane %v631, 4
      %v634 = vshll.u32 %v595, 16
      %v636 = vrot.slane %v634, 5
      %v637 = vsel %vm613, %v632, %v636
      %v639 = vshrl.u32 %v527, 16
      %v641 = vrot.slane %v639, 4
      %v642 = vshll.u32 %v527, 16
      %v644 = vrot.slane %v642, 5
      %v645 = vor.u32 %v641, %v644
      %v646 = vrot.slane %v645, 4
      %v648 = vshll.u32 %v528, 16
      %v650 = vrot.slane %v648, 5
      %v651 = vsel %vm613, %v646, %v650
      %v652 = vshrl.u32 %v528, 16
      %v654 = vrot.slane %v652, 4
      %v655 = vor.u32 %v654, %v650
      %v656 = vrot.slane %v655, 4
      %v658 = vshll.u32 %v596, 16
      %v660 = vrot.slane %v658, 5
      %v661 = vsel %vm613, %v656, %v660
      %v663 = vshrl.u32 %v529, 16
      %v665 = vrot.slane %v663, 4
      %v666 = vshll.u32 %v529, 16
      %v668 = vrot.slane %v666, 5
      %v669 = vor.u32 %v665, %v668
      %v670 = vrot.slane %v669, 4
      %v672 = vshll.u32 %v530, 16
      %v674 = vrot.slane %v672, 5
      %v675 = vsel %vm613, %v670, %v674
      %v676 = vshrl.u32 %v530, 16
      %v678 = vrot.slane %v676, 4
      %v679 = vor.u32 %v678, %v674
      %v680 = vrot.slane %v679, 4
      %v682 = vshll.u32 %v597, 16
      %v684 = vrot.slane %v682, 5
      %v685 = vsel %vm613, %v680, %v684
      %v687 = vshrl.u32 %v531, 16
      %v689 = vrot.slane %v687, 4
      %v690 = vshll.u32 %v531, 16
      %v692 = vrot.slane %v690, 5
      %v693 = vor.u32 %v689, %v692
      %v694 = vrot.slane %v693, 4
      %v696 = vshll.u32 %v532, 16
      %v698 = vrot.slane %v696, 5
      %v699 = vsel %vm613, %v694, %v698
      %v700 = vshrl.u32 %v532, 16
      %v702 = vrot.slane %v700, 4
      %v703 = vor.u32 %v702, %v698
      %v704 = vrot.slane %v703, 4
      %v706 = vshll.u32 %v598, 16
      %v708 = vrot.slane %v706, 5
      %v709 = vsel %vm613, %v704, %v708
      %v711 = vshrl.u32 %v533, 16
      %v713 = vrot.slane %v711, 4
      %v714 = vshll.u32 %v533, 16
      %v716 = vrot.slane %v714, 5
      %v717 = vor.u32 %v713, %v716
      %v718 = vrot.slane %v717, 4
      %v720 = vshll.u32 %v534, 16
      %v722 = vrot.slane %v720, 5
      %v723 = vsel %vm613, %v718, %v722
      %v724 = vshrl.u32 %v534, 16
      %v726 = vrot.slane %v724, 4
      %v727 = vor.u32 %v726, %v722
      %v728 = vrot.slane %v727, 4
      %v730 = vshll.u32 %v599, 16
      %v732 = vrot.slane %v730, 5
      %v733 = vsel %vm613, %v728, %v732
      %v735 = vshrl.u32 %v535, 16
      %v737 = vrot.slane %v735, 4
      %v738 = vshll.u32 %v535, 16
      %v740 = vrot.slane %v738, 5
      %v741 = vor.u32 %v737, %v740
      %v742 = vrot.slane %v741, 4
      %v744 = vshll.u32 %v536, 16
      %v746 = vrot.slane %v744, 5
      %v747 = vsel %vm613, %v742, %v746
      %v748 = vshrl.u32 %v536, 16
      %v750 = vrot.slane %v748, 4
      %v751 = vor.u32 %v750, %v746
      %v752 = vrot.slane %v751, 4
      %v754 = vshll.u32 %v600, 16
      %v756 = vrot.slane %v754, 5
      %v757 = vsel %vm613, %v752, %v756
      %v759 = vshrl.u32 %v537, 16
      %v761 = vrot.slane %v759, 4
      %v762 = vshll.u32 %v537, 16
      %v764 = vrot.slane %v762, 5
      %v765 = vor.u32 %v761, %v764
      %v766 = vrot.slane %v765, 4
      %v768 = vshll.u32 %v538, 16
      %v770 = vrot.slane %v768, 5
      %v771 = vsel %vm613, %v766, %v770
      %v772 = vshrl.u32 %v538, 16
      %v774 = vrot.slane %v772, 4
      %v775 = vor.u32 %v774, %v770
      %v776 = vrot.slane %v775, 4
      %v778 = vshll.u32 %v601, 16
      %v780 = vrot.slane %v778, 5
      %v781 = vsel %vm613, %v776, %v780
      %v783 = vshrl.u32 %v539, 16
      %v785 = vrot.slane %v783, 4
      %v786 = vshll.u32 %v539, 16
      %v788 = vrot.slane %v786, 5
      %v789 = vor.u32 %v785, %v788
      %v790 = vrot.slane %v789, 4
      %v792 = vshll.u32 %v540, 16
      %v794 = vrot.slane %v792, 5
      %v795 = vsel %vm613, %v790, %v794
      %v796 = vshrl.u32 %v540, 16
      %v798 = vrot.slane %v796, 4
      %v799 = vor.u32 %v798, %v794
      %v800 = vrot.slane %v799, 4
      %v802 = vshll.u32 %v602, 16
      %v804 = vrot.slane %v802, 5
      %v805 = vsel %vm613, %v800, %v804
      %v807 = vshrl.u32 %v541, 16
      %v809 = vrot.slane %v807, 4
      %v810 = vshll.u32 %v541, 16
      %v812 = vrot.slane %v810, 5
      %v813 = vor.u32 %v809, %v812
      %v814 = vrot.slane %v813, 4
      %v816 = vshll.u32 %v542, 16
      %v818 = vrot.slane %v816, 5
      %v819 = vsel %vm613, %v814, %v818
      %v820 = vshrl.u32 %v542, 16
      %v822 = vrot.slane %v820, 4
      %v823 = vor.u32 %v822, %v818
      %v824 = vrot.slane %v823, 4
      %v826 = vshll.u32 %v603, 16
      %v828 = vrot.slane %v826, 5
      %v829 = vsel %vm613, %v824, %v828
      %v831 = vshrl.u32 %v543, 16
      %v833 = vrot.slane %v831, 4
      %v834 = vshll.u32 %v543, 16
      %v836 = vrot.slane %v834, 5
      %v837 = vor.u32 %v833, %v836
      %v838 = vrot.slane %v837, 4
      %v840 = vshll.u32 %v544, 16
      %v842 = vrot.slane %v840, 5
      %v843 = vsel %vm613, %v838, %v842
      %v844 = vshrl.u32 %v544, 16
      %v846 = vrot.slane %v844, 4
      %v847 = vor.u32 %v846, %v842
      %v848 = vrot.slane %v847, 4
      %v850 = vshll.u32 %v604, 16
      %v852 = vrot.slane %v850, 5
      %v853 = vsel %vm613, %v848, %v852
      %v855 = vshrl.u32 %v545, 16
      %v857 = vrot.slane %v855, 4
      %v858 = vshll.u32 %v545, 16
      %v860 = vrot.slane %v858, 5
      %v861 = vor.u32 %v857, %v860
      %v862 = vrot.slane %v861, 4
      %v864 = vshll.u32 %v546, 16
      %v866 = vrot.slane %v864, 5
      %v867 = vsel %vm613, %v862, %v866
      %v868 = vshrl.u32 %v546, 16
      %v870 = vrot.slane %v868, 4
      %v871 = vor.u32 %v870, %v866
      %v872 = vrot.slane %v871, 4
      %v874 = vshll.u32 %v605, 16
      %v876 = vrot.slane %v874, 5
      %v877 = vsel %vm613, %v872, %v876
      %v879 = vshrl.u32 %v547, 16
      %v881 = vrot.slane %v879, 4
      %v882 = vshll.u32 %v547, 16
      %v884 = vrot.slane %v882, 5
      %v885 = vor.u32 %v881, %v884
      %v886 = vrot.slane %v885, 4
      %v888 = vshll.u32 %v548, 16
      %v890 = vrot.slane %v888, 5
      %v891 = vsel %vm613, %v886, %v890
      %v892 = vshrl.u32 %v548, 16
      %v894 = vrot.slane %v892, 4
      %v895 = vor.u32 %v894, %v890
      %v896 = vrot.slane %v895, 4
      %v898 = vshll.u32 %v606, 16
      %v900 = vrot.slane %v898, 5
      %v901 = vsel %vm613, %v896, %v900
      %v903 = vshrl.u32 %v549, 16
      %v905 = vrot.slane %v903, 4
      %v906 = vshll.u32 %v549, 16
      %v908 = vrot.slane %v906, 5
      %v909 = vor.u32 %v905, %v908
      %v910 = vrot.slane %v909, 4
      %v912 = vshll.u32 %v550, 16
      %v914 = vrot.slane %v912, 5
      %v915 = vsel %vm613, %v910, %v914
      %v916 = vshrl.u32 %v550, 16
      %v918 = vrot.slane %v916, 4
      %v919 = vor.u32 %v918, %v914
      %v920 = vrot.slane %v919, 4
      %v922 = vshll.u32 %v607, 16
      %v924 = vrot.slane %v922, 5
      %v925 = vsel %vm613, %v920, %v924
      %v927 = vshrl.u32 %v551, 16
      %v929 = vrot.slane %v927, 4
      %v930 = vshll.u32 %v551, 16
      %v932 = vrot.slane %v930, 5
      %v933 = vor.u32 %v929, %v932
      %v934 = vrot.slane %v933, 4
      %v936 = vshll.u32 %v552, 16
      %v938 = vrot.slane %v936, 5
      %v939 = vsel %vm613, %v934, %v938
      %v940 = vshrl.u32 %v552, 16
      %v942 = vrot.slane %v940, 4
      %v943 = vor.u32 %v942, %v938
      %v944 = vrot.slane %v943, 4
      %v946 = vshll.u32 %v608, 16
      %v948 = vrot.slane %v946, 5
      %v949 = vsel %vm613, %v944, %v948
      %v951 = vshrl.u32 %v553, 16
      %v953 = vrot.slane %v951, 4
      %v954 = vshll.u32 %v553, 16
      %v956 = vrot.slane %v954, 5
      %v957 = vor.u32 %v953, %v956
      %v958 = vrot.slane %v957, 4
      %v960 = vshll.u32 %v554, 16
      %v962 = vrot.slane %v960, 5
      %v963 = vsel %vm613, %v958, %v962
      %v964 = vshrl.u32 %v554, 16
      %v966 = vrot.slane %v964, 4
      %v967 = vor.u32 %v966, %v962
      %v968 = vrot.slane %v967, 4
      %v970 = vshll.u32 %v609, 16
      %v972 = vrot.slane %v970, 5
      %v973 = vsel %vm613, %v968, %v972
      %v975 = vshrl.u32 %v555, 16
      %v977 = vrot.slane %v975, 4
      %v978 = vshll.u32 %v555, 16
      %v980 = vrot.slane %v978, 5
      %v981 = vor.u32 %v977, %v980
      %v982 = vrot.slane %v981, 4
      %v984 = vshll.u32 %v556, 16
      %v986 = vrot.slane %v984, 5
      %v987 = vsel %vm613, %v982, %v986
      %v988 = vshrl.u32 %v556, 16
      %v990 = vrot.slane %v988, 4
      %v991 = vor.u32 %v990, %v986
      %v992 = vrot.slane %v991, 4
      %v994 = vshll.u32 %v610, 16
      %v996 = vrot.slane %v994, 5
      %v997 = vsel %vm613, %v992, %v996
      %vm1030 = vcmp.ge.s32.totalorder %v254, 4
      %vm1031 = vcmp.lt.s32.totalorder %v254, 8
      %vm1032 = vmand %vm1030, %vm1031
      %v1033 = vsel %vm1032, 1, 0
      %vm1034 = vcmp.eq.s32.totalorder %v1033, 1
      %vm1035 = vmpackc.low %vm1034, %vm1034
      %v1036 = vsel %vm1035, %v627, %v563
      %v1037 = vsel %vm1035, %v637, %v564
      %v1038 = vsel %vm1035, %v651, %v565
      %v1039 = vsel %vm1035, %v661, %v566
      %v1040 = vsel %vm1035, %v675, %v567
      %v1041 = vsel %vm1035, %v685, %v568
      %v1042 = vsel %vm1035, %v699, %v569
      %v1043 = vsel %vm1035, %v709, %v570
      %v1044 = vsel %vm1035, %v723, %v571
      %v1045 = vsel %vm1035, %v733, %v572
      %v1046 = vsel %vm1035, %v747, %v573
      %v1047 = vsel %vm1035, %v757, %v574
      %v1048 = vsel %vm1035, %v771, %v575
      %v1049 = vsel %vm1035, %v781, %v576
      %v1050 = vsel %vm1035, %v795, %v577
      %v1051 = vsel %vm1035, %v805, %v578
      %v1052 = vsel %vm1035, %v819, %v579
      %v1053 = vsel %vm1035, %v829, %v580
      %v1054 = vsel %vm1035, %v843, %v581
      %v1055 = vsel %vm1035, %v853, %v582
      %v1056 = vsel %vm1035, %v867, %v583
      %v1057 = vsel %vm1035, %v877, %v584
      %v1058 = vsel %vm1035, %v891, %v585
      %v1059 = vsel %vm1035, %v901, %v586
      %v1060 = vsel %vm1035, %v915, %v587
      %v1061 = vsel %vm1035, %v925, %v588
      %v1062 = vsel %vm1035, %v939, %v589
      %v1063 = vsel %vm1035, %v949, %v590
      %v1064 = vsel %vm1035, %v963, %v591
      %v1065 = vsel %vm1035, %v973, %v592
      %v1066 = vsel %vm1035, %v987, %v593
      %v1067 = vsel %vm1035, %v997, %v594
      %v1068 = vld [vmem:[#allocation2] sm:$0xe]
      %v1069 = vld [vmem:[#allocation2 + $0xc] sm:$0xe]
      %v1070 = vld [vmem:[#allocation2 + $0x18] sm:$0xe]
      %v1071 = vld [vmem:[#allocation2 + $0x24] sm:$0xe]
      %v1072 = vld [vmem:[#allocation2 + $0x30] sm:$0xe]
      %v1073 = vld [vmem:[#allocation2 + $0x3c] sm:$0xe]
      %v1074 = vld [vmem:[#allocation2 + $0x48] sm:$0xe]
      %v1075 = vld [vmem:[#allocation2 + $0x54] sm:$0xe]
      %v1076 = vld [vmem:[#allocation2 + $0x60] sm:$0xe]
      %v1077 = vld [vmem:[#allocation2 + $0x6c] sm:$0xe]
      %v1078 = vld [vmem:[#allocation2 + $0x78] sm:$0xe]
      %v1079 = vld [vmem:[#allocation2 + $0x84] sm:$0xe]
      %v1080 = vld [vmem:[#allocation2 + $0x90] sm:$0xe]
      %v1081 = vld [vmem:[#allocation2 + $0x9c] sm:$0xe]
      %v1082 = vld [vmem:[#allocation2 + $0xa8] sm:$0xe]
      %v1083 = vld [vmem:[#allocation2 + $0xb4] sm:$0xe]
      %vm1132 = vcmask 1042432
      %vm1133 = vcmask 1046532
      %vm1134 = vmor %vm1132, %vm1133
      %v1135 = vrot.slane %v1068, 5
      %v1136 = vrot.slane %v1135, 4
      %v1137 = vrot.slane %v526, 5
      %v1138 = vsel %vm1134, %v1136, %v1137
      %v1139 = vrot.slane %v1137, 4
      %v1140 = vrot.slane %v595, 5
      %v1141 = vsel %vm1134, %v1139, %v1140
      %v1142 = vrot.slane %v1069, 5
      %v1143 = vrot.slane %v1142, 4
      %v1144 = vrot.slane %v528, 5
      %v1145 = vsel %vm1134, %v1143, %v1144
      %v1146 = vrot.slane %v1144, 4
      %v1147 = vrot.slane %v596, 5
      %v1148 = vsel %vm1134, %v1146, %v1147
      %v1149 = vrot.slane %v1070, 5
      %v1150 = vrot.slane %v1149, 4
      %v1151 = vrot.slane %v530, 5
      %v1152 = vsel %vm1134, %v1150, %v1151
      %v1153 = vrot.slane %v1151, 4
      %v1154 = vrot.slane %v597, 5
      %v1155 = vsel %vm1134, %v1153, %v1154
      %v1156 = vrot.slane %v1071, 5
      %v1157 = vrot.slane %v1156, 4
      %v1158 = vrot.slane %v532, 5
      %v1159 = vsel %vm1134, %v1157, %v1158
      %v1160 = vrot.slane %v1158, 4
      %v1161 = vrot.slane %v598, 5
      %v1162 = vsel %vm1134, %v1160, %v1161
      %v1163 = vrot.slane %v1072, 5
      %v1164 = vrot.slane %v1163, 4
      %v1165 = vrot.slane %v534, 5
      %v1166 = vsel %vm1134, %v1164, %v1165
      %v1167 = vrot.slane %v1165, 4
      %v1168 = vrot.slane %v599, 5
      %v1169 = vsel %vm1134, %v1167, %v1168
      %v1170 = vrot.slane %v1073, 5
      %v1171 = vrot.slane %v1170, 4
      %v1172 = vrot.slane %v536, 5
      %v1173 = vsel %vm1134, %v1171, %v1172
      %v1174 = vrot.slane %v1172, 4
      %v1175 = vrot.slane %v600, 5
      %v1176 = vsel %vm1134, %v1174, %v1175
      %v1177 = vrot.slane %v1074, 5
      %v1178 = vrot.slane %v1177, 4
      %v1179 = vrot.slane %v538, 5
      %v1180 = vsel %vm1134, %v1178, %v1179
      %v1181 = vrot.slane %v1179, 4
      %v1182 = vrot.slane %v601, 5
      %v1183 = vsel %vm1134, %v1181, %v1182
      %v1184 = vrot.slane %v1075, 5
      %v1185 = vrot.slane %v1184, 4
      %v1186 = vrot.slane %v540, 5
      %v1187 = vsel %vm1134, %v1185, %v1186
      %v1188 = vrot.slane %v1186, 4
      %v1189 = vrot.slane %v602, 5
      %v1190 = vsel %vm1134, %v1188, %v1189
      %v1191 = vrot.slane %v1076, 5
      %v1192 = vrot.slane %v1191, 4
      %v1193 = vrot.slane %v542, 5
      %v1194 = vsel %vm1134, %v1192, %v1193
      %v1195 = vrot.slane %v1193, 4
      %v1196 = vrot.slane %v603, 5
      %v1197 = vsel %vm1134, %v1195, %v1196
      %v1198 = vrot.slane %v1077, 5
      %v1199 = vrot.slane %v1198, 4
      %v1200 = vrot.slane %v544, 5
      %v1201 = vsel %vm1134, %v1199, %v1200
      %v1202 = vrot.slane %v1200, 4
      %v1203 = vrot.slane %v604, 5
      %v1204 = vsel %vm1134, %v1202, %v1203
      %v1205 = vrot.slane %v1078, 5
      %v1206 = vrot.slane %v1205, 4
      %v1207 = vrot.slane %v546, 5
      %v1208 = vsel %vm1134, %v1206, %v1207
      %v1209 = vrot.slane %v1207, 4
      %v1210 = vrot.slane %v605, 5
      %v1211 = vsel %vm1134, %v1209, %v1210
      %v1212 = vrot.slane %v1079, 5
      %v1213 = vrot.slane %v1212, 4
      %v1214 = vrot.slane %v548, 5
      %v1215 = vsel %vm1134, %v1213, %v1214
      %v1216 = vrot.slane %v1214, 4
      %v1217 = vrot.slane %v606, 5
      %v1218 = vsel %vm1134, %v1216, %v1217
      %v1219 = vrot.slane %v1080, 5
      %v1220 = vrot.slane %v1219, 4
      %v1221 = vrot.slane %v550, 5
      %v1222 = vsel %vm1134, %v1220, %v1221
      %v1223 = vrot.slane %v1221, 4
      %v1224 = vrot.slane %v607, 5
      %v1225 = vsel %vm1134, %v1223, %v1224
      %v1226 = vrot.slane %v1081, 5
      %v1227 = vrot.slane %v1226, 4
      %v1228 = vrot.slane %v552, 5
      %v1229 = vsel %vm1134, %v1227, %v1228
      %v1230 = vrot.slane %v1228, 4
      %v1231 = vrot.slane %v608, 5
      %v1232 = vsel %vm1134, %v1230, %v1231
      %v1233 = vrot.slane %v1082, 5
      %v1234 = vrot.slane %v1233, 4
      %v1235 = vrot.slane %v554, 5
      %v1236 = vsel %vm1134, %v1234, %v1235
      %v1237 = vrot.slane %v1235, 4
      %v1238 = vrot.slane %v609, 5
      %v1239 = vsel %vm1134, %v1237, %v1238
      %v1240 = vrot.slane %v1083, 5
      %v1241 = vrot.slane %v1240, 4
      %v1242 = vrot.slane %v556, 5
      %v1243 = vsel %vm1134, %v1241, %v1242
      %v1244 = vrot.slane %v1242, 4
      %v1245 = vrot.slane %v610, 5
      %v1246 = vsel %vm1134, %v1244, %v1245
      %vm1279 = vcmp.ge.s32.totalorder %v254, 8
      %vm1280 = vcmp.lt.s32.totalorder %v254, 12
      %vm1281 = vmand %vm1279, %vm1280
      %v1282 = vsel %vm1281, 1, 0
      %vm1283 = vcmp.eq.s32.totalorder %v1282, 1
      %vm1284 = vmpackc.low %vm1283, %vm1283
      %v1285 = vsel %vm1284, %v1138, %v1036
      %v1286 = vsel %vm1284, %v1141, %v1037
      %v1287 = vsel %vm1284, %v1145, %v1038
      %v1288 = vsel %vm1284, %v1148, %v1039
      %v1289 = vsel %vm1284, %v1152, %v1040
      %v1290 = vsel %vm1284, %v1155, %v1041
      %v1291 = vsel %vm1284, %v1159, %v1042
      %v1292 = vsel %vm1284, %v1162, %v1043
      %v1293 = vsel %vm1284, %v1166, %v1044
      %v1294 = vsel %vm1284, %v1169, %v1045
      %v1295 = vsel %vm1284, %v1173, %v1046
      %v1296 = vsel %vm1284, %v1176, %v1047
      %v1297 = vsel %vm1284, %v1180, %v1048
      %v1298 = vsel %vm1284, %v1183, %v1049
      %v1299 = vsel %vm1284, %v1187, %v1050
      %v1300 = vsel %vm1284, %v1190, %v1051
      %v1301 = vsel %vm1284, %v1194, %v1052
      %v1302 = vsel %vm1284, %v1197, %v1053
      %v1303 = vsel %vm1284, %v1201, %v1054
      %v1304 = vsel %vm1284, %v1204, %v1055
      %v1305 = vsel %vm1284, %v1208, %v1056
      %v1306 = vsel %vm1284, %v1211, %v1057
      %v1307 = vsel %vm1284, %v1215, %v1058
      %v1308 = vsel %vm1284, %v1218, %v1059
      %v1309 = vsel %vm1284, %v1222, %v1060
      %v1310 = vsel %vm1284, %v1225, %v1061
      %v1311 = vsel %vm1284, %v1229, %v1062
      %v1312 = vsel %vm1284, %v1232, %v1063
      %v1313 = vsel %vm1284, %v1236, %v1064
      %v1314 = vsel %vm1284, %v1239, %v1065
      %v1315 = vsel %vm1284, %v1243, %v1066
      %v1316 = vsel %vm1284, %v1246, %v1067
      %s1317 = scalar_lea.vmem [#allocation2], 12
      %v1318 = vld [vmem:[%s1317] sm:$0xf]
      %v1319 = vld [vmem:[%s1317 + $0x4] sm:$0xf]
      %v1320 = vld [vmem:[%s1317 + $0xc] sm:$0xf]
      %v1321 = vld [vmem:[%s1317 + $0x10] sm:$0xf]
      %v1322 = vld [vmem:[%s1317 + $0x18] sm:$0xf]
      %v1323 = vld [vmem:[%s1317 + $0x1c] sm:$0xf]
      %v1324 = vld [vmem:[%s1317 + $0x24] sm:$0xf]
      %v1325 = vld [vmem:[%s1317 + $0x28] sm:$0xf]
      %v1326 = vld [vmem:[%s1317 + $0x30] sm:$0xf]
      %v1327 = vld [vmem:[%s1317 + $0x34] sm:$0xf]
      %v1328 = vld [vmem:[%s1317 + $0x3c] sm:$0xf]
      %v1329 = vld [vmem:[%s1317 + $0x40] sm:$0xf]
      %v1330 = vld [vmem:[%s1317 + $0x48] sm:$0xf]
      %v1331 = vld [vmem:[%s1317 + $0x4c] sm:$0xf]
      %v1332 = vld [vmem:[%s1317 + $0x54] sm:$0xf]
      %v1333 = vld [vmem:[%s1317 + $0x58] sm:$0xf]
      %v1334 = vld [vmem:[%s1317 + $0x60] sm:$0xf]
      %v1335 = vld [vmem:[%s1317 + $0x64] sm:$0xf]
      %v1336 = vld [vmem:[%s1317 + $0x6c] sm:$0xf]
      %v1337 = vld [vmem:[%s1317 + $0x70] sm:$0xf]
      %v1338 = vld [vmem:[%s1317 + $0x78] sm:$0xf]
      %v1339 = vld [vmem:[%s1317 + $0x7c] sm:$0xf]
      %v1340 = vld [vmem:[%s1317 + $0x84] sm:$0xf]
      %v1341 = vld [vmem:[%s1317 + $0x88] sm:$0xf]
      %v1342 = vld [vmem:[%s1317 + $0x90] sm:$0xf]
      %v1343 = vld [vmem:[%s1317 + $0x94] sm:$0xf]
      %v1344 = vld [vmem:[%s1317 + $0x9c] sm:$0xf]
      %v1345 = vld [vmem:[%s1317 + $0xa0] sm:$0xf]
      %v1346 = vld [vmem:[%s1317 + $0xa8] sm:$0xf]
      %v1347 = vld [vmem:[%s1317 + $0xac] sm:$0xf]
      %v1348 = vld [vmem:[%s1317 + $0xb4] sm:$0xf]
      %v1349 = vld [vmem:[%s1317 + $0xb8] sm:$0xf]
      %vm1350 = vcmp.ge.s32.totalorder %v254, 12
      %vm1351 = vcmp.lt.s32.totalorder %v254, 16
      %vm1352 = vmand %vm1350, %vm1351
      %v1353 = vsel %vm1352, 1, 0
      %vm1354 = vcmp.eq.s32.totalorder %v1353, 1
      %vm1355 = vmpackc.low %vm1354, %vm1354
      %v1356 = vsel %vm1355, %v1318, %v1285
      %v1357 = vsel %vm1355, %v1319, %v1286
      %v1358 = vsel %vm1355, %v1320, %v1287
      %v1359 = vsel %vm1355, %v1321, %v1288
      %v1360 = vsel %vm1355, %v1322, %v1289
      %v1361 = vsel %vm1355, %v1323, %v1290
      %v1362 = vsel %vm1355, %v1324, %v1291
      %v1363 = vsel %vm1355, %v1325, %v1292
      %v1364 = vsel %vm1355, %v1326, %v1293
      %v1365 = vsel %vm1355, %v1327, %v1294
      %v1366 = vsel %vm1355, %v1328, %v1295
      %v1367 = vsel %vm1355, %v1329, %v1296
      %v1368 = vsel %vm1355, %v1330, %v1297
      %v1369 = vsel %vm1355, %v1331, %v1298
      %v1370 = vsel %vm1355, %v1332, %v1299
      %v1371 = vsel %vm1355, %v1333, %v1300
      %v1372 = vsel %vm1355, %v1334, %v1301
      %v1373 = vsel %vm1355, %v1335, %v1302
      %v1374 = vsel %vm1355, %v1336, %v1303
      %v1375 = vsel %vm1355, %v1337, %v1304
      %v1376 = vsel %vm1355, %v1338, %v1305
      %v1377 = vsel %vm1355, %v1339, %v1306
      %v1378 = vsel %vm1355, %v1340, %v1307
      %v1379 = vsel %vm1355, %v1341, %v1308
      %v1380 = vsel %vm1355, %v1342, %v1309
      %v1381 = vsel %vm1355, %v1343, %v1310
      %v1382 = vsel %vm1355, %v1344, %v1311
      %v1383 = vsel %vm1355, %v1345, %v1312
      %v1384 = vsel %vm1355, %v1346, %v1313
      %v1385 = vsel %vm1355, %v1347, %v1314
      %v1386 = vsel %vm1355, %v1348, %v1315
      %v1387 = vsel %vm1355, %v1349, %v1316
      %v1388 = vld [vmem:[%s1317 + $0x8] sm:$0x1]
      %v1389 = vld [vmem:[%s1317 + $0x14] sm:$0x1]
      %v1390 = vld [vmem:[%s1317 + $0x20] sm:$0x1]
      %v1391 = vld [vmem:[%s1317 + $0x2c] sm:$0x1]
      %v1392 = vld [vmem:[%s1317 + $0x38] sm:$0x1]
      %v1393 = vld [vmem:[%s1317 + $0x44] sm:$0x1]
      %v1394 = vld [vmem:[%s1317 + $0x50] sm:$0x1]
      %v1395 = vld [vmem:[%s1317 + $0x5c] sm:$0x1]
      %v1396 = vld [vmem:[%s1317 + $0x68] sm:$0x1]
      %v1397 = vld [vmem:[%s1317 + $0x74] sm:$0x1]
      %v1398 = vld [vmem:[%s1317 + $0x80] sm:$0x1]
      %v1399 = vld [vmem:[%s1317 + $0x8c] sm:$0x1]
      %v1400 = vld [vmem:[%s1317 + $0x98] sm:$0x1]
      %v1401 = vld [vmem:[%s1317 + $0xa4] sm:$0x1]
      %v1402 = vld [vmem:[%s1317 + $0xb0] sm:$0x1]
      %v1403 = vld [vmem:[%s1317 + $0xbc] sm:$0x1]
      %v1405 = vshrl.u32 %v1318, 16
      %v1407 = vrot.slane %v1405, 4
      %v1408 = vshll.u32 %v1318, 16
      %v1410 = vrot.slane %v1408, 5
      %v1411 = vor.u32 %v1407, %v1410
      %v1412 = vrot.slane %v1411, 4
      %v1414 = vshll.u32 %v1319, 16
      %v1416 = vrot.slane %v1414, 5
      %v1417 = vsel %vm613, %v1412, %v1416
      %v1418 = vshrl.u32 %v1319, 16
      %v1420 = vrot.slane %v1418, 4
      %v1421 = vor.u32 %v1420, %v1416
      %v1422 = vrot.slane %v1421, 4
      %v1424 = vshll.u32 %v1388, 16
      %v1426 = vrot.slane %v1424, 5
      %v1427 = vsel %vm613, %v1422, %v1426
      %v1429 = vshrl.u32 %v1320, 16
      %v1431 = vrot.slane %v1429, 4
      %v1432 = vshll.u32 %v1320, 16
      %v1434 = vrot.slane %v1432, 5
      %v1435 = vor.u32 %v1431, %v1434
      %v1436 = vrot.slane %v1435, 4
      %v1438 = vshll.u32 %v1321, 16
      %v1440 = vrot.slane %v1438, 5
      %v1441 = vsel %vm613, %v1436, %v1440
      %v1442 = vshrl.u32 %v1321, 16
      %v1444 = vrot.slane %v1442, 4
      %v1445 = vor.u32 %v1444, %v1440
      %v1446 = vrot.slane %v1445, 4
      %v1448 = vshll.u32 %v1389, 16
      %v1450 = vrot.slane %v1448, 5
      %v1451 = vsel %vm613, %v1446, %v1450
      %v1453 = vshrl.u32 %v1322, 16
      %v1455 = vrot.slane %v1453, 4
      %v1456 = vshll.u32 %v1322, 16
      %v1458 = vrot.slane %v1456, 5
      %v1459 = vor.u32 %v1455, %v1458
      %v1460 = vrot.slane %v1459, 4
      %v1462 = vshll.u32 %v1323, 16
      %v1464 = vrot.slane %v1462, 5
      %v1465 = vsel %vm613, %v1460, %v1464
      %v1466 = vshrl.u32 %v1323, 16
      %v1468 = vrot.slane %v1466, 4
      %v1469 = vor.u32 %v1468, %v1464
      %v1470 = vrot.slane %v1469, 4
      %v1472 = vshll.u32 %v1390, 16
      %v1474 = vrot.slane %v1472, 5
      %v1475 = vsel %vm613, %v1470, %v1474
      %v1477 = vshrl.u32 %v1324, 16
      %v1479 = vrot.slane %v1477, 4
      %v1480 = vshll.u32 %v1324, 16
      %v1482 = vrot.slane %v1480, 5
      %v1483 = vor.u32 %v1479, %v1482
      %v1484 = vrot.slane %v1483, 4
      %v1486 = vshll.u32 %v1325, 16
      %v1488 = vrot.slane %v1486, 5
      %v1489 = vsel %vm613, %v1484, %v1488
      %v1490 = vshrl.u32 %v1325, 16
      %v1492 = vrot.slane %v1490, 4
      %v1493 = vor.u32 %v1492, %v1488
      %v1494 = vrot.slane %v1493, 4
      %v1496 = vshll.u32 %v1391, 16
      %v1498 = vrot.slane %v1496, 5
      %v1499 = vsel %vm613, %v1494, %v1498
      %v1501 = vshrl.u32 %v1326, 16
      %v1503 = vrot.slane %v1501, 4
      %v1504 = vshll.u32 %v1326, 16
      %v1506 = vrot.slane %v1504, 5
      %v1507 = vor.u32 %v1503, %v1506
      %v1508 = vrot.slane %v1507, 4
      %v1510 = vshll.u32 %v1327, 16
      %v1512 = vrot.slane %v1510, 5
      %v1513 = vsel %vm613, %v1508, %v1512
      %v1514 = vshrl.u32 %v1327, 16
      %v1516 = vrot.slane %v1514, 4
      %v1517 = vor.u32 %v1516, %v1512
      %v1518 = vrot.slane %v1517, 4
      %v1520 = vshll.u32 %v1392, 16
      %v1522 = vrot.slane %v1520, 5
      %v1523 = vsel %vm613, %v1518, %v1522
      %v1525 = vshrl.u32 %v1328, 16
      %v1527 = vrot.slane %v1525, 4
      %v1528 = vshll.u32 %v1328, 16
      %v1530 = vrot.slane %v1528, 5
      %v1531 = vor.u32 %v1527, %v1530
      %v1532 = vrot.slane %v1531, 4
      %v1534 = vshll.u32 %v1329, 16
      %v1536 = vrot.slane %v1534, 5
      %v1537 = vsel %vm613, %v1532, %v1536
      %v1538 = vshrl.u32 %v1329, 16
      %v1540 = vrot.slane %v1538, 4
      %v1541 = vor.u32 %v1540, %v1536
      %v1542 = vrot.slane %v1541, 4
      %v1544 = vshll.u32 %v1393, 16
      %v1546 = vrot.slane %v1544, 5
      %v1547 = vsel %vm613, %v1542, %v1546
      %v1549 = vshrl.u32 %v1330, 16
      %v1551 = vrot.slane %v1549, 4
      %v1552 = vshll.u32 %v1330, 16
      %v1554 = vrot.slane %v1552, 5
      %v1555 = vor.u32 %v1551, %v1554
      %v1556 = vrot.slane %v1555, 4
      %v1558 = vshll.u32 %v1331, 16
      %v1560 = vrot.slane %v1558, 5
      %v1561 = vsel %vm613, %v1556, %v1560
      %v1562 = vshrl.u32 %v1331, 16
      %v1564 = vrot.slane %v1562, 4
      %v1565 = vor.u32 %v1564, %v1560
      %v1566 = vrot.slane %v1565, 4
      %v1568 = vshll.u32 %v1394, 16
      %v1570 = vrot.slane %v1568, 5
      %v1571 = vsel %vm613, %v1566, %v1570
      %v1573 = vshrl.u32 %v1332, 16
      %v1575 = vrot.slane %v1573, 4
      %v1576 = vshll.u32 %v1332, 16
      %v1578 = vrot.slane %v1576, 5
      %v1579 = vor.u32 %v1575, %v1578
      %v1580 = vrot.slane %v1579, 4
      %v1582 = vshll.u32 %v1333, 16
      %v1584 = vrot.slane %v1582, 5
      %v1585 = vsel %vm613, %v1580, %v1584
      %v1586 = vshrl.u32 %v1333, 16
      %v1588 = vrot.slane %v1586, 4
      %v1589 = vor.u32 %v1588, %v1584
      %v1590 = vrot.slane %v1589, 4
      %v1592 = vshll.u32 %v1395, 16
      %v1594 = vrot.slane %v1592, 5
      %v1595 = vsel %vm613, %v1590, %v1594
      %v1597 = vshrl.u32 %v1334, 16
      %v1599 = vrot.slane %v1597, 4
      %v1600 = vshll.u32 %v1334, 16
      %v1602 = vrot.slane %v1600, 5
      %v1603 = vor.u32 %v1599, %v1602
      %v1604 = vrot.slane %v1603, 4
      %v1606 = vshll.u32 %v1335, 16
      %v1608 = vrot.slane %v1606, 5
      %v1609 = vsel %vm613, %v1604, %v1608
      %v1610 = vshrl.u32 %v1335, 16
      %v1612 = vrot.slane %v1610, 4
      %v1613 = vor.u32 %v1612, %v1608
      %v1614 = vrot.slane %v1613, 4
      %v1616 = vshll.u32 %v1396, 16
      %v1618 = vrot.slane %v1616, 5
      %v1619 = vsel %vm613, %v1614, %v1618
      %v1621 = vshrl.u32 %v1336, 16
      %v1623 = vrot.slane %v1621, 4
      %v1624 = vshll.u32 %v1336, 16
      %v1626 = vrot.slane %v1624, 5
      %v1627 = vor.u32 %v1623, %v1626
      %v1628 = vrot.slane %v1627, 4
      %v1630 = vshll.u32 %v1337, 16
      %v1632 = vrot.slane %v1630, 5
      %v1633 = vsel %vm613, %v1628, %v1632
      %v1634 = vshrl.u32 %v1337, 16
      %v1636 = vrot.slane %v1634, 4
      %v1637 = vor.u32 %v1636, %v1632
      %v1638 = vrot.slane %v1637, 4
      %v1640 = vshll.u32 %v1397, 16
      %v1642 = vrot.slane %v1640, 5
      %v1643 = vsel %vm613, %v1638, %v1642
      %v1645 = vshrl.u32 %v1338, 16
      %v1647 = vrot.slane %v1645, 4
      %v1648 = vshll.u32 %v1338, 16
      %v1650 = vrot.slane %v1648, 5
      %v1651 = vor.u32 %v1647, %v1650
      %v1652 = vrot.slane %v1651, 4
      %v1654 = vshll.u32 %v1339, 16
      %v1656 = vrot.slane %v1654, 5
      %v1657 = vsel %vm613, %v1652, %v1656
      %v1658 = vshrl.u32 %v1339, 16
      %v1660 = vrot.slane %v1658, 4
      %v1661 = vor.u32 %v1660, %v1656
      %v1662 = vrot.slane %v1661, 4
      %v1664 = vshll.u32 %v1398, 16
      %v1666 = vrot.slane %v1664, 5
      %v1667 = vsel %vm613, %v1662, %v1666
      %v1669 = vshrl.u32 %v1340, 16
      %v1671 = vrot.slane %v1669, 4
      %v1672 = vshll.u32 %v1340, 16
      %v1674 = vrot.slane %v1672, 5
      %v1675 = vor.u32 %v1671, %v1674
      %v1676 = vrot.slane %v1675, 4
      %v1678 = vshll.u32 %v1341, 16
      %v1680 = vrot.slane %v1678, 5
      %v1681 = vsel %vm613, %v1676, %v1680
      %v1682 = vshrl.u32 %v1341, 16
      %v1684 = vrot.slane %v1682, 4
      %v1685 = vor.u32 %v1684, %v1680
      %v1686 = vrot.slane %v1685, 4
      %v1688 = vshll.u32 %v1399, 16
      %v1690 = vrot.slane %v1688, 5
      %v1691 = vsel %vm613, %v1686, %v1690
      %v1693 = vshrl.u32 %v1342, 16
      %v1695 = vrot.slane %v1693, 4
      %v1696 = vshll.u32 %v1342, 16
      %v1698 = vrot.slane %v1696, 5
      %v1699 = vor.u32 %v1695, %v1698
      %v1700 = vrot.slane %v1699, 4
      %v1702 = vshll.u32 %v1343, 16
      %v1704 = vrot.slane %v1702, 5
      %v1705 = vsel %vm613, %v1700, %v1704
      %v1706 = vshrl.u32 %v1343, 16
      %v1708 = vrot.slane %v1706, 4
      %v1709 = vor.u32 %v1708, %v1704
      %v1710 = vrot.slane %v1709, 4
      %v1712 = vshll.u32 %v1400, 16
      %v1714 = vrot.slane %v1712, 5
      %v1715 = vsel %vm613, %v1710, %v1714
      %v1717 = vshrl.u32 %v1344, 16
      %v1719 = vrot.slane %v1717, 4
      %v1720 = vshll.u32 %v1344, 16
      %v1722 = vrot.slane %v1720, 5
      %v1723 = vor.u32 %v1719, %v1722
      %v1724 = vrot.slane %v1723, 4
      %v1726 = vshll.u32 %v1345, 16
      %v1728 = vrot.slane %v1726, 5
      %v1729 = vsel %vm613, %v1724, %v1728
      %v1730 = vshrl.u32 %v1345, 16
      %v1732 = vrot.slane %v1730, 4
      %v1733 = vor.u32 %v1732, %v1728
      %v1734 = vrot.slane %v1733, 4
      %v1736 = vshll.u32 %v1401, 16
      %v1738 = vrot.slane %v1736, 5
      %v1739 = vsel %vm613, %v1734, %v1738
      %v1741 = vshrl.u32 %v1346, 16
      %v1743 = vrot.slane %v1741, 4
      %v1744 = vshll.u32 %v1346, 16
      %v1746 = vrot.slane %v1744, 5
      %v1747 = vor.u32 %v1743, %v1746
      %v1748 = vrot.slane %v1747, 4
      %v1750 = vshll.u32 %v1347, 16
      %v1752 = vrot.slane %v1750, 5
      %v1753 = vsel %vm613, %v1748, %v1752
      %v1754 = vshrl.u32 %v1347, 16
      %v1756 = vrot.slane %v1754, 4
      %v1757 = vor.u32 %v1756, %v1752
      %v1758 = vrot.slane %v1757, 4
      %v1760 = vshll.u32 %v1402, 16
      %v1762 = vrot.slane %v1760, 5
      %v1763 = vsel %vm613, %v1758, %v1762
      %v1765 = vshrl.u32 %v1348, 16
      %v1767 = vrot.slane %v1765, 4
      %v1768 = vshll.u32 %v1348, 16
      %v1770 = vrot.slane %v1768, 5
      %v1771 = vor.u32 %v1767, %v1770
      %v1772 = vrot.slane %v1771, 4
      %v1774 = vshll.u32 %v1349, 16
      %v1776 = vrot.slane %v1774, 5
      %v1777 = vsel %vm613, %v1772, %v1776
      %v1778 = vshrl.u32 %v1349, 16
      %v1780 = vrot.slane %v1778, 4
      %v1781 = vor.u32 %v1780, %v1776
      %v1782 = vrot.slane %v1781, 4
      %v1784 = vshll.u32 %v1403, 16
      %v1786 = vrot.slane %v1784, 5
      %v1787 = vsel %vm613, %v1782, %v1786
      %vm1820 = vcmp.ge.s32.totalorder %v254, 16
      %vm1821 = vcmp.lt.s32.totalorder %v254, 20
      %vm1822 = vmand %vm1820, %vm1821
      %v1823 = vsel %vm1822, 1, 0
      %vm1824 = vcmp.eq.s32.totalorder %v1823, 1
      %vm1825 = vmpackc.low %vm1824, %vm1824
      %v1826 = vsel %vm1825, %v1417, %v1356
      %v1827 = vsel %vm1825, %v1427, %v1357
      %v1828 = vsel %vm1825, %v1441, %v1358
      %v1829 = vsel %vm1825, %v1451, %v1359
      %v1830 = vsel %vm1825, %v1465, %v1360
      %v1831 = vsel %vm1825, %v1475, %v1361
      %v1832 = vsel %vm1825, %v1489, %v1362
      %v1833 = vsel %vm1825, %v1499, %v1363
      %v1834 = vsel %vm1825, %v1513, %v1364
      %v1835 = vsel %vm1825, %v1523, %v1365
      %v1836 = vsel %vm1825, %v1537, %v1366
      %v1837 = vsel %vm1825, %v1547, %v1367
      %v1838 = vsel %vm1825, %v1561, %v1368
      %v1839 = vsel %vm1825, %v1571, %v1369
      %v1840 = vsel %vm1825, %v1585, %v1370
      %v1841 = vsel %vm1825, %v1595, %v1371
      %v1842 = vsel %vm1825, %v1609, %v1372
      %v1843 = vsel %vm1825, %v1619, %v1373
      %v1844 = vsel %vm1825, %v1633, %v1374
      %v1845 = vsel %vm1825, %v1643, %v1375
      %v1846 = vsel %vm1825, %v1657, %v1376
      %v1847 = vsel %vm1825, %v1667, %v1377
      %v1848 = vsel %vm1825, %v1681, %v1378
      %v1849 = vsel %vm1825, %v1691, %v1379
      %v1850 = vsel %vm1825, %v1705, %v1380
      %v1851 = vsel %vm1825, %v1715, %v1381
      %v1852 = vsel %vm1825, %v1729, %v1382
      %v1853 = vsel %vm1825, %v1739, %v1383
      %v1854 = vsel %vm1825, %v1753, %v1384
      %v1855 = vsel %vm1825, %v1763, %v1385
      %v1856 = vsel %vm1825, %v1777, %v1386
      %v1857 = vsel %vm1825, %v1787, %v1387
      %v1858 = vld [vmem:[%s1317] sm:$0xe]
      %v1859 = vld [vmem:[%s1317 + $0xc] sm:$0xe]
      %v1860 = vld [vmem:[%s1317 + $0x18] sm:$0xe]
      %v1861 = vld [vmem:[%s1317 + $0x24] sm:$0xe]
      %v1862 = vld [vmem:[%s1317 + $0x30] sm:$0xe]
      %v1863 = vld [vmem:[%s1317 + $0x3c] sm:$0xe]
      %v1864 = vld [vmem:[%s1317 + $0x48] sm:$0xe]
      %v1865 = vld [vmem:[%s1317 + $0x54] sm:$0xe]
      %v1866 = vld [vmem:[%s1317 + $0x60] sm:$0xe]
      %v1867 = vld [vmem:[%s1317 + $0x6c] sm:$0xe]
      %v1868 = vld [vmem:[%s1317 + $0x78] sm:$0xe]
      %v1869 = vld [vmem:[%s1317 + $0x84] sm:$0xe]
      %v1870 = vld [vmem:[%s1317 + $0x90] sm:$0xe]
      %v1871 = vld [vmem:[%s1317 + $0x9c] sm:$0xe]
      %v1872 = vld [vmem:[%s1317 + $0xa8] sm:$0xe]
      %v1873 = vld [vmem:[%s1317 + $0xb4] sm:$0xe]
      %v1922 = vrot.slane %v1858, 5
      %v1923 = vrot.slane %v1922, 4
      %v1924 = vrot.slane %v1319, 5
      %v1925 = vsel %vm1134, %v1923, %v1924
      %v1926 = vrot.slane %v1924, 4
      %v1927 = vrot.slane %v1388, 5
      %v1928 = vsel %vm1134, %v1926, %v1927
      %v1929 = vrot.slane %v1859, 5
      %v1930 = vrot.slane %v1929, 4
      %v1931 = vrot.slane %v1321, 5
      %v1932 = vsel %vm1134, %v1930, %v1931
      %v1933 = vrot.slane %v1931, 4
      %v1934 = vrot.slane %v1389, 5
      %v1935 = vsel %vm1134, %v1933, %v1934
      %v1936 = vrot.slane %v1860, 5
      %v1937 = vrot.slane %v1936, 4
      %v1938 = vrot.slane %v1323, 5
      %v1939 = vsel %vm1134, %v1937, %v1938
      %v1940 = vrot.slane %v1938, 4
      %v1941 = vrot.slane %v1390, 5
      %v1942 = vsel %vm1134, %v1940, %v1941
      %v1943 = vrot.slane %v1861, 5
      %v1944 = vrot.slane %v1943, 4
      %v1945 = vrot.slane %v1325, 5
      %v1946 = vsel %vm1134, %v1944, %v1945
      %v1947 = vrot.slane %v1945, 4
      %v1948 = vrot.slane %v1391, 5
      %v1949 = vsel %vm1134, %v1947, %v1948
      %v1950 = vrot.slane %v1862, 5
      %v1951 = vrot.slane %v1950, 4
      %v1952 = vrot.slane %v1327, 5
      %v1953 = vsel %vm1134, %v1951, %v1952
      %v1954 = vrot.slane %v1952, 4
      %v1955 = vrot.slane %v1392, 5
      %v1956 = vsel %vm1134, %v1954, %v1955
      %v1957 = vrot.slane %v1863, 5
      %v1958 = vrot.slane %v1957, 4
      %v1959 = vrot.slane %v1329, 5
      %v1960 = vsel %vm1134, %v1958, %v1959
      %v1961 = vrot.slane %v1959, 4
      %v1962 = vrot.slane %v1393, 5
      %v1963 = vsel %vm1134, %v1961, %v1962
      %v1964 = vrot.slane %v1864, 5
      %v1965 = vrot.slane %v1964, 4
      %v1966 = vrot.slane %v1331, 5
      %v1967 = vsel %vm1134, %v1965, %v1966
      %v1968 = vrot.slane %v1966, 4
      %v1969 = vrot.slane %v1394, 5
      %v1970 = vsel %vm1134, %v1968, %v1969
      %v1971 = vrot.slane %v1865, 5
      %v1972 = vrot.slane %v1971, 4
      %v1973 = vrot.slane %v1333, 5
      %v1974 = vsel %vm1134, %v1972, %v1973
      %v1975 = vrot.slane %v1973, 4
      %v1976 = vrot.slane %v1395, 5
      %v1977 = vsel %vm1134, %v1975, %v1976
      %v1978 = vrot.slane %v1866, 5
      %v1979 = vrot.slane %v1978, 4
      %v1980 = vrot.slane %v1335, 5
      %v1981 = vsel %vm1134, %v1979, %v1980
      %v1982 = vrot.slane %v1980, 4
      %v1983 = vrot.slane %v1396, 5
      %v1984 = vsel %vm1134, %v1982, %v1983
      %v1985 = vrot.slane %v1867, 5
      %v1986 = vrot.slane %v1985, 4
      %v1987 = vrot.slane %v1337, 5
      %v1988 = vsel %vm1134, %v1986, %v1987
      %v1989 = vrot.slane %v1987, 4
      %v1990 = vrot.slane %v1397, 5
      %v1991 = vsel %vm1134, %v1989, %v1990
      %v1992 = vrot.slane %v1868, 5
      %v1993 = vrot.slane %v1992, 4
      %v1994 = vrot.slane %v1339, 5
      %v1995 = vsel %vm1134, %v1993, %v1994
      %v1996 = vrot.slane %v1994, 4
      %v1997 = vrot.slane %v1398, 5
      %v1998 = vsel %vm1134, %v1996, %v1997
      %v1999 = vrot.slane %v1869, 5
      %v2000 = vrot.slane %v1999, 4
      %v2001 = vrot.slane %v1341, 5
      %v2002 = vsel %vm1134, %v2000, %v2001
      %v2003 = vrot.slane %v2001, 4
      %v2004 = vrot.slane %v1399, 5
      %v2005 = vsel %vm1134, %v2003, %v2004
      %v2006 = vrot.slane %v1870, 5
      %v2007 = vrot.slane %v2006, 4
      %v2008 = vrot.slane %v1343, 5
      %v2009 = vsel %vm1134, %v2007, %v2008
      %v2010 = vrot.slane %v2008, 4
      %v2011 = vrot.slane %v1400, 5
      %v2012 = vsel %vm1134, %v2010, %v2011
      %v2013 = vrot.slane %v1871, 5
      %v2014 = vrot.slane %v2013, 4
      %v2015 = vrot.slane %v1345, 5
      %v2016 = vsel %vm1134, %v2014, %v2015
      %v2017 = vrot.slane %v2015, 4
      %v2018 = vrot.slane %v1401, 5
      %v2019 = vsel %vm1134, %v2017, %v2018
      %v2020 = vrot.slane %v1872, 5
      %v2021 = vrot.slane %v2020, 4
      %v2022 = vrot.slane %v1347, 5
      %v2023 = vsel %vm1134, %v2021, %v2022
      %v2024 = vrot.slane %v2022, 4
      %v2025 = vrot.slane %v1402, 5
      %v2026 = vsel %vm1134, %v2024, %v2025
      %v2027 = vrot.slane %v1873, 5
      %v2028 = vrot.slane %v2027, 4
      %v2029 = vrot.slane %v1349, 5
      %v2030 = vsel %vm1134, %v2028, %v2029
      %v2031 = vrot.slane %v2029, 4
      %v2032 = vrot.slane %v1403, 5
      %v2033 = vsel %vm1134, %v2031, %v2032
      %vm2066 = vcmp.ge.s32.totalorder %v254, 20
      %vm2067 = vcmp.lt.s32.totalorder %v254, 24
      %vm2068 = vmand %vm2066, %vm2067
      %v2069 = vsel %vm2068, 1, 0
      %vm2070 = vcmp.eq.s32.totalorder %v2069, 1
      %vm2071 = vmpackc.low %vm2070, %vm2070
      %v2072 = vsel %vm2071, %v1925, %v1826
      %v2073 = vsel %vm2071, %v1928, %v1827
      %v2074 = vsel %vm2071, %v1932, %v1828
      %v2075 = vsel %vm2071, %v1935, %v1829
      %v2076 = vsel %vm2071, %v1939, %v1830
      %v2077 = vsel %vm2071, %v1942, %v1831
      %v2078 = vsel %vm2071, %v1946, %v1832
      %v2079 = vsel %vm2071, %v1949, %v1833
      %v2080 = vsel %vm2071, %v1953, %v1834
      %v2081 = vsel %vm2071, %v1956, %v1835
      %v2082 = vsel %vm2071, %v1960, %v1836
      %v2083 = vsel %vm2071, %v1963, %v1837
      %v2084 = vsel %vm2071, %v1967, %v1838
      %v2085 = vsel %vm2071, %v1970, %v1839
      %v2086 = vsel %vm2071, %v1974, %v1840
      %v2087 = vsel %vm2071, %v1977, %v1841
      %v2088 = vsel %vm2071, %v1981, %v1842
      %v2089 = vsel %vm2071, %v1984, %v1843
      %v2090 = vsel %vm2071, %v1988, %v1844
      %v2091 = vsel %vm2071, %v1991, %v1845
      %v2092 = vsel %vm2071, %v1995, %v1846
      %v2093 = vsel %vm2071, %v1998, %v1847
      %v2094 = vsel %vm2071, %v2002, %v1848
      %v2095 = vsel %vm2071, %v2005, %v1849
      %v2096 = vsel %vm2071, %v2009, %v1850
      %v2097 = vsel %vm2071, %v2012, %v1851
      %v2098 = vsel %vm2071, %v2016, %v1852
      %v2099 = vsel %vm2071, %v2019, %v1853
      %v2100 = vsel %vm2071, %v2023, %v1854
      %v2101 = vsel %vm2071, %v2026, %v1855
      %v2102 = vsel %vm2071, %v2030, %v1856
      %v2103 = vsel %vm2071, %v2033, %v1857
      %s2104 = scalar_lea.vmem [#allocation2], 24
      %v2105 = vld [vmem:[%s2104] sm:$0xf]
      %v2106 = vld [vmem:[%s2104 + $0x4] sm:$0xf]
      %v2107 = vld [vmem:[%s2104 + $0xc] sm:$0xf]
      %v2108 = vld [vmem:[%s2104 + $0x10] sm:$0xf]
      %v2109 = vld [vmem:[%s2104 + $0x18] sm:$0xf]
      %v2110 = vld [vmem:[%s2104 + $0x1c] sm:$0xf]
      %v2111 = vld [vmem:[%s2104 + $0x24] sm:$0xf]
      %v2112 = vld [vmem:[%s2104 + $0x28] sm:$0xf]
      %v2113 = vld [vmem:[%s2104 + $0x30] sm:$0xf]
      %v2114 = vld [vmem:[%s2104 + $0x34] sm:$0xf]
      %v2115 = vld [vmem:[%s2104 + $0x3c] sm:$0xf]
      %v2116 = vld [vmem:[%s2104 + $0x40] sm:$0xf]
      %v2117 = vld [vmem:[%s2104 + $0x48] sm:$0xf]
      %v2118 = vld [vmem:[%s2104 + $0x4c] sm:$0xf]
      %v2119 = vld [vmem:[%s2104 + $0x54] sm:$0xf]
      %v2120 = vld [vmem:[%s2104 + $0x58] sm:$0xf]
      %v2121 = vld [vmem:[%s2104 + $0x60] sm:$0xf]
      %v2122 = vld [vmem:[%s2104 + $0x64] sm:$0xf]
      %v2123 = vld [vmem:[%s2104 + $0x6c] sm:$0xf]
      %v2124 = vld [vmem:[%s2104 + $0x70] sm:$0xf]
      %v2125 = vld [vmem:[%s2104 + $0x78] sm:$0xf]
      %v2126 = vld [vmem:[%s2104 + $0x7c] sm:$0xf]
      %v2127 = vld [vmem:[%s2104 + $0x84] sm:$0xf]
      %v2128 = vld [vmem:[%s2104 + $0x88] sm:$0xf]
      %v2129 = vld [vmem:[%s2104 + $0x90] sm:$0xf]
      %v2130 = vld [vmem:[%s2104 + $0x94] sm:$0xf]
      %v2131 = vld [vmem:[%s2104 + $0x9c] sm:$0xf]
      %v2132 = vld [vmem:[%s2104 + $0xa0] sm:$0xf]
      %v2133 = vld [vmem:[%s2104 + $0xa8] sm:$0xf]
      %v2134 = vld [vmem:[%s2104 + $0xac] sm:$0xf]
      %v2135 = vld [vmem:[%s2104 + $0xb4] sm:$0xf]
      %v2136 = vld [vmem:[%s2104 + $0xb8] sm:$0xf]
      %vm2137 = vcmp.ge.s32.totalorder %v254, 24
      %vm2138 = vcmp.lt.s32.totalorder %v254, 28
      %vm2139 = vmand %vm2137, %vm2138
      %v2140 = vsel %vm2139, 1, 0
      %vm2141 = vcmp.eq.s32.totalorder %v2140, 1
      %vm2142 = vmpackc.low %vm2141, %vm2141
      %v2143 = vsel %vm2142, %v2105, %v2072
      %v2144 = vsel %vm2142, %v2106, %v2073
      %v2145 = vsel %vm2142, %v2107, %v2074
      %v2146 = vsel %vm2142, %v2108, %v2075
      %v2147 = vsel %vm2142, %v2109, %v2076
      %v2148 = vsel %vm2142, %v2110, %v2077
      %v2149 = vsel %vm2142, %v2111, %v2078
      %v2150 = vsel %vm2142, %v2112, %v2079
      %v2151 = vsel %vm2142, %v2113, %v2080
      %v2152 = vsel %vm2142, %v2114, %v2081
      %v2153 = vsel %vm2142, %v2115, %v2082
      %v2154 = vsel %vm2142, %v2116, %v2083
      %v2155 = vsel %vm2142, %v2117, %v2084
      %v2156 = vsel %vm2142, %v2118, %v2085
      %v2157 = vsel %vm2142, %v2119, %v2086
      %v2158 = vsel %vm2142, %v2120, %v2087
      %v2159 = vsel %vm2142, %v2121, %v2088
      %v2160 = vsel %vm2142, %v2122, %v2089
      %v2161 = vsel %vm2142, %v2123, %v2090
      %v2162 = vsel %vm2142, %v2124, %v2091
      %v2163 = vsel %vm2142, %v2125, %v2092
      %v2164 = vsel %vm2142, %v2126, %v2093
      %v2165 = vsel %vm2142, %v2127, %v2094
      %v2166 = vsel %vm2142, %v2128, %v2095
      %v2167 = vsel %vm2142, %v2129, %v2096
      %v2168 = vsel %vm2142, %v2130, %v2097
      %v2169 = vsel %vm2142, %v2131, %v2098
      %v2170 = vsel %vm2142, %v2132, %v2099
      %v2171 = vsel %vm2142, %v2133, %v2100
      %v2172 = vsel %vm2142, %v2134, %v2101
      %v2173 = vsel %vm2142, %v2135, %v2102
      %v2174 = vsel %vm2142, %v2136, %v2103
      %v2175 = vld [vmem:[%s2104 + $0x8] sm:$0x1]
      %v2176 = vld [vmem:[%s2104 + $0x14] sm:$0x1]
      %v2177 = vld [vmem:[%s2104 + $0x20] sm:$0x1]
      %v2178 = vld [vmem:[%s2104 + $0x2c] sm:$0x1]
      %v2179 = vld [vmem:[%s2104 + $0x38] sm:$0x1]
      %v2180 = vld [vmem:[%s2104 + $0x44] sm:$0x1]
      %v2181 = vld [vmem:[%s2104 + $0x50] sm:$0x1]
      %v2182 = vld [vmem:[%s2104 + $0x5c] sm:$0x1]
      %v2183 = vld [vmem:[%s2104 + $0x68] sm:$0x1]
      %v2184 = vld [vmem:[%s2104 + $0x74] sm:$0x1]
      %v2185 = vld [vmem:[%s2104 + $0x80] sm:$0x1]
      %v2186 = vld [vmem:[%s2104 + $0x8c] sm:$0x1]
      %v2187 = vld [vmem:[%s2104 + $0x98] sm:$0x1]
      %v2188 = vld [vmem:[%s2104 + $0xa4] sm:$0x1]
      %v2189 = vld [vmem:[%s2104 + $0xb0] sm:$0x1]
      %v2190 = vld [vmem:[%s2104 + $0xbc] sm:$0x1]
      %v2192 = vshrl.u32 %v2105, 16
      %v2194 = vrot.slane %v2192, 4
      %v2195 = vshll.u32 %v2105, 16
      %v2197 = vrot.slane %v2195, 5
      %v2198 = vor.u32 %v2194, %v2197
      %v2199 = vrot.slane %v2198, 4
      %v2201 = vshll.u32 %v2106, 16
      %v2203 = vrot.slane %v2201, 5
      %v2204 = vsel %vm613, %v2199, %v2203
      %v2205 = vshrl.u32 %v2106, 16
      %v2207 = vrot.slane %v2205, 4
      %v2208 = vor.u32 %v2207, %v2203
      %v2209 = vrot.slane %v2208, 4
      %v2211 = vshll.u32 %v2175, 16
      %v2213 = vrot.slane %v2211, 5
      %v2214 = vsel %vm613, %v2209, %v2213
      %v2216 = vshrl.u32 %v2107, 16
      %v2218 = vrot.slane %v2216, 4
      %v2219 = vshll.u32 %v2107, 16
      %v2221 = vrot.slane %v2219, 5
      %v2222 = vor.u32 %v2218, %v2221
      %v2223 = vrot.slane %v2222, 4
      %v2225 = vshll.u32 %v2108, 16
      %v2227 = vrot.slane %v2225, 5
      %v2228 = vsel %vm613, %v2223, %v2227
      %v2229 = vshrl.u32 %v2108, 16
      %v2231 = vrot.slane %v2229, 4
      %v2232 = vor.u32 %v2231, %v2227
      %v2233 = vrot.slane %v2232, 4
      %v2235 = vshll.u32 %v2176, 16
      %v2237 = vrot.slane %v2235, 5
      %v2238 = vsel %vm613, %v2233, %v2237
      %v2240 = vshrl.u32 %v2109, 16
      %v2242 = vrot.slane %v2240, 4
      %v2243 = vshll.u32 %v2109, 16
      %v2245 = vrot.slane %v2243, 5
      %v2246 = vor.u32 %v2242, %v2245
      %v2247 = vrot.slane %v2246, 4
      %v2249 = vshll.u32 %v2110, 16
      %v2251 = vrot.slane %v2249, 5
      %v2252 = vsel %vm613, %v2247, %v2251
      %v2253 = vshrl.u32 %v2110, 16
      %v2255 = vrot.slane %v2253, 4
      %v2256 = vor.u32 %v2255, %v2251
      %v2257 = vrot.slane %v2256, 4
      %v2259 = vshll.u32 %v2177, 16
      %v2261 = vrot.slane %v2259, 5
      %v2262 = vsel %vm613, %v2257, %v2261
      %v2264 = vshrl.u32 %v2111, 16
      %v2266 = vrot.slane %v2264, 4
      %v2267 = vshll.u32 %v2111, 16
      %v2269 = vrot.slane %v2267, 5
      %v2270 = vor.u32 %v2266, %v2269
      %v2271 = vrot.slane %v2270, 4
      %v2273 = vshll.u32 %v2112, 16
      %v2275 = vrot.slane %v2273, 5
      %v2276 = vsel %vm613, %v2271, %v2275
      %v2277 = vshrl.u32 %v2112, 16
      %v2279 = vrot.slane %v2277, 4
      %v2280 = vor.u32 %v2279, %v2275
      %v2281 = vrot.slane %v2280, 4
      %v2283 = vshll.u32 %v2178, 16
      %v2285 = vrot.slane %v2283, 5
      %v2286 = vsel %vm613, %v2281, %v2285
      %v2288 = vshrl.u32 %v2113, 16
      %v2290 = vrot.slane %v2288, 4
      %v2291 = vshll.u32 %v2113, 16
      %v2293 = vrot.slane %v2291, 5
      %v2294 = vor.u32 %v2290, %v2293
      %v2295 = vrot.slane %v2294, 4
      %v2297 = vshll.u32 %v2114, 16
      %v2299 = vrot.slane %v2297, 5
      %v2300 = vsel %vm613, %v2295, %v2299
      %v2301 = vshrl.u32 %v2114, 16
      %v2303 = vrot.slane %v2301, 4
      %v2304 = vor.u32 %v2303, %v2299
      %v2305 = vrot.slane %v2304, 4
      %v2307 = vshll.u32 %v2179, 16
      %v2309 = vrot.slane %v2307, 5
      %v2310 = vsel %vm613, %v2305, %v2309
      %v2312 = vshrl.u32 %v2115, 16
      %v2314 = vrot.slane %v2312, 4
      %v2315 = vshll.u32 %v2115, 16
      %v2317 = vrot.slane %v2315, 5
      %v2318 = vor.u32 %v2314, %v2317
      %v2319 = vrot.slane %v2318, 4
      %v2321 = vshll.u32 %v2116, 16
      %v2323 = vrot.slane %v2321, 5
      %v2324 = vsel %vm613, %v2319, %v2323
      %v2325 = vshrl.u32 %v2116, 16
      %v2327 = vrot.slane %v2325, 4
      %v2328 = vor.u32 %v2327, %v2323
      %v2329 = vrot.slane %v2328, 4
      %v2331 = vshll.u32 %v2180, 16
      %v2333 = vrot.slane %v2331, 5
      %v2334 = vsel %vm613, %v2329, %v2333
      %v2336 = vshrl.u32 %v2117, 16
      %v2338 = vrot.slane %v2336, 4
      %v2339 = vshll.u32 %v2117, 16
      %v2341 = vrot.slane %v2339, 5
      %v2342 = vor.u32 %v2338, %v2341
      %v2343 = vrot.slane %v2342, 4
      %v2345 = vshll.u32 %v2118, 16
      %v2347 = vrot.slane %v2345, 5
      %v2348 = vsel %vm613, %v2343, %v2347
      %v2349 = vshrl.u32 %v2118, 16
      %v2351 = vrot.slane %v2349, 4
      %v2352 = vor.u32 %v2351, %v2347
      %v2353 = vrot.slane %v2352, 4
      %v2355 = vshll.u32 %v2181, 16
      %v2357 = vrot.slane %v2355, 5
      %v2358 = vsel %vm613, %v2353, %v2357
      %v2360 = vshrl.u32 %v2119, 16
      %v2362 = vrot.slane %v2360, 4
      %v2363 = vshll.u32 %v2119, 16
      %v2365 = vrot.slane %v2363, 5
      %v2366 = vor.u32 %v2362, %v2365
      %v2367 = vrot.slane %v2366, 4
      %v2369 = vshll.u32 %v2120, 16
      %v2371 = vrot.slane %v2369, 5
      %v2372 = vsel %vm613, %v2367, %v2371
      %v2373 = vshrl.u32 %v2120, 16
      %v2375 = vrot.slane %v2373, 4
      %v2376 = vor.u32 %v2375, %v2371
      %v2377 = vrot.slane %v2376, 4
      %v2379 = vshll.u32 %v2182, 16
      %v2381 = vrot.slane %v2379, 5
      %v2382 = vsel %vm613, %v2377, %v2381
      %v2384 = vshrl.u32 %v2121, 16
      %v2386 = vrot.slane %v2384, 4
      %v2387 = vshll.u32 %v2121, 16
      %v2389 = vrot.slane %v2387, 5
      %v2390 = vor.u32 %v2386, %v2389
      %v2391 = vrot.slane %v2390, 4
      %v2393 = vshll.u32 %v2122, 16
      %v2395 = vrot.slane %v2393, 5
      %v2396 = vsel %vm613, %v2391, %v2395
      %v2397 = vshrl.u32 %v2122, 16
      %v2399 = vrot.slane %v2397, 4
      %v2400 = vor.u32 %v2399, %v2395
      %v2401 = vrot.slane %v2400, 4
      %v2403 = vshll.u32 %v2183, 16
      %v2405 = vrot.slane %v2403, 5
      %v2406 = vsel %vm613, %v2401, %v2405
      %v2408 = vshrl.u32 %v2123, 16
      %v2410 = vrot.slane %v2408, 4
      %v2411 = vshll.u32 %v2123, 16
      %v2413 = vrot.slane %v2411, 5
      %v2414 = vor.u32 %v2410, %v2413
      %v2415 = vrot.slane %v2414, 4
      %v2417 = vshll.u32 %v2124, 16
      %v2419 = vrot.slane %v2417, 5
      %v2420 = vsel %vm613, %v2415, %v2419
      %v2421 = vshrl.u32 %v2124, 16
      %v2423 = vrot.slane %v2421, 4
      %v2424 = vor.u32 %v2423, %v2419
      %v2425 = vrot.slane %v2424, 4
      %v2427 = vshll.u32 %v2184, 16
      %v2429 = vrot.slane %v2427, 5
      %v2430 = vsel %vm613, %v2425, %v2429
      %v2432 = vshrl.u32 %v2125, 16
      %v2434 = vrot.slane %v2432, 4
      %v2435 = vshll.u32 %v2125, 16
      %v2437 = vrot.slane %v2435, 5
      %v2438 = vor.u32 %v2434, %v2437
      %v2439 = vrot.slane %v2438, 4
      %v2441 = vshll.u32 %v2126, 16
      %v2443 = vrot.slane %v2441, 5
      %v2444 = vsel %vm613, %v2439, %v2443
      %v2445 = vshrl.u32 %v2126, 16
      %v2447 = vrot.slane %v2445, 4
      %v2448 = vor.u32 %v2447, %v2443
      %v2449 = vrot.slane %v2448, 4
      %v2451 = vshll.u32 %v2185, 16
      %v2453 = vrot.slane %v2451, 5
      %v2454 = vsel %vm613, %v2449, %v2453
      %v2456 = vshrl.u32 %v2127, 16
      %v2458 = vrot.slane %v2456, 4
      %v2459 = vshll.u32 %v2127, 16
      %v2461 = vrot.slane %v2459, 5
      %v2462 = vor.u32 %v2458, %v2461
      %v2463 = vrot.slane %v2462, 4
      %v2465 = vshll.u32 %v2128, 16
      %v2467 = vrot.slane %v2465, 5
      %v2468 = vsel %vm613, %v2463, %v2467
      %v2469 = vshrl.u32 %v2128, 16
      %v2471 = vrot.slane %v2469, 4
      %v2472 = vor.u32 %v2471, %v2467
      %v2473 = vrot.slane %v2472, 4
      %v2475 = vshll.u32 %v2186, 16
      %v2477 = vrot.slane %v2475, 5
      %v2478 = vsel %vm613, %v2473, %v2477
      %v2480 = vshrl.u32 %v2129, 16
      %v2482 = vrot.slane %v2480, 4
      %v2483 = vshll.u32 %v2129, 16
      %v2485 = vrot.slane %v2483, 5
      %v2486 = vor.u32 %v2482, %v2485
      %v2487 = vrot.slane %v2486, 4
      %v2489 = vshll.u32 %v2130, 16
      %v2491 = vrot.slane %v2489, 5
      %v2492 = vsel %vm613, %v2487, %v2491
      %v2493 = vshrl.u32 %v2130, 16
      %v2495 = vrot.slane %v2493, 4
      %v2496 = vor.u32 %v2495, %v2491
      %v2497 = vrot.slane %v2496, 4
      %v2499 = vshll.u32 %v2187, 16
      %v2501 = vrot.slane %v2499, 5
      %v2502 = vsel %vm613, %v2497, %v2501
      %v2504 = vshrl.u32 %v2131, 16
      %v2506 = vrot.slane %v2504, 4
      %v2507 = vshll.u32 %v2131, 16
      %v2509 = vrot.slane %v2507, 5
      %v2510 = vor.u32 %v2506, %v2509
      %v2511 = vrot.slane %v2510, 4
      %v2513 = vshll.u32 %v2132, 16
      %v2515 = vrot.slane %v2513, 5
      %v2516 = vsel %vm613, %v2511, %v2515
      %v2517 = vshrl.u32 %v2132, 16
      %v2519 = vrot.slane %v2517, 4
      %v2520 = vor.u32 %v2519, %v2515
      %v2521 = vrot.slane %v2520, 4
      %v2523 = vshll.u32 %v2188, 16
      %v2525 = vrot.slane %v2523, 5
      %v2526 = vsel %vm613, %v2521, %v2525
      %v2528 = vshrl.u32 %v2133, 16
      %v2530 = vrot.slane %v2528, 4
      %v2531 = vshll.u32 %v2133, 16
      %v2533 = vrot.slane %v2531, 5
      %v2534 = vor.u32 %v2530, %v2533
      %v2535 = vrot.slane %v2534, 4
      %v2537 = vshll.u32 %v2134, 16
      %v2539 = vrot.slane %v2537, 5
      %v2540 = vsel %vm613, %v2535, %v2539
      %v2541 = vshrl.u32 %v2134, 16
      %v2543 = vrot.slane %v2541, 4
      %v2544 = vor.u32 %v2543, %v2539
      %v2545 = vrot.slane %v2544, 4
      %v2547 = vshll.u32 %v2189, 16
      %v2549 = vrot.slane %v2547, 5
      %v2550 = vsel %vm613, %v2545, %v2549
      %v2552 = vshrl.u32 %v2135, 16
      %v2554 = vrot.slane %v2552, 4
      %v2555 = vshll.u32 %v2135, 16
      %v2557 = vrot.slane %v2555, 5
      %v2558 = vor.u32 %v2554, %v2557
      %v2559 = vrot.slane %v2558, 4
      %v2561 = vshll.u32 %v2136, 16
      %v2563 = vrot.slane %v2561, 5
      %v2564 = vsel %vm613, %v2559, %v2563
      %v2565 = vshrl.u32 %v2136, 16
      %v2567 = vrot.slane %v2565, 4
      %v2568 = vor.u32 %v2567, %v2563
      %v2569 = vrot.slane %v2568, 4
      %v2571 = vshll.u32 %v2190, 16
      %v2573 = vrot.slane %v2571, 5
      %v2574 = vsel %vm613, %v2569, %v2573
      %vm2607 = vcmp.ge.s32.totalorder %v254, 28
      %vm2608 = vcmp.lt.s32.totalorder %v254, 32
      %vm2609 = vmand %vm2607, %vm2608
      %v2610 = vsel %vm2609, 1, 0
      %vm2611 = vcmp.eq.s32.totalorder %v2610, 1
      %vm2612 = vmpackc.low %vm2611, %vm2611
      %v2613 = vsel %vm2612, %v2204, %v2143
      %v2614 = vsel %vm2612, %v2214, %v2144
      %v2615 = vsel %vm2612, %v2228, %v2145
      %v2616 = vsel %vm2612, %v2238, %v2146
      %v2617 = vsel %vm2612, %v2252, %v2147
      %v2618 = vsel %vm2612, %v2262, %v2148
      %v2619 = vsel %vm2612, %v2276, %v2149
      %v2620 = vsel %vm2612, %v2286, %v2150
      %v2621 = vsel %vm2612, %v2300, %v2151
      %v2622 = vsel %vm2612, %v2310, %v2152
      %v2623 = vsel %vm2612, %v2324, %v2153
      %v2624 = vsel %vm2612, %v2334, %v2154
      %v2625 = vsel %vm2612, %v2348, %v2155
      %v2626 = vsel %vm2612, %v2358, %v2156
      %v2627 = vsel %vm2612, %v2372, %v2157
      %v2628 = vsel %vm2612, %v2382, %v2158
      %v2629 = vsel %vm2612, %v2396, %v2159
      %v2630 = vsel %vm2612, %v2406, %v2160
      %v2631 = vsel %vm2612, %v2420, %v2161
      %v2632 = vsel %vm2612, %v2430, %v2162
      %v2633 = vsel %vm2612, %v2444, %v2163
      %v2634 = vsel %vm2612, %v2454, %v2164
      %v2635 = vsel %vm2612, %v2468, %v2165
      %v2636 = vsel %vm2612, %v2478, %v2166
      %v2637 = vsel %vm2612, %v2492, %v2167
      %v2638 = vsel %vm2612, %v2502, %v2168
      %v2639 = vsel %vm2612, %v2516, %v2169
      %v2640 = vsel %vm2612, %v2526, %v2170
      %v2641 = vsel %vm2612, %v2540, %v2171
      %v2642 = vsel %vm2612, %v2550, %v2172
      %v2643 = vsel %vm2612, %v2564, %v2173
      %v2644 = vsel %vm2612, %v2574, %v2174
      %v2645 = vld [vmem:[%s2104] sm:$0xe]
      %v2646 = vld [vmem:[%s2104 + $0xc] sm:$0xe]
      %v2647 = vld [vmem:[%s2104 + $0x18] sm:$0xe]
      %v2648 = vld [vmem:[%s2104 + $0x24] sm:$0xe]
      %v2649 = vld [vmem:[%s2104 + $0x30] sm:$0xe]
      %v2650 = vld [vmem:[%s2104 + $0x3c] sm:$0xe]
      %v2651 = vld [vmem:[%s2104 + $0x48] sm:$0xe]
      %v2652 = vld [vmem:[%s2104 + $0x54] sm:$0xe]
      %v2653 = vld [vmem:[%s2104 + $0x60] sm:$0xe]
      %v2654 = vld [vmem:[%s2104 + $0x6c] sm:$0xe]
      %v2655 = vld [vmem:[%s2104 + $0x78] sm:$0xe]
      %v2656 = vld [vmem:[%s2104 + $0x84] sm:$0xe]
      %v2657 = vld [vmem:[%s2104 + $0x90] sm:$0xe]
      %v2658 = vld [vmem:[%s2104 + $0x9c] sm:$0xe]
      %v2659 = vld [vmem:[%s2104 + $0xa8] sm:$0xe]
      %v2660 = vld [vmem:[%s2104 + $0xb4] sm:$0xe]
      %v2709 = vrot.slane %v2645, 5
      %v2710 = vrot.slane %v2709, 4
      %v2711 = vrot.slane %v2106, 5
      %v2712 = vsel %vm1134, %v2710, %v2711
      %v2713 = vrot.slane %v2711, 4
      %v2714 = vrot.slane %v2175, 5
      %v2715 = vsel %vm1134, %v2713, %v2714
      %v2716 = vrot.slane %v2646, 5
      %v2717 = vrot.slane %v2716, 4
      %v2718 = vrot.slane %v2108, 5
      %v2719 = vsel %vm1134, %v2717, %v2718
      %v2720 = vrot.slane %v2718, 4
      %v2721 = vrot.slane %v2176, 5
      %v2722 = vsel %vm1134, %v2720, %v2721
      %v2723 = vrot.slane %v2647, 5
      %v2724 = vrot.slane %v2723, 4
      %v2725 = vrot.slane %v2110, 5
      %v2726 = vsel %vm1134, %v2724, %v2725
      %v2727 = vrot.slane %v2725, 4
      %v2728 = vrot.slane %v2177, 5
      %v2729 = vsel %vm1134, %v2727, %v2728
      %v2730 = vrot.slane %v2648, 5
      %v2731 = vrot.slane %v2730, 4
      %v2732 = vrot.slane %v2112, 5
      %v2733 = vsel %vm1134, %v2731, %v2732
      %v2734 = vrot.slane %v2732, 4
      %v2735 = vrot.slane %v2178, 5
      %v2736 = vsel %vm1134, %v2734, %v2735
      %v2737 = vrot.slane %v2649, 5
      %v2738 = vrot.slane %v2737, 4
      %v2739 = vrot.slane %v2114, 5
      %v2740 = vsel %vm1134, %v2738, %v2739
      %v2741 = vrot.slane %v2739, 4
      %v2742 = vrot.slane %v2179, 5
      %v2743 = vsel %vm1134, %v2741, %v2742
      %v2744 = vrot.slane %v2650, 5
      %v2745 = vrot.slane %v2744, 4
      %v2746 = vrot.slane %v2116, 5
      %v2747 = vsel %vm1134, %v2745, %v2746
      %v2748 = vrot.slane %v2746, 4
      %v2749 = vrot.slane %v2180, 5
      %v2750 = vsel %vm1134, %v2748, %v2749
      %v2751 = vrot.slane %v2651, 5
      %v2752 = vrot.slane %v2751, 4
      %v2753 = vrot.slane %v2118, 5
      %v2754 = vsel %vm1134, %v2752, %v2753
      %v2755 = vrot.slane %v2753, 4
      %v2756 = vrot.slane %v2181, 5
      %v2757 = vsel %vm1134, %v2755, %v2756
      %v2758 = vrot.slane %v2652, 5
      %v2759 = vrot.slane %v2758, 4
      %v2760 = vrot.slane %v2120, 5
      %v2761 = vsel %vm1134, %v2759, %v2760
      %v2762 = vrot.slane %v2760, 4
      %v2763 = vrot.slane %v2182, 5
      %v2764 = vsel %vm1134, %v2762, %v2763
      %v2765 = vrot.slane %v2653, 5
      %v2766 = vrot.slane %v2765, 4
      %v2767 = vrot.slane %v2122, 5
      %v2768 = vsel %vm1134, %v2766, %v2767
      %v2769 = vrot.slane %v2767, 4
      %v2770 = vrot.slane %v2183, 5
      %v2771 = vsel %vm1134, %v2769, %v2770
      %v2772 = vrot.slane %v2654, 5
      %v2773 = vrot.slane %v2772, 4
      %v2774 = vrot.slane %v2124, 5
      %v2775 = vsel %vm1134, %v2773, %v2774
      %v2776 = vrot.slane %v2774, 4
      %v2777 = vrot.slane %v2184, 5
      %v2778 = vsel %vm1134, %v2776, %v2777
      %v2779 = vrot.slane %v2655, 5
      %v2780 = vrot.slane %v2779, 4
      %v2781 = vrot.slane %v2126, 5
      %v2782 = vsel %vm1134, %v2780, %v2781
      %v2783 = vrot.slane %v2781, 4
      %v2784 = vrot.slane %v2185, 5
      %v2785 = vsel %vm1134, %v2783, %v2784
      %v2786 = vrot.slane %v2656, 5
      %v2787 = vrot.slane %v2786, 4
      %v2788 = vrot.slane %v2128, 5
      %v2789 = vsel %vm1134, %v2787, %v2788
      %v2790 = vrot.slane %v2788, 4
      %v2791 = vrot.slane %v2186, 5
      %v2792 = vsel %vm1134, %v2790, %v2791
      %v2793 = vrot.slane %v2657, 5
      %v2794 = vrot.slane %v2793, 4
      %v2795 = vrot.slane %v2130, 5
      %v2796 = vsel %vm1134, %v2794, %v2795
      %v2797 = vrot.slane %v2795, 4
      %v2798 = vrot.slane %v2187, 5
      %v2799 = vsel %vm1134, %v2797, %v2798
      %v2800 = vrot.slane %v2658, 5
      %v2801 = vrot.slane %v2800, 4
      %v2802 = vrot.slane %v2132, 5
      %v2803 = vsel %vm1134, %v2801, %v2802
      %v2804 = vrot.slane %v2802, 4
      %v2805 = vrot.slane %v2188, 5
      %v2806 = vsel %vm1134, %v2804, %v2805
      %v2807 = vrot.slane %v2659, 5
      %v2808 = vrot.slane %v2807, 4
      %v2809 = vrot.slane %v2134, 5
      %v2810 = vsel %vm1134, %v2808, %v2809
      %v2811 = vrot.slane %v2809, 4
      %v2812 = vrot.slane %v2189, 5
      %v2813 = vsel %vm1134, %v2811, %v2812
      %v2814 = vrot.slane %v2660, 5
      %v2815 = vrot.slane %v2814, 4
      %v2816 = vrot.slane %v2136, 5
      %v2817 = vsel %vm1134, %v2815, %v2816
      %v2818 = vrot.slane %v2816, 4
      %v2819 = vrot.slane %v2190, 5
      %v2820 = vsel %vm1134, %v2818, %v2819
      %vm2853 = vcmp.ge.s32.totalorder %v254, 32
      %vm2854 = vcmp.lt.s32.totalorder %v254, 36
      %vm2855 = vmand %vm2853, %vm2854
      %v2856 = vsel %vm2855, 1, 0
      %vm2857 = vcmp.eq.s32.totalorder %v2856, 1
      %vm2858 = vmpackc.low %vm2857, %vm2857
      %v2859 = vsel %vm2858, %v2712, %v2613
      %v2860 = vsel %vm2858, %v2715, %v2614
      %v2861 = vsel %vm2858, %v2719, %v2615
      %v2862 = vsel %vm2858, %v2722, %v2616
      %v2863 = vsel %vm2858, %v2726, %v2617
      %v2864 = vsel %vm2858, %v2729, %v2618
      %v2865 = vsel %vm2858, %v2733, %v2619
      %v2866 = vsel %vm2858, %v2736, %v2620
      %v2867 = vsel %vm2858, %v2740, %v2621
      %v2868 = vsel %vm2858, %v2743, %v2622
      %v2869 = vsel %vm2858, %v2747, %v2623
      %v2870 = vsel %vm2858, %v2750, %v2624
      %v2871 = vsel %vm2858, %v2754, %v2625
      %v2872 = vsel %vm2858, %v2757, %v2626
      %v2873 = vsel %vm2858, %v2761, %v2627
      %v2874 = vsel %vm2858, %v2764, %v2628
      %v2875 = vsel %vm2858, %v2768, %v2629
      %v2876 = vsel %vm2858, %v2771, %v2630
      %v2877 = vsel %vm2858, %v2775, %v2631
      %v2878 = vsel %vm2858, %v2778, %v2632
      %v2879 = vsel %vm2858, %v2782, %v2633
      %v2880 = vsel %vm2858, %v2785, %v2634
      %v2881 = vsel %vm2858, %v2789, %v2635
      %v2882 = vsel %vm2858, %v2792, %v2636
      %v2883 = vsel %vm2858, %v2796, %v2637
      %v2884 = vsel %vm2858, %v2799, %v2638
      %v2885 = vsel %vm2858, %v2803, %v2639
      %v2886 = vsel %vm2858, %v2806, %v2640
      %v2887 = vsel %vm2858, %v2810, %v2641
      %v2888 = vsel %vm2858, %v2813, %v2642
      %v2889 = vsel %vm2858, %v2817, %v2643
      %v2890 = vsel %vm2858, %v2820, %v2644
      %v2891 = vld [vmem:[%s1] sm:$0xf]
      %v2892 = vld [vmem:[%s1 + $0x4] sm:$0xf]
      %v2893 = vld [vmem:[%s1 + $0x8] sm:$0xf]
      %v2894 = vld [vmem:[%s1 + $0xc] sm:$0xf]
      %v2895 = vld [vmem:[%s1 + $0x10] sm:$0xf]
      %v2896 = vld [vmem:[%s1 + $0x14] sm:$0xf]
      %v2897 = vld [vmem:[%s1 + $0x18] sm:$0xf]
      %v2898 = vld [vmem:[%s1 + $0x1c] sm:$0xf]
      %v2899 = vld [vmem:[%s1 + $0x20] sm:$0xf]
      %v2900 = vld [vmem:[%s1 + $0x24] sm:$0xf]
      %v2901 = vld [vmem:[%s1 + $0x28] sm:$0xf]
      %v2902 = vld [vmem:[%s1 + $0x2c] sm:$0xf]
      %v2903 = vld [vmem:[%s1 + $0x30] sm:$0xf]
      %v2904 = vld [vmem:[%s1 + $0x34] sm:$0xf]
      %v2905 = vld [vmem:[%s1 + $0x38] sm:$0xf]
      %v2906 = vld [vmem:[%s1 + $0x3c] sm:$0xf]
      %v2907 = vld [vmem:[%s2] sm:$0x1]
      %v2909 = vperm.slane %v2907, 0
      %v2943 = vunpack.c.l.b16 %v2859
      %v2944 = vunpack.c.l.b16 %v2860
      %v2945 = vunpack.c.l.b16 %v2861
      %v2946 = vunpack.c.l.b16 %v2862
      %v2947 = vunpack.c.l.b16 %v2863
      %v2948 = vunpack.c.l.b16 %v2864
      %v2949 = vunpack.c.l.b16 %v2865
      %v2950 = vunpack.c.l.b16 %v2866
      %v2951 = vunpack.c.l.b16 %v2867
      %v2952 = vunpack.c.l.b16 %v2868
      %v2953 = vunpack.c.l.b16 %v2869
      %v2954 = vunpack.c.l.b16 %v2870
      %v2955 = vunpack.c.l.b16 %v2871
      %v2956 = vunpack.c.l.b16 %v2872
      %v2957 = vunpack.c.l.b16 %v2873
      %v2958 = vunpack.c.l.b16 %v2874
      %v2959 = vunpack.c.l.b16 %v2875
      %v2960 = vunpack.c.l.b16 %v2876
      %v2961 = vunpack.c.l.b16 %v2877
      %v2962 = vunpack.c.l.b16 %v2878
      %v2963 = vunpack.c.l.b16 %v2879
      %v2964 = vunpack.c.l.b16 %v2880
      %v2965 = vunpack.c.l.b16 %v2881
      %v2966 = vunpack.c.l.b16 %v2882
      %v2967 = vunpack.c.l.b16 %v2883
      %v2968 = vunpack.c.l.b16 %v2884
      %v2969 = vunpack.c.l.b16 %v2885
      %v2970 = vunpack.c.l.b16 %v2886
      %v2971 = vunpack.c.l.b16 %v2887
      %v2972 = vunpack.c.l.b16 %v2888
      %v2973 = vunpack.c.l.b16 %v2889
      %v2974 = vunpack.c.l.b16 %v2890
      %v2975 = vpack.c.b16 %v2944, %v2943
      %v2976 = vpack.c.b16 %v2946, %v2945
      %v2977 = vpack.c.b16 %v2948, %v2947
      %v2978 = vpack.c.b16 %v2950, %v2949
      %v2979 = vpack.c.b16 %v2952, %v2951
      %v2980 = vpack.c.b16 %v2954, %v2953
      %v2981 = vpack.c.b16 %v2956, %v2955
      %v2982 = vpack.c.b16 %v2958, %v2957
      %v2983 = vpack.c.b16 %v2960, %v2959
      %v2984 = vpack.c.b16 %v2962, %v2961
      %v2985 = vpack.c.b16 %v2964, %v2963
      %v2986 = vpack.c.b16 %v2966, %v2965
      %v2987 = vpack.c.b16 %v2968, %v2967
      %v2988 = vpack.c.b16 %v2970, %v2969
      %v2989 = vpack.c.b16 %v2972, %v2971
      %v2990 = vpack.c.b16 %v2974, %v2973
      %v3023 = vunpack.c.l.b16 %v2891
      %v3024 = vunpack.c.l.b16 %v2892
      %v3025 = vunpack.c.l.b16 %v2893
      %v3026 = vunpack.c.l.b16 %v2894
      %v3027 = vunpack.c.l.b16 %v2895
      %v3028 = vunpack.c.l.b16 %v2896
      %v3029 = vunpack.c.l.b16 %v2897
      %v3030 = vunpack.c.l.b16 %v2898
      %v3031 = vunpack.c.l.b16 %v2899
      %v3032 = vunpack.c.l.b16 %v2900
      %v3033 = vunpack.c.l.b16 %v2901
      %v3034 = vunpack.c.l.b16 %v2902
      %v3035 = vunpack.c.l.b16 %v2903
      %v3036 = vunpack.c.l.b16 %v2904
      %v3037 = vunpack.c.l.b16 %v2905
      %v3038 = vunpack.c.l.b16 %v2906
      %v3039 = vpack.c.b16 %v3024, %v3023
      %v3040 = vpack.c.b16 %v3026, %v3025
      %v3041 = vpack.c.b16 %v3028, %v3027
      %v3042 = vpack.c.b16 %v3030, %v3029
      %v3043 = vpack.c.b16 %v3032, %v3031
      %v3044 = vpack.c.b16 %v3034, %v3033
      %v3045 = vpack.c.b16 %v3036, %v3035
      %v3046 = vpack.c.b16 %v3038, %v3037
      %3055 = vmatpush.bf16.msra.mxu0 %v3046
      %3056 = vmatpush.bf16.msra.mxu0 %v3045
      %3057 = vmatpush.bf16.msra.mxu0 %v3044
      %3058 = vmatpush.bf16.msra.mxu0 %v3043
      %3059 = vmatpush.bf16.msra.mxu0 %v3042
      %3060 = vmatpush.bf16.msra.mxu0 %v3041
      %3061 = vmatpush.bf16.msra.mxu0 %v3040
      %3062 = vmatpush.bf16.msra.mxu0 %v3039
      %3063 = vmatmul.bf16.gmra.mxu0 %v2975
      %v3064 = vpop.f32.mrf.mxu0
      %v3065 = vadd.f32 %v2909, %v3064
      %v3066 = vpop.f32.mrf.mxu0
      %v3067 = vadd.f32 %v2909, %v3066
      %3068 = vmatmul.bf16.gmra.mxu0 %v2976
      %v3069 = vpop.f32.mrf.mxu0
      %v3070 = vadd.f32 %v2909, %v3069
      %v3071 = vpop.f32.mrf.mxu0
      %v3072 = vadd.f32 %v2909, %v3071
      %3073 = vmatmul.bf16.gmra.mxu0 %v2977
      %v3074 = vpop.f32.mrf.mxu0
      %v3075 = vadd.f32 %v2909, %v3074
      %v3076 = vpop.f32.mrf.mxu0
      %v3077 = vadd.f32 %v2909, %v3076
      %3078 = vmatmul.bf16.gmra.mxu0 %v2978
      %v3079 = vpop.f32.mrf.mxu0
      %v3080 = vadd.f32 %v2909, %v3079
      %v3081 = vpop.f32.mrf.mxu0
      %v3082 = vadd.f32 %v2909, %v3081
      %3083 = vmatmul.bf16.gmra.mxu0 %v2979
      %v3084 = vpop.f32.mrf.mxu0
      %v3085 = vadd.f32 %v2909, %v3084
      %v3086 = vpop.f32.mrf.mxu0
      %v3087 = vadd.f32 %v2909, %v3086
      %3088 = vmatmul.bf16.gmra.mxu0 %v2980
      %v3089 = vpop.f32.mrf.mxu0
      %v3090 = vadd.f32 %v2909, %v3089
      %v3091 = vpop.f32.mrf.mxu0
      %v3092 = vadd.f32 %v2909, %v3091
      %3093 = vmatmul.bf16.gmra.mxu0 %v2981
      %v3094 = vpop.f32.mrf.mxu0
      %v3095 = vadd.f32 %v2909, %v3094
      %v3096 = vpop.f32.mrf.mxu0
      %v3097 = vadd.f32 %v2909, %v3096
      %3098 = vmatmul.bf16.gmra.mxu0 %v2982
      %v3099 = vpop.f32.mrf.mxu0
      %v3100 = vadd.f32 %v2909, %v3099
      %v3101 = vpop.f32.mrf.mxu0
      %v3102 = vadd.f32 %v2909, %v3101
      %3103 = vmatmul.bf16.gmra.mxu0 %v2983
      %v3104 = vpop.f32.mrf.mxu0
      %v3105 = vadd.f32 %v2909, %v3104
      %v3106 = vpop.f32.mrf.mxu0
      %v3107 = vadd.f32 %v2909, %v3106
      %3108 = vmatmul.bf16.gmra.mxu0 %v2984
      %v3109 = vpop.f32.mrf.mxu0
      %v3110 = vadd.f32 %v2909, %v3109
      %v3111 = vpop.f32.mrf.mxu0
      %v3112 = vadd.f32 %v2909, %v3111
      %3113 = vmatmul.bf16.gmra.mxu0 %v2985
      %v3114 = vpop.f32.mrf.mxu0
      %v3115 = vadd.f32 %v2909, %v3114
      %v3116 = vpop.f32.mrf.mxu0
      %v3117 = vadd.f32 %v2909, %v3116
      %3118 = vmatmul.bf16.gmra.mxu0 %v2986
      %v3119 = vpop.f32.mrf.mxu0
      %v3120 = vadd.f32 %v2909, %v3119
      %v3121 = vpop.f32.mrf.mxu0
      %v3122 = vadd.f32 %v2909, %v3121
      %3123 = vmatmul.bf16.gmra.mxu0 %v2987
      %v3124 = vpop.f32.mrf.mxu0
      %v3125 = vadd.f32 %v2909, %v3124
      %v3126 = vpop.f32.mrf.mxu0
      %v3127 = vadd.f32 %v2909, %v3126
      %3128 = vmatmul.bf16.gmra.mxu0 %v2988
      %v3129 = vpop.f32.mrf.mxu0
      %v3130 = vadd.f32 %v2909, %v3129
      %v3131 = vpop.f32.mrf.mxu0
      %v3132 = vadd.f32 %v2909, %v3131
      %3133 = vmatmul.bf16.gmra.mxu0 %v2989
      %v3134 = vpop.f32.mrf.mxu0
      %v3135 = vadd.f32 %v2909, %v3134
      %v3136 = vpop.f32.mrf.mxu0
      %v3137 = vadd.f32 %v2909, %v3136
      %3138 = vmatmul.bf16.gmra.mxu0 %v2990
      %v3139 = vpop.f32.mrf.mxu0
      %v3140 = vadd.f32 %v2909, %v3139
      %v3141 = vpop.f32.mrf.mxu0
      %v3142 = vadd.f32 %v2909, %v3141
      %3143 = vdwg.mxu0
      %v3144 = vmax.f32 %v3065, 0.0
      %v3145 = vmax.f32 %v3067, 0.0
      %v3146 = vmax.f32 %v3070, 0.0
      %v3147 = vmax.f32 %v3072, 0.0
      %v3148 = vmax.f32 %v3075, 0.0
      %v3149 = vmax.f32 %v3077, 0.0
      %v3150 = vmax.f32 %v3080, 0.0
      %v3151 = vmax.f32 %v3082, 0.0
      %v3152 = vmax.f32 %v3085, 0.0
      %v3153 = vmax.f32 %v3087, 0.0
      %v3154 = vmax.f32 %v3090, 0.0
      %v3155 = vmax.f32 %v3092, 0.0
      %v3156 = vmax.f32 %v3095, 0.0
      %v3157 = vmax.f32 %v3097, 0.0
      %v3158 = vmax.f32 %v3100, 0.0
      %v3159 = vmax.f32 %v3102, 0.0
      %v3160 = vmax.f32 %v3105, 0.0
      %v3161 = vmax.f32 %v3107, 0.0
      %v3162 = vmax.f32 %v3110, 0.0
      %v3163 = vmax.f32 %v3112, 0.0
      %v3164 = vmax.f32 %v3115, 0.0
      %v3165 = vmax.f32 %v3117, 0.0
      %v3166 = vmax.f32 %v3120, 0.0
      %v3167 = vmax.f32 %v3122, 0.0
      %v3168 = vmax.f32 %v3125, 0.0
      %v3169 = vmax.f32 %v3127, 0.0
      %v3170 = vmax.f32 %v3130, 0.0
      %v3171 = vmax.f32 %v3132, 0.0
      %v3172 = vmax.f32 %v3135, 0.0
      %v3173 = vmax.f32 %v3137, 0.0
      %v3174 = vmax.f32 %v3140, 0.0
      %v3175 = vmax.f32 %v3142, 0.0
      %v3176 = vpack.c.bf16 %v3144, %v3144
      %v3177 = vpack.c.bf16 %v3145, %v3145
      %v3178 = vpack.c.bf16 %v3146, %v3146
      %v3179 = vpack.c.bf16 %v3147, %v3147
      %v3180 = vpack.c.bf16 %v3148, %v3148
      %v3181 = vpack.c.bf16 %v3149, %v3149
      %v3182 = vpack.c.bf16 %v3150, %v3150
      %v3183 = vpack.c.bf16 %v3151, %v3151
      %v3184 = vpack.c.bf16 %v3152, %v3152
      %v3185 = vpack.c.bf16 %v3153, %v3153
      %v3186 = vpack.c.bf16 %v3154, %v3154
      %v3187 = vpack.c.bf16 %v3155, %v3155
      %v3188 = vpack.c.bf16 %v3156, %v3156
      %v3189 = vpack.c.bf16 %v3157, %v3157
      %v3190 = vpack.c.bf16 %v3158, %v3158
      %v3191 = vpack.c.bf16 %v3159, %v3159
      %v3192 = vpack.c.bf16 %v3160, %v3160
      %v3193 = vpack.c.bf16 %v3161, %v3161
      %v3194 = vpack.c.bf16 %v3162, %v3162
      %v3195 = vpack.c.bf16 %v3163, %v3163
      %v3196 = vpack.c.bf16 %v3164, %v3164
      %v3197 = vpack.c.bf16 %v3165, %v3165
      %v3198 = vpack.c.bf16 %v3166, %v3166
      %v3199 = vpack.c.bf16 %v3167, %v3167
      %v3200 = vpack.c.bf16 %v3168, %v3168
      %v3201 = vpack.c.bf16 %v3169, %v3169
      %v3202 = vpack.c.bf16 %v3170, %v3170
      %v3203 = vpack.c.bf16 %v3171, %v3171
      %v3204 = vpack.c.bf16 %v3172, %v3172
      %v3205 = vpack.c.bf16 %v3173, %v3173
      %v3206 = vpack.c.bf16 %v3174, %v3174
      %v3207 = vpack.c.bf16 %v3175, %v3175
      %vm3208 = vsmask.f32 256
      %vm3209 = vsmask.f32 4368
      %vm3210 = vmor %vm3208, %vm3209
      %v3212 = vshrl.u32 %v3176, 16
      %v3214 = vrot.slane %v3212, 7
      %v3215 = vshll.u32 %v3176, 16
      %v3217 = vor.u32 %v3214, %v3215
      %v3218 = vrot.slane %v3214, 4
      %v3220 = vshrl.u32 %v3177, 16
      %v3222 = vrot.slane %v3220, 7
      %v3223 = vshll.u32 %v3177, 16
      %v3225 = vor.u32 %v3222, %v3223
      %v3226 = vsel %vm3210, %v3218, %v3225
      %v3227 = vrot.slane %v3222, 4
      %v3229 = vshrl.u32 %v3178, 16
      %v3231 = vrot.slane %v3229, 7
      %v3232 = vshll.u32 %v3178, 16
      %v3234 = vor.u32 %v3231, %v3232
      %v3235 = vrot.slane %v3231, 4
      %v3237 = vshrl.u32 %v3179, 16
      %v3239 = vrot.slane %v3237, 7
      %v3240 = vshll.u32 %v3179, 16
      %v3242 = vor.u32 %v3239, %v3240
      %v3243 = vsel %vm3210, %v3235, %v3242
      %v3244 = vrot.slane %v3239, 4
      %v3246 = vshrl.u32 %v3180, 16
      %v3248 = vrot.slane %v3246, 7
      %v3249 = vshll.u32 %v3180, 16
      %v3251 = vor.u32 %v3248, %v3249
      %v3252 = vrot.slane %v3248, 4
      %v3254 = vshrl.u32 %v3181, 16
      %v3256 = vrot.slane %v3254, 7
      %v3257 = vshll.u32 %v3181, 16
      %v3259 = vor.u32 %v3256, %v3257
      %v3260 = vsel %vm3210, %v3252, %v3259
      %v3261 = vrot.slane %v3256, 4
      %v3263 = vshrl.u32 %v3182, 16
      %v3265 = vrot.slane %v3263, 7
      %v3266 = vshll.u32 %v3182, 16
      %v3268 = vor.u32 %v3265, %v3266
      %v3269 = vrot.slane %v3265, 4
      %v3271 = vshrl.u32 %v3183, 16
      %v3273 = vrot.slane %v3271, 7
      %v3274 = vshll.u32 %v3183, 16
      %v3276 = vor.u32 %v3273, %v3274
      %v3277 = vsel %vm3210, %v3269, %v3276
      %v3278 = vrot.slane %v3273, 4
      %v3280 = vshrl.u32 %v3184, 16
      %v3282 = vrot.slane %v3280, 7
      %v3283 = vshll.u32 %v3184, 16
      %v3285 = vor.u32 %v3282, %v3283
      %v3286 = vrot.slane %v3282, 4
      %v3288 = vshrl.u32 %v3185, 16
      %v3290 = vrot.slane %v3288, 7
      %v3291 = vshll.u32 %v3185, 16
      %v3293 = vor.u32 %v3290, %v3291
      %v3294 = vsel %vm3210, %v3286, %v3293
      %v3295 = vrot.slane %v3290, 4
      %v3297 = vshrl.u32 %v3186, 16
      %v3299 = vrot.slane %v3297, 7
      %v3300 = vshll.u32 %v3186, 16
      %v3302 = vor.u32 %v3299, %v3300
      %v3303 = vrot.slane %v3299, 4
      %v3305 = vshrl.u32 %v3187, 16
      %v3307 = vrot.slane %v3305, 7
      %v3308 = vshll.u32 %v3187, 16
      %v3310 = vor.u32 %v3307, %v3308
      %v3311 = vsel %vm3210, %v3303, %v3310
      %v3312 = vrot.slane %v3307, 4
      %v3314 = vshrl.u32 %v3188, 16
      %v3316 = vrot.slane %v3314, 7
      %v3317 = vshll.u32 %v3188, 16
      %v3319 = vor.u32 %v3316, %v3317
      %v3320 = vrot.slane %v3316, 4
      %v3322 = vshrl.u32 %v3189, 16
      %v3324 = vrot.slane %v3322, 7
      %v3325 = vshll.u32 %v3189, 16
      %v3327 = vor.u32 %v3324, %v3325
      %v3328 = vsel %vm3210, %v3320, %v3327
      %v3329 = vrot.slane %v3324, 4
      %v3331 = vshrl.u32 %v3190, 16
      %v3333 = vrot.slane %v3331, 7
      %v3334 = vshll.u32 %v3190, 16
      %v3336 = vor.u32 %v3333, %v3334
      %v3337 = vrot.slane %v3333, 4
      %v3339 = vshrl.u32 %v3191, 16
      %v3341 = vrot.slane %v3339, 7
      %v3342 = vshll.u32 %v3191, 16
      %v3344 = vor.u32 %v3341, %v3342
      %v3345 = vsel %vm3210, %v3337, %v3344
      %v3346 = vrot.slane %v3341, 4
      %v3348 = vshrl.u32 %v3192, 16
      %v3350 = vrot.slane %v3348, 7
      %v3351 = vshll.u32 %v3192, 16
      %v3353 = vor.u32 %v3350, %v3351
      %v3354 = vrot.slane %v3350, 4
      %v3356 = vshrl.u32 %v3193, 16
      %v3358 = vrot.slane %v3356, 7
      %v3359 = vshll.u32 %v3193, 16
      %v3361 = vor.u32 %v3358, %v3359
      %v3362 = vsel %vm3210, %v3354, %v3361
      %v3363 = vrot.slane %v3358, 4
      %v3365 = vshrl.u32 %v3194, 16
      %v3367 = vrot.slane %v3365, 7
      %v3368 = vshll.u32 %v3194, 16
      %v3370 = vor.u32 %v3367, %v3368
      %v3371 = vrot.slane %v3367, 4
      %v3373 = vshrl.u32 %v3195, 16
      %v3375 = vrot.slane %v3373, 7
      %v3376 = vshll.u32 %v3195, 16
      %v3378 = vor.u32 %v3375, %v3376
      %v3379 = vsel %vm3210, %v3371, %v3378
      %v3380 = vrot.slane %v3375, 4
      %v3382 = vshrl.u32 %v3196, 16
      %v3384 = vrot.slane %v3382, 7
      %v3385 = vshll.u32 %v3196, 16
      %v3387 = vor.u32 %v3384, %v3385
      %v3388 = vrot.slane %v3384, 4
      %v3390 = vshrl.u32 %v3197, 16
      %v3392 = vrot.slane %v3390, 7
      %v3393 = vshll.u32 %v3197, 16
      %v3395 = vor.u32 %v3392, %v3393
      %v3396 = vsel %vm3210, %v3388, %v3395
      %v3397 = vrot.slane %v3392, 4
      %v3399 = vshrl.u32 %v3198, 16
      %v3401 = vrot.slane %v3399, 7
      %v3402 = vshll.u32 %v3198, 16
      %v3404 = vor.u32 %v3401, %v3402
      %v3405 = vrot.slane %v3401, 4
      %v3407 = vshrl.u32 %v3199, 16
      %v3409 = vrot.slane %v3407, 7
      %v3410 = vshll.u32 %v3199, 16
      %v3412 = vor.u32 %v3409, %v3410
      %v3413 = vsel %vm3210, %v3405, %v3412
      %v3414 = vrot.slane %v3409, 4
      %v3416 = vshrl.u32 %v3200, 16
      %v3418 = vrot.slane %v3416, 7
      %v3419 = vshll.u32 %v3200, 16
      %v3421 = vor.u32 %v3418, %v3419
      %v3422 = vrot.slane %v3418, 4
      %v3424 = vshrl.u32 %v3201, 16
      %v3426 = vrot.slane %v3424, 7
      %v3427 = vshll.u32 %v3201, 16
      %v3429 = vor.u32 %v3426, %v3427
      %v3430 = vsel %vm3210, %v3422, %v3429
      %v3431 = vrot.slane %v3426, 4
      %v3433 = vshrl.u32 %v3202, 16
      %v3435 = vrot.slane %v3433, 7
      %v3436 = vshll.u32 %v3202, 16
      %v3438 = vor.u32 %v3435, %v3436
      %v3439 = vrot.slane %v3435, 4
      %v3441 = vshrl.u32 %v3203, 16
      %v3443 = vrot.slane %v3441, 7
      %v3444 = vshll.u32 %v3203, 16
      %v3446 = vor.u32 %v3443, %v3444
      %v3447 = vsel %vm3210, %v3439, %v3446
      %v3448 = vrot.slane %v3443, 4
      %v3450 = vshrl.u32 %v3204, 16
      %v3452 = vrot.slane %v3450, 7
      %v3453 = vshll.u32 %v3204, 16
      %v3455 = vor.u32 %v3452, %v3453
      %v3456 = vrot.slane %v3452, 4
      %v3458 = vshrl.u32 %v3205, 16
      %v3460 = vrot.slane %v3458, 7
      %v3461 = vshll.u32 %v3205, 16
      %v3463 = vor.u32 %v3460, %v3461
      %v3464 = vsel %vm3210, %v3456, %v3463
      %v3465 = vrot.slane %v3460, 4
      %v3467 = vshrl.u32 %v3206, 16
      %v3469 = vrot.slane %v3467, 7
      %v3470 = vshll.u32 %v3206, 16
      %v3472 = vor.u32 %v3469, %v3470
      %v3473 = vrot.slane %v3469, 4
      %v3475 = vshrl.u32 %v3207, 16
      %v3477 = vrot.slane %v3475, 7
      %v3478 = vshll.u32 %v3207, 16
      %v3480 = vor.u32 %v3477, %v3478
      %v3481 = vsel %vm3210, %v3473, %v3480
      %v3482 = vrot.slane %v3477, 4
      %vm3531 = vcmask 1043456
      %vm3532 = vsmask.f32 7938
      %vm3533 = vmand %vm3531, %vm3532
      %v3534 = vsel %vm3533, %v3217, %v1318
      %3535 = vst [vmem:[%s1317] sm:$0xf] %v3534
      %3536 = vst [vmem:[%s1317 + $0x4] sm:$0xf] %v3226
      %vm3537 = vcmask 1040384
      %vm3538 = vmand %vm3537, %vm3208
      %v3539 = vld [vmem:[%s1317 + $0x8] sm:$0x1]
      %v3540 = vsel %vm3538, %v3227, %v3539
      %3541 = vst [vmem:[%s1317 + $0x8] sm:$0x1] %v3540
      %v3542 = vld [vmem:[%s1317 + $0xc] sm:$0xf]
      %v3543 = vsel %vm3533, %v3234, %v3542
      %3544 = vst [vmem:[%s1317 + $0xc] sm:$0xf] %v3543
      %3545 = vst [vmem:[%s1317 + $0x10] sm:$0xf] %v3243
      %v3546 = vld [vmem:[%s1317 + $0x14] sm:$0x1]
      %v3547 = vsel %vm3538, %v3244, %v3546
      %3548 = vst [vmem:[%s1317 + $0x14] sm:$0x1] %v3547
      %v3549 = vld [vmem:[%s1317 + $0x18] sm:$0xf]
      %v3550 = vsel %vm3533, %v3251, %v3549
      %3551 = vst [vmem:[%s1317 + $0x18] sm:$0xf] %v3550
      %3552 = vst [vmem:[%s1317 + $0x1c] sm:$0xf] %v3260
      %v3553 = vld [vmem:[%s1317 + $0x20] sm:$0x1]
      %v3554 = vsel %vm3538, %v3261, %v3553
      %3555 = vst [vmem:[%s1317 + $0x20] sm:$0x1] %v3554
      %v3556 = vld [vmem:[%s1317 + $0x24] sm:$0xf]
      %v3557 = vsel %vm3533, %v3268, %v3556
      %3558 = vst [vmem:[%s1317 + $0x24] sm:$0xf] %v3557
      %3559 = vst [vmem:[%s1317 + $0x28] sm:$0xf] %v3277
      %v3560 = vld [vmem:[%s1317 + $0x2c] sm:$0x1]
      %v3561 = vsel %vm3538, %v3278, %v3560
      %3562 = vst [vmem:[%s1317 + $0x2c] sm:$0x1] %v3561
      %v3563 = vld [vmem:[%s1317 + $0x30] sm:$0xf]
      %v3564 = vsel %vm3533, %v3285, %v3563
      %3565 = vst [vmem:[%s1317 + $0x30] sm:$0xf] %v3564
      %3566 = vst [vmem:[%s1317 + $0x34] sm:$0xf] %v3294
      %v3567 = vld [vmem:[%s1317 + $0x38] sm:$0x1]
      %v3568 = vsel %vm3538, %v3295, %v3567
      %3569 = vst [vmem:[%s1317 + $0x38] sm:$0x1] %v3568
      %v3570 = vld [vmem:[%s1317 + $0x3c] sm:$0xf]
      %v3571 = vsel %vm3533, %v3302, %v3570
      %3572 = vst [vmem:[%s1317 + $0x3c] sm:$0xf] %v3571
      %3573 = vst [vmem:[%s1317 + $0x40] sm:$0xf] %v3311
      %v3574 = vld [vmem:[%s1317 + $0x44] sm:$0x1]
      %v3575 = vsel %vm3538, %v3312, %v3574
      %3576 = vst [vmem:[%s1317 + $0x44] sm:$0x1] %v3575
      %v3577 = vld [vmem:[%s1317 + $0x48] sm:$0xf]
      %v3578 = vsel %vm3533, %v3319, %v3577
      %3579 = vst [vmem:[%s1317 + $0x48] sm:$0xf] %v3578
      %3580 = vst [vmem:[%s1317 + $0x4c] sm:$0xf] %v3328
      %v3581 = vld [vmem:[%s1317 + $0x50] sm:$0x1]
      %v3582 = vsel %vm3538, %v3329, %v3581
      %3583 = vst [vmem:[%s1317 + $0x50] sm:$0x1] %v3582
      %v3584 = vld [vmem:[%s1317 + $0x54] sm:$0xf]
      %v3585 = vsel %vm3533, %v3336, %v3584
      %3586 = vst [vmem:[%s1317 + $0x54] sm:$0xf] %v3585
      %3587 = vst [vmem:[%s1317 + $0x58] sm:$0xf] %v3345
      %v3588 = vld [vmem:[%s1317 + $0x5c] sm:$0x1]
      %v3589 = vsel %vm3538, %v3346, %v3588
      %3590 = vst [vmem:[%s1317 + $0x5c] sm:$0x1] %v3589
      %v3591 = vld [vmem:[%s1317 + $0x60] sm:$0xf]
      %v3592 = vsel %vm3533, %v3353, %v3591
      %3593 = vst [vmem:[%s1317 + $0x60] sm:$0xf] %v3592
      %3594 = vst [vmem:[%s1317 + $0x64] sm:$0xf] %v3362
      %v3595 = vld [vmem:[%s1317 + $0x68] sm:$0x1]
      %v3596 = vsel %vm3538, %v3363, %v3595
      %3597 = vst [vmem:[%s1317 + $0x68] sm:$0x1] %v3596
      %v3598 = vld [vmem:[%s1317 + $0x6c] sm:$0xf]
      %v3599 = vsel %vm3533, %v3370, %v3598
      %3600 = vst [vmem:[%s1317 + $0x6c] sm:$0xf] %v3599
      %3601 = vst [vmem:[%s1317 + $0x70] sm:$0xf] %v3379
      %v3602 = vld [vmem:[%s1317 + $0x74] sm:$0x1]
      %v3603 = vsel %vm3538, %v3380, %v3602
      %3604 = vst [vmem:[%s1317 + $0x74] sm:$0x1] %v3603
      %v3605 = vld [vmem:[%s1317 + $0x78] sm:$0xf]
      %v3606 = vsel %vm3533, %v3387, %v3605
      %3607 = vst [vmem:[%s1317 + $0x78] sm:$0xf] %v3606
      %3608 = vst [vmem:[%s1317 + $0x7c] sm:$0xf] %v3396
      %v3609 = vld [vmem:[%s1317 + $0x80] sm:$0x1]
      %v3610 = vsel %vm3538, %v3397, %v3609
      %3611 = vst [vmem:[%s1317 + $0x80] sm:$0x1] %v3610
      %v3612 = vld [vmem:[%s1317 + $0x84] sm:$0xf]
      %v3613 = vsel %vm3533, %v3404, %v3612
      %3614 = vst [vmem:[%s1317 + $0x84] sm:$0xf] %v3613
      %3615 = vst [vmem:[%s1317 + $0x88] sm:$0xf] %v3413
      %v3616 = vld [vmem:[%s1317 + $0x8c] sm:$0x1]
      %v3617 = vsel %vm3538, %v3414, %v3616
      %3618 = vst [vmem:[%s1317 + $0x8c] sm:$0x1] %v3617
      %v3619 = vld [vmem:[%s1317 + $0x90] sm:$0xf]
      %v3620 = vsel %vm3533, %v3421, %v3619
      %3621 = vst [vmem:[%s1317 + $0x90] sm:$0xf] %v3620
      %3622 = vst [vmem:[%s1317 + $0x94] sm:$0xf] %v3430
      %v3623 = vld [vmem:[%s1317 + $0x98] sm:$0x1]
      %v3624 = vsel %vm3538, %v3431, %v3623
      %3625 = vst [vmem:[%s1317 + $0x98] sm:$0x1] %v3624
      %v3626 = vld [vmem:[%s1317 + $0x9c] sm:$0xf]
      %v3627 = vsel %vm3533, %v3438, %v3626
      %3628 = vst [vmem:[%s1317 + $0x9c] sm:$0xf] %v3627
      %3629 = vst [vmem:[%s1317 + $0xa0] sm:$0xf] %v3447
      %v3630 = vld [vmem:[%s1317 + $0xa4] sm:$0x1]
      %v3631 = vsel %vm3538, %v3448, %v3630
      %3632 = vst [vmem:[%s1317 + $0xa4] sm:$0x1] %v3631
      %v3633 = vld [vmem:[%s1317 + $0xa8] sm:$0xf]
      %v3634 = vsel %vm3533, %v3455, %v3633
      %3635 = vst [vmem:[%s1317 + $0xa8] sm:$0xf] %v3634
      %3636 = vst [vmem:[%s1317 + $0xac] sm:$0xf] %v3464
      %v3637 = vld [vmem:[%s1317 + $0xb0] sm:$0x1]
      %v3638 = vsel %vm3538, %v3465, %v3637
      %3639 = vst [vmem:[%s1317 + $0xb0] sm:$0x1] %v3638
      %v3640 = vld [vmem:[%s1317 + $0xb4] sm:$0xf]
      %v3641 = vsel %vm3533, %v3472, %v3640
      %3642 = vst [vmem:[%s1317 + $0xb4] sm:$0xf] %v3641
      %3643 = vst [vmem:[%s1317 + $0xb8] sm:$0xf] %v3481
      %v3644 = vld [vmem:[%s1317 + $0xbc] sm:$0x1]
      %v3645 = vsel %vm3538, %v3482, %v3644
      %3646 = vst [vmem:[%s1317 + $0xbc] sm:$0x1] %v3645
      %v3647 = vld [vmem:[#allocation2] sm:$0xf]
      %v3648 = vld [vmem:[#allocation2 + $0x4] sm:$0xf]
      %v3649 = vld [vmem:[#allocation2 + $0xc] sm:$0xf]
      %v3650 = vld [vmem:[#allocation2 + $0x10] sm:$0xf]
      %v3651 = vld [vmem:[#allocation2 + $0x18] sm:$0xf]
      %v3652 = vld [vmem:[#allocation2 + $0x1c] sm:$0xf]
      %v3653 = vld [vmem:[#allocation2 + $0x24] sm:$0xf]
      %v3654 = vld [vmem:[#allocation2 + $0x28] sm:$0xf]
      %v3655 = vld [vmem:[#allocation2 + $0x30] sm:$0xf]
      %v3656 = vld [vmem:[#allocation2 + $0x34] sm:$0xf]
      %v3657 = vld [vmem:[#allocation2 + $0x3c] sm:$0xf]
      %v3658 = vld [vmem:[#allocation2 + $0x40] sm:$0xf]
      %v3659 = vld [vmem:[#allocation2 + $0x48] sm:$0xf]
      %v3660 = vld [vmem:[#allocation2 + $0x4c] sm:$0xf]
      %v3661 = vld [vmem:[#allocation2 + $0x54] sm:$0xf]
      %v3662 = vld [vmem:[#allocation2 + $0x58] sm:$0xf]
      %v3663 = vld [vmem:[#allocation2 + $0x60] sm:$0xf]
      %v3664 = vld [vmem:[#allocation2 + $0x64] sm:$0xf]
      %v3665 = vld [vmem:[#allocation2 + $0x6c] sm:$0xf]
      %v3666 = vld [vmem:[#allocation2 + $0x70] sm:$0xf]
      %v3667 = vld [vmem:[#allocation2 + $0x78] sm:$0xf]
      %v3668 = vld [vmem:[#allocation2 + $0x7c] sm:$0xf]
      %v3669 = vld [vmem:[#allocation2 + $0x84] sm:$0xf]
      %v3670 = vld [vmem:[#allocation2 + $0x88] sm:$0xf]
      %v3671 = vld [vmem:[#allocation2 + $0x90] sm:$0xf]
      %v3672 = vld [vmem:[#allocation2 + $0x94] sm:$0xf]
      %v3673 = vld [vmem:[#allocation2 + $0x9c] sm:$0xf]
      %v3674 = vld [vmem:[#allocation2 + $0xa0] sm:$0xf]
      %v3675 = vld [vmem:[#allocation2 + $0xa8] sm:$0xf]
      %v3676 = vld [vmem:[#allocation2 + $0xac] sm:$0xf]
      %v3677 = vld [vmem:[#allocation2 + $0xb4] sm:$0xf]
      %v3678 = vld [vmem:[#allocation2 + $0xb8] sm:$0xf]
      %vm3679 = vmand %vm557, %vm1031
      %v3680 = vsel %vm3679, 1, 0
      %vm3681 = vcmp.eq.s32.totalorder %v3680, 1
      %vm3682 = vmpackc.low %vm3681, %vm3681
      %v3683 = vsel %vm3682, %v3647, 0
      %v3684 = vsel %vm3682, %v3648, 0
      %v3685 = vsel %vm3682, %v3649, 0
      %v3686 = vsel %vm3682, %v3650, 0
      %v3687 = vsel %vm3682, %v3651, 0
      %v3688 = vsel %vm3682, %v3652, 0
      %v3689 = vsel %vm3682, %v3653, 0
      %v3690 = vsel %vm3682, %v3654, 0
      %v3691 = vsel %vm3682, %v3655, 0
      %v3692 = vsel %vm3682, %v3656, 0
      %v3693 = vsel %vm3682, %v3657, 0
      %v3694 = vsel %vm3682, %v3658, 0
      %v3695 = vsel %vm3682, %v3659, 0
      %v3696 = vsel %vm3682, %v3660, 0
      %v3697 = vsel %vm3682, %v3661, 0
      %v3698 = vsel %vm3682, %v3662, 0
      %v3699 = vsel %vm3682, %v3663, 0
      %v3700 = vsel %vm3682, %v3664, 0
      %v3701 = vsel %vm3682, %v3665, 0
      %v3702 = vsel %vm3682, %v3666, 0
      %v3703 = vsel %vm3682, %v3667, 0
      %v3704 = vsel %vm3682, %v3668, 0
      %v3705 = vsel %vm3682, %v3669, 0
      %v3706 = vsel %vm3682, %v3670, 0
      %v3707 = vsel %vm3682, %v3671, 0
      %v3708 = vsel %vm3682, %v3672, 0
      %v3709 = vsel %vm3682, %v3673, 0
      %v3710 = vsel %vm3682, %v3674, 0
      %v3711 = vsel %vm3682, %v3675, 0
      %v3712 = vsel %vm3682, %v3676, 0
      %v3713 = vsel %vm3682, %v3677, 0
      %v3714 = vsel %vm3682, %v3678, 0
      %v3715 = vld [vmem:[#allocation2 + $0x8] sm:$0x1]
      %v3716 = vld [vmem:[#allocation2 + $0x14] sm:$0x1]
      %v3717 = vld [vmem:[#allocation2 + $0x20] sm:$0x1]
      %v3718 = vld [vmem:[#allocation2 + $0x2c] sm:$0x1]
      %v3719 = vld [vmem:[#allocation2 + $0x38] sm:$0x1]
      %v3720 = vld [vmem:[#allocation2 + $0x44] sm:$0x1]
      %v3721 = vld [vmem:[#allocation2 + $0x50] sm:$0x1]
      %v3722 = vld [vmem:[#allocation2 + $0x5c] sm:$0x1]
      %v3723 = vld [vmem:[#allocation2 + $0x68] sm:$0x1]
      %v3724 = vld [vmem:[#allocation2 + $0x74] sm:$0x1]
      %v3725 = vld [vmem:[#allocation2 + $0x80] sm:$0x1]
      %v3726 = vld [vmem:[#allocation2 + $0x8c] sm:$0x1]
      %v3727 = vld [vmem:[#allocation2 + $0x98] sm:$0x1]
      %v3728 = vld [vmem:[#allocation2 + $0xa4] sm:$0x1]
      %v3729 = vld [vmem:[#allocation2 + $0xb0] sm:$0x1]
      %v3730 = vld [vmem:[#allocation2 + $0xbc] sm:$0x1]
      %v3732 = vshrl.u32 %v3647, 16
      %v3734 = vrot.slane %v3732, 4
      %v3735 = vshll.u32 %v3647, 16
      %v3737 = vrot.slane %v3735, 5
      %v3738 = vor.u32 %v3734, %v3737
      %v3739 = vrot.slane %v3738, 4
      %v3741 = vshll.u32 %v3648, 16
      %v3743 = vrot.slane %v3741, 5
      %v3744 = vsel %vm613, %v3739, %v3743
      %v3745 = vshrl.u32 %v3648, 16
      %v3747 = vrot.slane %v3745, 4
      %v3748 = vor.u32 %v3747, %v3743
      %v3749 = vrot.slane %v3748, 4
      %v3751 = vshll.u32 %v3715, 16
      %v3753 = vrot.slane %v3751, 5
      %v3754 = vsel %vm613, %v3749, %v3753
      %v3756 = vshrl.u32 %v3649, 16
      %v3758 = vrot.slane %v3756, 4
      %v3759 = vshll.u32 %v3649, 16
      %v3761 = vrot.slane %v3759, 5
      %v3762 = vor.u32 %v3758, %v3761
      %v3763 = vrot.slane %v3762, 4
      %v3765 = vshll.u32 %v3650, 16
      %v3767 = vrot.slane %v3765, 5
      %v3768 = vsel %vm613, %v3763, %v3767
      %v3769 = vshrl.u32 %v3650, 16
      %v3771 = vrot.slane %v3769, 4
      %v3772 = vor.u32 %v3771, %v3767
      %v3773 = vrot.slane %v3772, 4
      %v3775 = vshll.u32 %v3716, 16
      %v3777 = vrot.slane %v3775, 5
      %v3778 = vsel %vm613, %v3773, %v3777
      %v3780 = vshrl.u32 %v3651, 16
      %v3782 = vrot.slane %v3780, 4
      %v3783 = vshll.u32 %v3651, 16
      %v3785 = vrot.slane %v3783, 5
      %v3786 = vor.u32 %v3782, %v3785
      %v3787 = vrot.slane %v3786, 4
      %v3789 = vshll.u32 %v3652, 16
      %v3791 = vrot.slane %v3789, 5
      %v3792 = vsel %vm613, %v3787, %v3791
      %v3793 = vshrl.u32 %v3652, 16
      %v3795 = vrot.slane %v3793, 4
      %v3796 = vor.u32 %v3795, %v3791
      %v3797 = vrot.slane %v3796, 4
      %v3799 = vshll.u32 %v3717, 16
      %v3801 = vrot.slane %v3799, 5
      %v3802 = vsel %vm613, %v3797, %v3801
      %v3804 = vshrl.u32 %v3653, 16
      %v3806 = vrot.slane %v3804, 4
      %v3807 = vshll.u32 %v3653, 16
      %v3809 = vrot.slane %v3807, 5
      %v3810 = vor.u32 %v3806, %v3809
      %v3811 = vrot.slane %v3810, 4
      %v3813 = vshll.u32 %v3654, 16
      %v3815 = vrot.slane %v3813, 5
      %v3816 = vsel %vm613, %v3811, %v3815
      %v3817 = vshrl.u32 %v3654, 16
      %v3819 = vrot.slane %v3817, 4
      %v3820 = vor.u32 %v3819, %v3815
      %v3821 = vrot.slane %v3820, 4
      %v3823 = vshll.u32 %v3718, 16
      %v3825 = vrot.slane %v3823, 5
      %v3826 = vsel %vm613, %v3821, %v3825
      %v3828 = vshrl.u32 %v3655, 16
      %v3830 = vrot.slane %v3828, 4
      %v3831 = vshll.u32 %v3655, 16
      %v3833 = vrot.slane %v3831, 5
      %v3834 = vor.u32 %v3830, %v3833
      %v3835 = vrot.slane %v3834, 4
      %v3837 = vshll.u32 %v3656, 16
      %v3839 = vrot.slane %v3837, 5
      %v3840 = vsel %vm613, %v3835, %v3839
      %v3841 = vshrl.u32 %v3656, 16
      %v3843 = vrot.slane %v3841, 4
      %v3844 = vor.u32 %v3843, %v3839
      %v3845 = vrot.slane %v3844, 4
      %v3847 = vshll.u32 %v3719, 16
      %v3849 = vrot.slane %v3847, 5
      %v3850 = vsel %vm613, %v3845, %v3849
      %v3852 = vshrl.u32 %v3657, 16
      %v3854 = vrot.slane %v3852, 4
      %v3855 = vshll.u32 %v3657, 16
      %v3857 = vrot.slane %v3855, 5
      %v3858 = vor.u32 %v3854, %v3857
      %v3859 = vrot.slane %v3858, 4
      %v3861 = vshll.u32 %v3658, 16
      %v3863 = vrot.slane %v3861, 5
      %v3864 = vsel %vm613, %v3859, %v3863
      %v3865 = vshrl.u32 %v3658, 16
      %v3867 = vrot.slane %v3865, 4
      %v3868 = vor.u32 %v3867, %v3863
      %v3869 = vrot.slane %v3868, 4
      %v3871 = vshll.u32 %v3720, 16
      %v3873 = vrot.slane %v3871, 5
      %v3874 = vsel %vm613, %v3869, %v3873
      %v3876 = vshrl.u32 %v3659, 16
      %v3878 = vrot.slane %v3876, 4
      %v3879 = vshll.u32 %v3659, 16
      %v3881 = vrot.slane %v3879, 5
      %v3882 = vor.u32 %v3878, %v3881
      %v3883 = vrot.slane %v3882, 4
      %v3885 = vshll.u32 %v3660, 16
      %v3887 = vrot.slane %v3885, 5
      %v3888 = vsel %vm613, %v3883, %v3887
      %v3889 = vshrl.u32 %v3660, 16
      %v3891 = vrot.slane %v3889, 4
      %v3892 = vor.u32 %v3891, %v3887
      %v3893 = vrot.slane %v3892, 4
      %v3895 = vshll.u32 %v3721, 16
      %v3897 = vrot.slane %v3895, 5
      %v3898 = vsel %vm613, %v3893, %v3897
      %v3900 = vshrl.u32 %v3661, 16
      %v3902 = vrot.slane %v3900, 4
      %v3903 = vshll.u32 %v3661, 16
      %v3905 = vrot.slane %v3903, 5
      %v3906 = vor.u32 %v3902, %v3905
      %v3907 = vrot.slane %v3906, 4
      %v3909 = vshll.u32 %v3662, 16
      %v3911 = vrot.slane %v3909, 5
      %v3912 = vsel %vm613, %v3907, %v3911
      %v3913 = vshrl.u32 %v3662, 16
      %v3915 = vrot.slane %v3913, 4
      %v3916 = vor.u32 %v3915, %v3911
      %v3917 = vrot.slane %v3916, 4
      %v3919 = vshll.u32 %v3722, 16
      %v3921 = vrot.slane %v3919, 5
      %v3922 = vsel %vm613, %v3917, %v3921
      %v3924 = vshrl.u32 %v3663, 16
      %v3926 = vrot.slane %v3924, 4
      %v3927 = vshll.u32 %v3663, 16
      %v3929 = vrot.slane %v3927, 5
      %v3930 = vor.u32 %v3926, %v3929
      %v3931 = vrot.slane %v3930, 4
      %v3933 = vshll.u32 %v3664, 16
      %v3935 = vrot.slane %v3933, 5
      %v3936 = vsel %vm613, %v3931, %v3935
      %v3937 = vshrl.u32 %v3664, 16
      %v3939 = vrot.slane %v3937, 4
      %v3940 = vor.u32 %v3939, %v3935
      %v3941 = vrot.slane %v3940, 4
      %v3943 = vshll.u32 %v3723, 16
      %v3945 = vrot.slane %v3943, 5
      %v3946 = vsel %vm613, %v3941, %v3945
      %v3948 = vshrl.u32 %v3665, 16
      %v3950 = vrot.slane %v3948, 4
      %v3951 = vshll.u32 %v3665, 16
      %v3953 = vrot.slane %v3951, 5
      %v3954 = vor.u32 %v3950, %v3953
      %v3955 = vrot.slane %v3954, 4
      %v3957 = vshll.u32 %v3666, 16
      %v3959 = vrot.slane %v3957, 5
      %v3960 = vsel %vm613, %v3955, %v3959
      %v3961 = vshrl.u32 %v3666, 16
      %v3963 = vrot.slane %v3961, 4
      %v3964 = vor.u32 %v3963, %v3959
      %v3965 = vrot.slane %v3964, 4
      %v3967 = vshll.u32 %v3724, 16
      %v3969 = vrot.slane %v3967, 5
      %v3970 = vsel %vm613, %v3965, %v3969
      %v3972 = vshrl.u32 %v3667, 16
      %v3974 = vrot.slane %v3972, 4
      %v3975 = vshll.u32 %v3667, 16
      %v3977 = vrot.slane %v3975, 5
      %v3978 = vor.u32 %v3974, %v3977
      %v3979 = vrot.slane %v3978, 4
      %v3981 = vshll.u32 %v3668, 16
      %v3983 = vrot.slane %v3981, 5
      %v3984 = vsel %vm613, %v3979, %v3983
      %v3985 = vshrl.u32 %v3668, 16
      %v3987 = vrot.slane %v3985, 4
      %v3988 = vor.u32 %v3987, %v3983
      %v3989 = vrot.slane %v3988, 4
      %v3991 = vshll.u32 %v3725, 16
      %v3993 = vrot.slane %v3991, 5
      %v3994 = vsel %vm613, %v3989, %v3993
      %v3996 = vshrl.u32 %v3669, 16
      %v3998 = vrot.slane %v3996, 4
      %v3999 = vshll.u32 %v3669, 16
      %v4001 = vrot.slane %v3999, 5
      %v4002 = vor.u32 %v3998, %v4001
      %v4003 = vrot.slane %v4002, 4
      %v4005 = vshll.u32 %v3670, 16
      %v4007 = vrot.slane %v4005, 5
      %v4008 = vsel %vm613, %v4003, %v4007
      %v4009 = vshrl.u32 %v3670, 16
      %v4011 = vrot.slane %v4009, 4
      %v4012 = vor.u32 %v4011, %v4007
      %v4013 = vrot.slane %v4012, 4
      %v4015 = vshll.u32 %v3726, 16
      %v4017 = vrot.slane %v4015, 5
      %v4018 = vsel %vm613, %v4013, %v4017
      %v4020 = vshrl.u32 %v3671, 16
      %v4022 = vrot.slane %v4020, 4
      %v4023 = vshll.u32 %v3671, 16
      %v4025 = vrot.slane %v4023, 5
      %v4026 = vor.u32 %v4022, %v4025
      %v4027 = vrot.slane %v4026, 4
      %v4029 = vshll.u32 %v3672, 16
      %v4031 = vrot.slane %v4029, 5
      %v4032 = vsel %vm613, %v4027, %v4031
      %v4033 = vshrl.u32 %v3672, 16
      %v4035 = vrot.slane %v4033, 4
      %v4036 = vor.u32 %v4035, %v4031
      %v4037 = vrot.slane %v4036, 4
      %v4039 = vshll.u32 %v3727, 16
      %v4041 = vrot.slane %v4039, 5
      %v4042 = vsel %vm613, %v4037, %v4041
      %v4044 = vshrl.u32 %v3673, 16
      %v4046 = vrot.slane %v4044, 4
      %v4047 = vshll.u32 %v3673, 16
      %v4049 = vrot.slane %v4047, 5
      %v4050 = vor.u32 %v4046, %v4049
      %v4051 = vrot.slane %v4050, 4
      %v4053 = vshll.u32 %v3674, 16
      %v4055 = vrot.slane %v4053, 5
      %v4056 = vsel %vm613, %v4051, %v4055
      %v4057 = vshrl.u32 %v3674, 16
      %v4059 = vrot.slane %v4057, 4
      %v4060 = vor.u32 %v4059, %v4055
      %v4061 = vrot.slane %v4060, 4
      %v4063 = vshll.u32 %v3728, 16
      %v4065 = vrot.slane %v4063, 5
      %v4066 = vsel %vm613, %v4061, %v4065
      %v4068 = vshrl.u32 %v3675, 16
      %v4070 = vrot.slane %v4068, 4
      %v4071 = vshll.u32 %v3675, 16
      %v4073 = vrot.slane %v4071, 5
      %v4074 = vor.u32 %v4070, %v4073
      %v4075 = vrot.slane %v4074, 4
      %v4077 = vshll.u32 %v3676, 16
      %v4079 = vrot.slane %v4077, 5
      %v4080 = vsel %vm613, %v4075, %v4079
      %v4081 = vshrl.u32 %v3676, 16
      %v4083 = vrot.slane %v4081, 4
      %v4084 = vor.u32 %v4083, %v4079
      %v4085 = vrot.slane %v4084, 4
      %v4087 = vshll.u32 %v3729, 16
      %v4089 = vrot.slane %v4087, 5
      %v4090 = vsel %vm613, %v4085, %v4089
      %v4092 = vshrl.u32 %v3677, 16
      %v4094 = vrot.slane %v4092, 4
      %v4095 = vshll.u32 %v3677, 16
      %v4097 = vrot.slane %v4095, 5
      %v4098 = vor.u32 %v4094, %v4097
      %v4099 = vrot.slane %v4098, 4
      %v4101 = vshll.u32 %v3678, 16
      %v4103 = vrot.slane %v4101, 5
      %v4104 = vsel %vm613, %v4099, %v4103
      %v4105 = vshrl.u32 %v3678, 16
      %v4107 = vrot.slane %v4105, 4
      %v4108 = vor.u32 %v4107, %v4103
      %v4109 = vrot.slane %v4108, 4
      %v4111 = vshll.u32 %v3730, 16
      %v4113 = vrot.slane %v4111, 5
      %v4114 = vsel %vm613, %v4109, %v4113
      %vm4147 = vmand %vm1279, %vm1351
      %v4148 = vsel %vm4147, 1, 0
      %vm4149 = vcmp.eq.s32.totalorder %v4148, 1
      %vm4150 = vmpackc.low %vm4149, %vm4149
      %v4151 = vsel %vm4150, %v3744, %v3683
      %v4152 = vsel %vm4150, %v3754, %v3684
      %v4153 = vsel %vm4150, %v3768, %v3685
      %v4154 = vsel %vm4150, %v3778, %v3686
      %v4155 = vsel %vm4150, %v3792, %v3687
      %v4156 = vsel %vm4150, %v3802, %v3688
      %v4157 = vsel %vm4150, %v3816, %v3689
      %v4158 = vsel %vm4150, %v3826, %v3690
      %v4159 = vsel %vm4150, %v3840, %v3691
      %v4160 = vsel %vm4150, %v3850, %v3692
      %v4161 = vsel %vm4150, %v3864, %v3693
      %v4162 = vsel %vm4150, %v3874, %v3694
      %v4163 = vsel %vm4150, %v3888, %v3695
      %v4164 = vsel %vm4150, %v3898, %v3696
      %v4165 = vsel %vm4150, %v3912, %v3697
      %v4166 = vsel %vm4150, %v3922, %v3698
      %v4167 = vsel %vm4150, %v3936, %v3699
      %v4168 = vsel %vm4150, %v3946, %v3700
      %v4169 = vsel %vm4150, %v3960, %v3701
      %v4170 = vsel %vm4150, %v3970, %v3702
      %v4171 = vsel %vm4150, %v3984, %v3703
      %v4172 = vsel %vm4150, %v3994, %v3704
      %v4173 = vsel %vm4150, %v4008, %v3705
      %v4174 = vsel %vm4150, %v4018, %v3706
      %v4175 = vsel %vm4150, %v4032, %v3707
      %v4176 = vsel %vm4150, %v4042, %v3708
      %v4177 = vsel %vm4150, %v4056, %v3709
      %v4178 = vsel %vm4150, %v4066, %v3710
      %v4179 = vsel %vm4150, %v4080, %v3711
      %v4180 = vsel %vm4150, %v4090, %v3712
      %v4181 = vsel %vm4150, %v4104, %v3713
      %v4182 = vsel %vm4150, %v4114, %v3714
      %v4183 = vld [vmem:[#allocation2] sm:$0xe]
      %v4184 = vld [vmem:[#allocation2 + $0xc] sm:$0xe]
      %v4185 = vld [vmem:[#allocation2 + $0x18] sm:$0xe]
      %v4186 = vld [vmem:[#allocation2 + $0x24] sm:$0xe]
      %v4187 = vld [vmem:[#allocation2 + $0x30] sm:$0xe]
      %v4188 = vld [vmem:[#allocation2 + $0x3c] sm:$0xe]
      %v4189 = vld [vmem:[#allocation2 + $0x48] sm:$0xe]
      %v4190 = vld [vmem:[#allocation2 + $0x54] sm:$0xe]
      %v4191 = vld [vmem:[#allocation2 + $0x60] sm:$0xe]
      %v4192 = vld [vmem:[#allocation2 + $0x6c] sm:$0xe]
      %v4193 = vld [vmem:[#allocation2 + $0x78] sm:$0xe]
      %v4194 = vld [vmem:[#allocation2 + $0x84] sm:$0xe]
      %v4195 = vld [vmem:[#allocation2 + $0x90] sm:$0xe]
      %v4196 = vld [vmem:[#allocation2 + $0x9c] sm:$0xe]
      %v4197 = vld [vmem:[#allocation2 + $0xa8] sm:$0xe]
      %v4198 = vld [vmem:[#allocation2 + $0xb4] sm:$0xe]
      %v4247 = vrot.slane %v4183, 5
      %v4248 = vrot.slane %v4247, 4
      %v4249 = vrot.slane %v3648, 5
      %v4250 = vsel %vm1134, %v4248, %v4249
      %v4251 = vrot.slane %v4249, 4
      %v4252 = vrot.slane %v3715, 5
      %v4253 = vsel %vm1134, %v4251, %v4252
      %v4254 = vrot.slane %v4184, 5
      %v4255 = vrot.slane %v4254, 4
      %v4256 = vrot.slane %v3650, 5
      %v4257 = vsel %vm1134, %v4255, %v4256
      %v4258 = vrot.slane %v4256, 4
      %v4259 = vrot.slane %v3716, 5
      %v4260 = vsel %vm1134, %v4258, %v4259
      %v4261 = vrot.slane %v4185, 5
      %v4262 = vrot.slane %v4261, 4
      %v4263 = vrot.slane %v3652, 5
      %v4264 = vsel %vm1134, %v4262, %v4263
      %v4265 = vrot.slane %v4263, 4
      %v4266 = vrot.slane %v3717, 5
      %v4267 = vsel %vm1134, %v4265, %v4266
      %v4268 = vrot.slane %v4186, 5
      %v4269 = vrot.slane %v4268, 4
      %v4270 = vrot.slane %v3654, 5
      %v4271 = vsel %vm1134, %v4269, %v4270
      %v4272 = vrot.slane %v4270, 4
      %v4273 = vrot.slane %v3718, 5
      %v4274 = vsel %vm1134, %v4272, %v4273
      %v4275 = vrot.slane %v4187, 5
      %v4276 = vrot.slane %v4275, 4
      %v4277 = vrot.slane %v3656, 5
      %v4278 = vsel %vm1134, %v4276, %v4277
      %v4279 = vrot.slane %v4277, 4
      %v4280 = vrot.slane %v3719, 5
      %v4281 = vsel %vm1134, %v4279, %v4280
      %v4282 = vrot.slane %v4188, 5
      %v4283 = vrot.slane %v4282, 4
      %v4284 = vrot.slane %v3658, 5
      %v4285 = vsel %vm1134, %v4283, %v4284
      %v4286 = vrot.slane %v4284, 4
      %v4287 = vrot.slane %v3720, 5
      %v4288 = vsel %vm1134, %v4286, %v4287
      %v4289 = vrot.slane %v4189, 5
      %v4290 = vrot.slane %v4289, 4
      %v4291 = vrot.slane %v3660, 5
      %v4292 = vsel %vm1134, %v4290, %v4291
      %v4293 = vrot.slane %v4291, 4
      %v4294 = vrot.slane %v3721, 5
      %v4295 = vsel %vm1134, %v4293, %v4294
      %v4296 = vrot.slane %v4190, 5
      %v4297 = vrot.slane %v4296, 4
      %v4298 = vrot.slane %v3662, 5
      %v4299 = vsel %vm1134, %v4297, %v4298
      %v4300 = vrot.slane %v4298, 4
      %v4301 = vrot.slane %v3722, 5
      %v4302 = vsel %vm1134, %v4300, %v4301
      %v4303 = vrot.slane %v4191, 5
      %v4304 = vrot.slane %v4303, 4
      %v4305 = vrot.slane %v3664, 5
      %v4306 = vsel %vm1134, %v4304, %v4305
      %v4307 = vrot.slane %v4305, 4
      %v4308 = vrot.slane %v3723, 5
      %v4309 = vsel %vm1134, %v4307, %v4308
      %v4310 = vrot.slane %v4192, 5
      %v4311 = vrot.slane %v4310, 4
      %v4312 = vrot.slane %v3666, 5
      %v4313 = vsel %vm1134, %v4311, %v4312
      %v4314 = vrot.slane %v4312, 4
      %v4315 = vrot.slane %v3724, 5
      %v4316 = vsel %vm1134, %v4314, %v4315
      %v4317 = vrot.slane %v4193, 5
      %v4318 = vrot.slane %v4317, 4
      %v4319 = vrot.slane %v3668, 5
      %v4320 = vsel %vm1134, %v4318, %v4319
      %v4321 = vrot.slane %v4319, 4
      %v4322 = vrot.slane %v3725, 5
      %v4323 = vsel %vm1134, %v4321, %v4322
      %v4324 = vrot.slane %v4194, 5
      %v4325 = vrot.slane %v4324, 4
      %v4326 = vrot.slane %v3670, 5
      %v4327 = vsel %vm1134, %v4325, %v4326
      %v4328 = vrot.slane %v4326, 4
      %v4329 = vrot.slane %v3726, 5
      %v4330 = vsel %vm1134, %v4328, %v4329
      %v4331 = vrot.slane %v4195, 5
      %v4332 = vrot.slane %v4331, 4
      %v4333 = vrot.slane %v3672, 5
      %v4334 = vsel %vm1134, %v4332, %v4333
      %v4335 = vrot.slane %v4333, 4
      %v4336 = vrot.slane %v3727, 5
      %v4337 = vsel %vm1134, %v4335, %v4336
      %v4338 = vrot.slane %v4196, 5
      %v4339 = vrot.slane %v4338, 4
      %v4340 = vrot.slane %v3674, 5
      %v4341 = vsel %vm1134, %v4339, %v4340
      %v4342 = vrot.slane %v4340, 4
      %v4343 = vrot.slane %v3728, 5
      %v4344 = vsel %vm1134, %v4342, %v4343
      %v4345 = vrot.slane %v4197, 5
      %v4346 = vrot.slane %v4345, 4
      %v4347 = vrot.slane %v3676, 5
      %v4348 = vsel %vm1134, %v4346, %v4347
      %v4349 = vrot.slane %v4347, 4
      %v4350 = vrot.slane %v3729, 5
      %v4351 = vsel %vm1134, %v4349, %v4350
      %v4352 = vrot.slane %v4198, 5
      %v4353 = vrot.slane %v4352, 4
      %v4354 = vrot.slane %v3678, 5
      %v4355 = vsel %vm1134, %v4353, %v4354
      %v4356 = vrot.slane %v4354, 4
      %v4357 = vrot.slane %v3730, 5
      %v4358 = vsel %vm1134, %v4356, %v4357
      %vm4391 = vmand %vm1820, %vm2067
      %v4392 = vsel %vm4391, 1, 0
      %vm4393 = vcmp.eq.s32.totalorder %v4392, 1
      %vm4394 = vmpackc.low %vm4393, %vm4393
      %v4395 = vsel %vm4394, %v4250, %v4151
      %v4396 = vsel %vm4394, %v4253, %v4152
      %v4397 = vsel %vm4394, %v4257, %v4153
      %v4398 = vsel %vm4394, %v4260, %v4154
      %v4399 = vsel %vm4394, %v4264, %v4155
      %v4400 = vsel %vm4394, %v4267, %v4156
      %v4401 = vsel %vm4394, %v4271, %v4157
      %v4402 = vsel %vm4394, %v4274, %v4158
      %v4403 = vsel %vm4394, %v4278, %v4159
      %v4404 = vsel %vm4394, %v4281, %v4160
      %v4405 = vsel %vm4394, %v4285, %v4161
      %v4406 = vsel %vm4394, %v4288, %v4162
      %v4407 = vsel %vm4394, %v4292, %v4163
      %v4408 = vsel %vm4394, %v4295, %v4164
      %v4409 = vsel %vm4394, %v4299, %v4165
      %v4410 = vsel %vm4394, %v4302, %v4166
      %v4411 = vsel %vm4394, %v4306, %v4167
      %v4412 = vsel %vm4394, %v4309, %v4168
      %v4413 = vsel %vm4394, %v4313, %v4169
      %v4414 = vsel %vm4394, %v4316, %v4170
      %v4415 = vsel %vm4394, %v4320, %v4171
      %v4416 = vsel %vm4394, %v4323, %v4172
      %v4417 = vsel %vm4394, %v4327, %v4173
      %v4418 = vsel %vm4394, %v4330, %v4174
      %v4419 = vsel %vm4394, %v4334, %v4175
      %v4420 = vsel %vm4394, %v4337, %v4176
      %v4421 = vsel %vm4394, %v4341, %v4177
      %v4422 = vsel %vm4394, %v4344, %v4178
      %v4423 = vsel %vm4394, %v4348, %v4179
      %v4424 = vsel %vm4394, %v4351, %v4180
      %v4425 = vsel %vm4394, %v4355, %v4181
      %v4426 = vsel %vm4394, %v4358, %v4182
      %v4427 = vld [vmem:[%s1317] sm:$0xf]
      %v4428 = vld [vmem:[%s1317 + $0x4] sm:$0xf]
      %v4429 = vld [vmem:[%s1317 + $0xc] sm:$0xf]
      %v4430 = vld [vmem:[%s1317 + $0x10] sm:$0xf]
      %v4431 = vld [vmem:[%s1317 + $0x18] sm:$0xf]
      %v4432 = vld [vmem:[%s1317 + $0x1c] sm:$0xf]
      %v4433 = vld [vmem:[%s1317 + $0x24] sm:$0xf]
      %v4434 = vld [vmem:[%s1317 + $0x28] sm:$0xf]
      %v4435 = vld [vmem:[%s1317 + $0x30] sm:$0xf]
      %v4436 = vld [vmem:[%s1317 + $0x34] sm:$0xf]
      %v4437 = vld [vmem:[%s1317 + $0x3c] sm:$0xf]
      %v4438 = vld [vmem:[%s1317 + $0x40] sm:$0xf]
      %v4439 = vld [vmem:[%s1317 + $0x48] sm:$0xf]
      %v4440 = vld [vmem:[%s1317 + $0x4c] sm:$0xf]
      %v4441 = vld [vmem:[%s1317 + $0x54] sm:$0xf]
      %v4442 = vld [vmem:[%s1317 + $0x58] sm:$0xf]
      %v4443 = vld [vmem:[%s1317 + $0x60] sm:$0xf]
      %v4444 = vld [vmem:[%s1317 + $0x64] sm:$0xf]
      %v4445 = vld [vmem:[%s1317 + $0x6c] sm:$0xf]
      %v4446 = vld [vmem:[%s1317 + $0x70] sm:$0xf]
      %v4447 = vld [vmem:[%s1317 + $0x78] sm:$0xf]
      %v4448 = vld [vmem:[%s1317 + $0x7c] sm:$0xf]
      %v4449 = vld [vmem:[%s1317 + $0x84] sm:$0xf]
      %v4450 = vld [vmem:[%s1317 + $0x88] sm:$0xf]
      %v4451 = vld [vmem:[%s1317 + $0x90] sm:$0xf]
      %v4452 = vld [vmem:[%s1317 + $0x94] sm:$0xf]
      %v4453 = vld [vmem:[%s1317 + $0x9c] sm:$0xf]
      %v4454 = vld [vmem:[%s1317 + $0xa0] sm:$0xf]
      %v4455 = vld [vmem:[%s1317 + $0xa8] sm:$0xf]
      %v4456 = vld [vmem:[%s1317 + $0xac] sm:$0xf]
      %v4457 = vld [vmem:[%s1317 + $0xb4] sm:$0xf]
      %v4458 = vld [vmem:[%s1317 + $0xb8] sm:$0xf]
      %vm4459 = vmand %vm2137, %vm2608
      %v4460 = vsel %vm4459, 1, 0
      %vm4461 = vcmp.eq.s32.totalorder %v4460, 1
      %vm4462 = vmpackc.low %vm4461, %vm4461
      %v4463 = vsel %vm4462, %v4427, %v4395
      %v4464 = vsel %vm4462, %v4428, %v4396
      %v4465 = vsel %vm4462, %v4429, %v4397
      %v4466 = vsel %vm4462, %v4430, %v4398
      %v4467 = vsel %vm4462, %v4431, %v4399
      %v4468 = vsel %vm4462, %v4432, %v4400
      %v4469 = vsel %vm4462, %v4433, %v4401
      %v4470 = vsel %vm4462, %v4434, %v4402
      %v4471 = vsel %vm4462, %v4435, %v4403
      %v4472 = vsel %vm4462, %v4436, %v4404
      %v4473 = vsel %vm4462, %v4437, %v4405
      %v4474 = vsel %vm4462, %v4438, %v4406
      %v4475 = vsel %vm4462, %v4439, %v4407
      %v4476 = vsel %vm4462, %v4440, %v4408
      %v4477 = vsel %vm4462, %v4441, %v4409
      %v4478 = vsel %vm4462, %v4442, %v4410
      %v4479 = vsel %vm4462, %v4443, %v4411
      %v4480 = vsel %vm4462, %v4444, %v4412
      %v4481 = vsel %vm4462, %v4445, %v4413
      %v4482 = vsel %vm4462, %v4446, %v4414
      %v4483 = vsel %vm4462, %v4447, %v4415
      %v4484 = vsel %vm4462, %v4448, %v4416
      %v4485 = vsel %vm4462, %v4449, %v4417
      %v4486 = vsel %vm4462, %v4450, %v4418
      %v4487 = vsel %vm4462, %v4451, %v4419
      %v4488 = vsel %vm4462, %v4452, %v4420
      %v4489 = vsel %vm4462, %v4453, %v4421
      %v4490 = vsel %vm4462, %v4454, %v4422
      %v4491 = vsel %vm4462, %v4455, %v4423
      %v4492 = vsel %vm4462, %v4456, %v4424
      %v4493 = vsel %vm4462, %v4457, %v4425
      %v4494 = vsel %vm4462, %v4458, %v4426
      %v4495 = vld [vmem:[%s1317 + $0x8] sm:$0x1]
      %v4496 = vld [vmem:[%s1317 + $0x14] sm:$0x1]
      %v4497 = vld [vmem:[%s1317 + $0x20] sm:$0x1]
      %v4498 = vld [vmem:[%s1317 + $0x2c] sm:$0x1]
      %v4499 = vld [vmem:[%s1317 + $0x38] sm:$0x1]
      %v4500 = vld [vmem:[%s1317 + $0x44] sm:$0x1]
      %v4501 = vld [vmem:[%s1317 + $0x50] sm:$0x1]
      %v4502 = vld [vmem:[%s1317 + $0x5c] sm:$0x1]
      %v4503 = vld [vmem:[%s1317 + $0x68] sm:$0x1]
      %v4504 = vld [vmem:[%s1317 + $0x74] sm:$0x1]
      %v4505 = vld [vmem:[%s1317 + $0x80] sm:$0x1]
      %v4506 = vld [vmem:[%s1317 + $0x8c] sm:$0x1]
      %v4507 = vld [vmem:[%s1317 + $0x98] sm:$0x1]
      %v4508 = vld [vmem:[%s1317 + $0xa4] sm:$0x1]
      %v4509 = vld [vmem:[%s1317 + $0xb0] sm:$0x1]
      %v4510 = vld [vmem:[%s1317 + $0xbc] sm:$0x1]
      %v4512 = vshrl.u32 %v4427, 16
      %v4514 = vrot.slane %v4512, 4
      %v4515 = vshll.u32 %v4427, 16
      %v4517 = vrot.slane %v4515, 5
      %v4518 = vor.u32 %v4514, %v4517
      %v4519 = vrot.slane %v4518, 4
      %v4521 = vshll.u32 %v4428, 16
      %v4523 = vrot.slane %v4521, 5
      %v4524 = vsel %vm613, %v4519, %v4523
      %v4525 = vshrl.u32 %v4428, 16
      %v4527 = vrot.slane %v4525, 4
      %v4528 = vor.u32 %v4527, %v4523
      %v4529 = vrot.slane %v4528, 4
      %v4531 = vshll.u32 %v4495, 16
      %v4533 = vrot.slane %v4531, 5
      %v4534 = vsel %vm613, %v4529, %v4533
      %v4536 = vshrl.u32 %v4429, 16
      %v4538 = vrot.slane %v4536, 4
      %v4539 = vshll.u32 %v4429, 16
      %v4541 = vrot.slane %v4539, 5
      %v4542 = vor.u32 %v4538, %v4541
      %v4543 = vrot.slane %v4542, 4
      %v4545 = vshll.u32 %v4430, 16
      %v4547 = vrot.slane %v4545, 5
      %v4548 = vsel %vm613, %v4543, %v4547
      %v4549 = vshrl.u32 %v4430, 16
      %v4551 = vrot.slane %v4549, 4
      %v4552 = vor.u32 %v4551, %v4547
      %v4553 = vrot.slane %v4552, 4
      %v4555 = vshll.u32 %v4496, 16
      %v4557 = vrot.slane %v4555, 5
      %v4558 = vsel %vm613, %v4553, %v4557
      %v4560 = vshrl.u32 %v4431, 16
      %v4562 = vrot.slane %v4560, 4
      %v4563 = vshll.u32 %v4431, 16
      %v4565 = vrot.slane %v4563, 5
      %v4566 = vor.u32 %v4562, %v4565
      %v4567 = vrot.slane %v4566, 4
      %v4569 = vshll.u32 %v4432, 16
      %v4571 = vrot.slane %v4569, 5
      %v4572 = vsel %vm613, %v4567, %v4571
      %v4573 = vshrl.u32 %v4432, 16
      %v4575 = vrot.slane %v4573, 4
      %v4576 = vor.u32 %v4575, %v4571
      %v4577 = vrot.slane %v4576, 4
      %v4579 = vshll.u32 %v4497, 16
      %v4581 = vrot.slane %v4579, 5
      %v4582 = vsel %vm613, %v4577, %v4581
      %v4584 = vshrl.u32 %v4433, 16
      %v4586 = vrot.slane %v4584, 4
      %v4587 = vshll.u32 %v4433, 16
      %v4589 = vrot.slane %v4587, 5
      %v4590 = vor.u32 %v4586, %v4589
      %v4591 = vrot.slane %v4590, 4
      %v4593 = vshll.u32 %v4434, 16
      %v4595 = vrot.slane %v4593, 5
      %v4596 = vsel %vm613, %v4591, %v4595
      %v4597 = vshrl.u32 %v4434, 16
      %v4599 = vrot.slane %v4597, 4
      %v4600 = vor.u32 %v4599, %v4595
      %v4601 = vrot.slane %v4600, 4
      %v4603 = vshll.u32 %v4498, 16
      %v4605 = vrot.slane %v4603, 5
      %v4606 = vsel %vm613, %v4601, %v4605
      %v4608 = vshrl.u32 %v4435, 16
      %v4610 = vrot.slane %v4608, 4
      %v4611 = vshll.u32 %v4435, 16
      %v4613 = vrot.slane %v4611, 5
      %v4614 = vor.u32 %v4610, %v4613
      %v4615 = vrot.slane %v4614, 4
      %v4617 = vshll.u32 %v4436, 16
      %v4619 = vrot.slane %v4617, 5
      %v4620 = vsel %vm613, %v4615, %v4619
      %v4621 = vshrl.u32 %v4436, 16
      %v4623 = vrot.slane %v4621, 4
      %v4624 = vor.u32 %v4623, %v4619
      %v4625 = vrot.slane %v4624, 4
      %v4627 = vshll.u32 %v4499, 16
      %v4629 = vrot.slane %v4627, 5
      %v4630 = vsel %vm613, %v4625, %v4629
      %v4632 = vshrl.u32 %v4437, 16
      %v4634 = vrot.slane %v4632, 4
      %v4635 = vshll.u32 %v4437, 16
      %v4637 = vrot.slane %v4635, 5
      %v4638 = vor.u32 %v4634, %v4637
      %v4639 = vrot.slane %v4638, 4
      %v4641 = vshll.u32 %v4438, 16
      %v4643 = vrot.slane %v4641, 5
      %v4644 = vsel %vm613, %v4639, %v4643
      %v4645 = vshrl.u32 %v4438, 16
      %v4647 = vrot.slane %v4645, 4
      %v4648 = vor.u32 %v4647, %v4643
      %v4649 = vrot.slane %v4648, 4
      %v4651 = vshll.u32 %v4500, 16
      %v4653 = vrot.slane %v4651, 5
      %v4654 = vsel %vm613, %v4649, %v4653
      %v4656 = vshrl.u32 %v4439, 16
      %v4658 = vrot.slane %v4656, 4
      %v4659 = vshll.u32 %v4439, 16
      %v4661 = vrot.slane %v4659, 5
      %v4662 = vor.u32 %v4658, %v4661
      %v4663 = vrot.slane %v4662, 4
      %v4665 = vshll.u32 %v4440, 16
      %v4667 = vrot.slane %v4665, 5
      %v4668 = vsel %vm613, %v4663, %v4667
      %v4669 = vshrl.u32 %v4440, 16
      %v4671 = vrot.slane %v4669, 4
      %v4672 = vor.u32 %v4671, %v4667
      %v4673 = vrot.slane %v4672, 4
      %v4675 = vshll.u32 %v4501, 16
      %v4677 = vrot.slane %v4675, 5
      %v4678 = vsel %vm613, %v4673, %v4677
      %v4680 = vshrl.u32 %v4441, 16
      %v4682 = vrot.slane %v4680, 4
      %v4683 = vshll.u32 %v4441, 16
      %v4685 = vrot.slane %v4683, 5
      %v4686 = vor.u32 %v4682, %v4685
      %v4687 = vrot.slane %v4686, 4
      %v4689 = vshll.u32 %v4442, 16
      %v4691 = vrot.slane %v4689, 5
      %v4692 = vsel %vm613, %v4687, %v4691
      %v4693 = vshrl.u32 %v4442, 16
      %v4695 = vrot.slane %v4693, 4
      %v4696 = vor.u32 %v4695, %v4691
      %v4697 = vrot.slane %v4696, 4
      %v4699 = vshll.u32 %v4502, 16
      %v4701 = vrot.slane %v4699, 5
      %v4702 = vsel %vm613, %v4697, %v4701
      %v4704 = vshrl.u32 %v4443, 16
      %v4706 = vrot.slane %v4704, 4
      %v4707 = vshll.u32 %v4443, 16
      %v4709 = vrot.slane %v4707, 5
      %v4710 = vor.u32 %v4706, %v4709
      %v4711 = vrot.slane %v4710, 4
      %v4713 = vshll.u32 %v4444, 16
      %v4715 = vrot.slane %v4713, 5
      %v4716 = vsel %vm613, %v4711, %v4715
      %v4717 = vshrl.u32 %v4444, 16
      %v4719 = vrot.slane %v4717, 4
      %v4720 = vor.u32 %v4719, %v4715
      %v4721 = vrot.slane %v4720, 4
      %v4723 = vshll.u32 %v4503, 16
      %v4725 = vrot.slane %v4723, 5
      %v4726 = vsel %vm613, %v4721, %v4725
      %v4728 = vshrl.u32 %v4445, 16
      %v4730 = vrot.slane %v4728, 4
      %v4731 = vshll.u32 %v4445, 16
      %v4733 = vrot.slane %v4731, 5
      %v4734 = vor.u32 %v4730, %v4733
      %v4735 = vrot.slane %v4734, 4
      %v4737 = vshll.u32 %v4446, 16
      %v4739 = vrot.slane %v4737, 5
      %v4740 = vsel %vm613, %v4735, %v4739
      %v4741 = vshrl.u32 %v4446, 16
      %v4743 = vrot.slane %v4741, 4
      %v4744 = vor.u32 %v4743, %v4739
      %v4745 = vrot.slane %v4744, 4
      %v4747 = vshll.u32 %v4504, 16
      %v4749 = vrot.slane %v4747, 5
      %v4750 = vsel %vm613, %v4745, %v4749
      %v4752 = vshrl.u32 %v4447, 16
      %v4754 = vrot.slane %v4752, 4
      %v4755 = vshll.u32 %v4447, 16
      %v4757 = vrot.slane %v4755, 5
      %v4758 = vor.u32 %v4754, %v4757
      %v4759 = vrot.slane %v4758, 4
      %v4761 = vshll.u32 %v4448, 16
      %v4763 = vrot.slane %v4761, 5
      %v4764 = vsel %vm613, %v4759, %v4763
      %v4765 = vshrl.u32 %v4448, 16
      %v4767 = vrot.slane %v4765, 4
      %v4768 = vor.u32 %v4767, %v4763
      %v4769 = vrot.slane %v4768, 4
      %v4771 = vshll.u32 %v4505, 16
      %v4773 = vrot.slane %v4771, 5
      %v4774 = vsel %vm613, %v4769, %v4773
      %v4776 = vshrl.u32 %v4449, 16
      %v4778 = vrot.slane %v4776, 4
      %v4779 = vshll.u32 %v4449, 16
      %v4781 = vrot.slane %v4779, 5
      %v4782 = vor.u32 %v4778, %v4781
      %v4783 = vrot.slane %v4782, 4
      %v4785 = vshll.u32 %v4450, 16
      %v4787 = vrot.slane %v4785, 5
      %v4788 = vsel %vm613, %v4783, %v4787
      %v4789 = vshrl.u32 %v4450, 16
      %v4791 = vrot.slane %v4789, 4
      %v4792 = vor.u32 %v4791, %v4787
      %v4793 = vrot.slane %v4792, 4
      %v4795 = vshll.u32 %v4506, 16
      %v4797 = vrot.slane %v4795, 5
      %v4798 = vsel %vm613, %v4793, %v4797
      %v4800 = vshrl.u32 %v4451, 16
      %v4802 = vrot.slane %v4800, 4
      %v4803 = vshll.u32 %v4451, 16
      %v4805 = vrot.slane %v4803, 5
      %v4806 = vor.u32 %v4802, %v4805
      %v4807 = vrot.slane %v4806, 4
      %v4809 = vshll.u32 %v4452, 16
      %v4811 = vrot.slane %v4809, 5
      %v4812 = vsel %vm613, %v4807, %v4811
      %v4813 = vshrl.u32 %v4452, 16
      %v4815 = vrot.slane %v4813, 4
      %v4816 = vor.u32 %v4815, %v4811
      %v4817 = vrot.slane %v4816, 4
      %v4819 = vshll.u32 %v4507, 16
      %v4821 = vrot.slane %v4819, 5
      %v4822 = vsel %vm613, %v4817, %v4821
      %v4824 = vshrl.u32 %v4453, 16
      %v4826 = vrot.slane %v4824, 4
      %v4827 = vshll.u32 %v4453, 16
      %v4829 = vrot.slane %v4827, 5
      %v4830 = vor.u32 %v4826, %v4829
      %v4831 = vrot.slane %v4830, 4
      %v4833 = vshll.u32 %v4454, 16
      %v4835 = vrot.slane %v4833, 5
      %v4836 = vsel %vm613, %v4831, %v4835
      %v4837 = vshrl.u32 %v4454, 16
      %v4839 = vrot.slane %v4837, 4
      %v4840 = vor.u32 %v4839, %v4835
      %v4841 = vrot.slane %v4840, 4
      %v4843 = vshll.u32 %v4508, 16
      %v4845 = vrot.slane %v4843, 5
      %v4846 = vsel %vm613, %v4841, %v4845
      %v4848 = vshrl.u32 %v4455, 16
      %v4850 = vrot.slane %v4848, 4
      %v4851 = vshll.u32 %v4455, 16
      %v4853 = vrot.slane %v4851, 5
      %v4854 = vor.u32 %v4850, %v4853
      %v4855 = vrot.slane %v4854, 4
      %v4857 = vshll.u32 %v4456, 16
      %v4859 = vrot.slane %v4857, 5
      %v4860 = vsel %vm613, %v4855, %v4859
      %v4861 = vshrl.u32 %v4456, 16
      %v4863 = vrot.slane %v4861, 4
      %v4864 = vor.u32 %v4863, %v4859
      %v4865 = vrot.slane %v4864, 4
      %v4867 = vshll.u32 %v4509, 16
      %v4869 = vrot.slane %v4867, 5
      %v4870 = vsel %vm613, %v4865, %v4869
      %v4872 = vshrl.u32 %v4457, 16
      %v4874 = vrot.slane %v4872, 4
      %v4875 = vshll.u32 %v4457, 16
      %v4877 = vrot.slane %v4875, 5
      %v4878 = vor.u32 %v4874, %v4877
      %v4879 = vrot.slane %v4878, 4
      %v4881 = vshll.u32 %v4458, 16
      %v4883 = vrot.slane %v4881, 5
      %v4884 = vsel %vm613, %v4879, %v4883
      %v4885 = vshrl.u32 %v4458, 16
      %v4887 = vrot.slane %v4885, 4
      %v4888 = vor.u32 %v4887, %v4883
      %v4889 = vrot.slane %v4888, 4
      %v4891 = vshll.u32 %v4510, 16
      %v4893 = vrot.slane %v4891, 5
      %v4894 = vsel %vm613, %v4889, %v4893
      %vm4927 = vcmp.lt.s32.totalorder %v254, 40
      %vm4928 = vmand %vm2853, %vm4927
      %v4929 = vsel %vm4928, 1, 0
      %vm4930 = vcmp.eq.s32.totalorder %v4929, 1
      %vm4931 = vmpackc.low %vm4930, %vm4930
      %v4932 = vsel %vm4931, %v4524, %v4463
      %v4933 = vsel %vm4931, %v4534, %v4464
      %v4934 = vsel %vm4931, %v4548, %v4465
      %v4935 = vsel %vm4931, %v4558, %v4466
      %v4936 = vsel %vm4931, %v4572, %v4467
      %v4937 = vsel %vm4931, %v4582, %v4468
      %v4938 = vsel %vm4931, %v4596, %v4469
      %v4939 = vsel %vm4931, %v4606, %v4470
      %v4940 = vsel %vm4931, %v4620, %v4471
      %v4941 = vsel %vm4931, %v4630, %v4472
      %v4942 = vsel %vm4931, %v4644, %v4473
      %v4943 = vsel %vm4931, %v4654, %v4474
      %v4944 = vsel %vm4931, %v4668, %v4475
      %v4945 = vsel %vm4931, %v4678, %v4476
      %v4946 = vsel %vm4931, %v4692, %v4477
      %v4947 = vsel %vm4931, %v4702, %v4478
      %v4948 = vsel %vm4931, %v4716, %v4479
      %v4949 = vsel %vm4931, %v4726, %v4480
      %v4950 = vsel %vm4931, %v4740, %v4481
      %v4951 = vsel %vm4931, %v4750, %v4482
      %v4952 = vsel %vm4931, %v4764, %v4483
      %v4953 = vsel %vm4931, %v4774, %v4484
      %v4954 = vsel %vm4931, %v4788, %v4485
      %v4955 = vsel %vm4931, %v4798, %v4486
      %v4956 = vsel %vm4931, %v4812, %v4487
      %v4957 = vsel %vm4931, %v4822, %v4488
      %v4958 = vsel %vm4931, %v4836, %v4489
      %v4959 = vsel %vm4931, %v4846, %v4490
      %v4960 = vsel %vm4931, %v4860, %v4491
      %v4961 = vsel %vm4931, %v4870, %v4492
      %v4962 = vsel %vm4931, %v4884, %v4493
      %v4963 = vsel %vm4931, %v4894, %v4494
      %v4964 = vld [vmem:[%s1317] sm:$0xe]
      %v4965 = vld [vmem:[%s1317 + $0xc] sm:$0xe]
      %v4966 = vld [vmem:[%s1317 + $0x18] sm:$0xe]
      %v4967 = vld [vmem:[%s1317 + $0x24] sm:$0xe]
      %v4968 = vld [vmem:[%s1317 + $0x30] sm:$0xe]
      %v4969 = vld [vmem:[%s1317 + $0x3c] sm:$0xe]
      %v4970 = vld [vmem:[%s1317 + $0x48] sm:$0xe]
      %v4971 = vld [vmem:[%s1317 + $0x54] sm:$0xe]
      %v4972 = vld [vmem:[%s1317 + $0x60] sm:$0xe]
      %v4973 = vld [vmem:[%s1317 + $0x6c] sm:$0xe]
      %v4974 = vld [vmem:[%s1317 + $0x78] sm:$0xe]
      %v4975 = vld [vmem:[%s1317 + $0x84] sm:$0xe]
      %v4976 = vld [vmem:[%s1317 + $0x90] sm:$0xe]
      %v4977 = vld [vmem:[%s1317 + $0x9c] sm:$0xe]
      %v4978 = vld [vmem:[%s1317 + $0xa8] sm:$0xe]
      %v4979 = vld [vmem:[%s1317 + $0xb4] sm:$0xe]
      %v5028 = vrot.slane %v4964, 5
      %v5029 = vrot.slane %v5028, 4
      %v5030 = vrot.slane %v4428, 5
      %v5031 = vsel %vm1134, %v5029, %v5030
      %v5032 = vrot.slane %v5030, 4
      %v5033 = vrot.slane %v4495, 5
      %v5034 = vsel %vm1134, %v5032, %v5033
      %v5035 = vrot.slane %v4965, 5
      %v5036 = vrot.slane %v5035, 4
      %v5037 = vrot.slane %v4430, 5
      %v5038 = vsel %vm1134, %v5036, %v5037
      %v5039 = vrot.slane %v5037, 4
      %v5040 = vrot.slane %v4496, 5
      %v5041 = vsel %vm1134, %v5039, %v5040
      %v5042 = vrot.slane %v4966, 5
      %v5043 = vrot.slane %v5042, 4
      %v5044 = vrot.slane %v4432, 5
      %v5045 = vsel %vm1134, %v5043, %v5044
      %v5046 = vrot.slane %v5044, 4
      %v5047 = vrot.slane %v4497, 5
      %v5048 = vsel %vm1134, %v5046, %v5047
      %v5049 = vrot.slane %v4967, 5
      %v5050 = vrot.slane %v5049, 4
      %v5051 = vrot.slane %v4434, 5
      %v5052 = vsel %vm1134, %v5050, %v5051
      %v5053 = vrot.slane %v5051, 4
      %v5054 = vrot.slane %v4498, 5
      %v5055 = vsel %vm1134, %v5053, %v5054
      %v5056 = vrot.slane %v4968, 5
      %v5057 = vrot.slane %v5056, 4
      %v5058 = vrot.slane %v4436, 5
      %v5059 = vsel %vm1134, %v5057, %v5058
      %v5060 = vrot.slane %v5058, 4
      %v5061 = vrot.slane %v4499, 5
      %v5062 = vsel %vm1134, %v5060, %v5061
      %v5063 = vrot.slane %v4969, 5
      %v5064 = vrot.slane %v5063, 4
      %v5065 = vrot.slane %v4438, 5
      %v5066 = vsel %vm1134, %v5064, %v5065
      %v5067 = vrot.slane %v5065, 4
      %v5068 = vrot.slane %v4500, 5
      %v5069 = vsel %vm1134, %v5067, %v5068
      %v5070 = vrot.slane %v4970, 5
      %v5071 = vrot.slane %v5070, 4
      %v5072 = vrot.slane %v4440, 5
      %v5073 = vsel %vm1134, %v5071, %v5072
      %v5074 = vrot.slane %v5072, 4
      %v5075 = vrot.slane %v4501, 5
      %v5076 = vsel %vm1134, %v5074, %v5075
      %v5077 = vrot.slane %v4971, 5
      %v5078 = vrot.slane %v5077, 4
      %v5079 = vrot.slane %v4442, 5
      %v5080 = vsel %vm1134, %v5078, %v5079
      %v5081 = vrot.slane %v5079, 4
      %v5082 = vrot.slane %v4502, 5
      %v5083 = vsel %vm1134, %v5081, %v5082
      %v5084 = vrot.slane %v4972, 5
      %v5085 = vrot.slane %v5084, 4
      %v5086 = vrot.slane %v4444, 5
      %v5087 = vsel %vm1134, %v5085, %v5086
      %v5088 = vrot.slane %v5086, 4
      %v5089 = vrot.slane %v4503, 5
      %v5090 = vsel %vm1134, %v5088, %v5089
      %v5091 = vrot.slane %v4973, 5
      %v5092 = vrot.slane %v5091, 4
      %v5093 = vrot.slane %v4446, 5
      %v5094 = vsel %vm1134, %v5092, %v5093
      %v5095 = vrot.slane %v5093, 4
      %v5096 = vrot.slane %v4504, 5
      %v5097 = vsel %vm1134, %v5095, %v5096
      %v5098 = vrot.slane %v4974, 5
      %v5099 = vrot.slane %v5098, 4
      %v5100 = vrot.slane %v4448, 5
      %v5101 = vsel %vm1134, %v5099, %v5100
      %v5102 = vrot.slane %v5100, 4
      %v5103 = vrot.slane %v4505, 5
      %v5104 = vsel %vm1134, %v5102, %v5103
      %v5105 = vrot.slane %v4975, 5
      %v5106 = vrot.slane %v5105, 4
      %v5107 = vrot.slane %v4450, 5
      %v5108 = vsel %vm1134, %v5106, %v5107
      %v5109 = vrot.slane %v5107, 4
      %v5110 = vrot.slane %v4506, 5
      %v5111 = vsel %vm1134, %v5109, %v5110
      %v5112 = vrot.slane %v4976, 5
      %v5113 = vrot.slane %v5112, 4
      %v5114 = vrot.slane %v4452, 5
      %v5115 = vsel %vm1134, %v5113, %v5114
      %v5116 = vrot.slane %v5114, 4
      %v5117 = vrot.slane %v4507, 5
      %v5118 = vsel %vm1134, %v5116, %v5117
      %v5119 = vrot.slane %v4977, 5
      %v5120 = vrot.slane %v5119, 4
      %v5121 = vrot.slane %v4454, 5
      %v5122 = vsel %vm1134, %v5120, %v5121
      %v5123 = vrot.slane %v5121, 4
      %v5124 = vrot.slane %v4508, 5
      %v5125 = vsel %vm1134, %v5123, %v5124
      %v5126 = vrot.slane %v4978, 5
      %v5127 = vrot.slane %v5126, 4
      %v5128 = vrot.slane %v4456, 5
      %v5129 = vsel %vm1134, %v5127, %v5128
      %v5130 = vrot.slane %v5128, 4
      %v5131 = vrot.slane %v4509, 5
      %v5132 = vsel %vm1134, %v5130, %v5131
      %v5133 = vrot.slane %v4979, 5
      %v5134 = vrot.slane %v5133, 4
      %v5135 = vrot.slane %v4458, 5
      %v5136 = vsel %vm1134, %v5134, %v5135
      %v5137 = vrot.slane %v5135, 4
      %v5138 = vrot.slane %v4510, 5
      %v5139 = vsel %vm1134, %v5137, %v5138
      %vm5172 = vcmp.ge.s32.totalorder %v254, 40
      %vm5173 = vcmp.lt.s32.totalorder %v254, 48
      %vm5174 = vmand %vm5172, %vm5173
      %v5175 = vsel %vm5174, 1, 0
      %vm5176 = vcmp.eq.s32.totalorder %v5175, 1
      %vm5177 = vmpackc.low %vm5176, %vm5176
      %v5178 = vsel %vm5177, %v5031, %v4932
      %v5179 = vsel %vm5177, %v5034, %v4933
      %v5180 = vsel %vm5177, %v5038, %v4934
      %v5181 = vsel %vm5177, %v5041, %v4935
      %v5182 = vsel %vm5177, %v5045, %v4936
      %v5183 = vsel %vm5177, %v5048, %v4937
      %v5184 = vsel %vm5177, %v5052, %v4938
      %v5185 = vsel %vm5177, %v5055, %v4939
      %v5186 = vsel %vm5177, %v5059, %v4940
      %v5187 = vsel %vm5177, %v5062, %v4941
      %v5188 = vsel %vm5177, %v5066, %v4942
      %v5189 = vsel %vm5177, %v5069, %v4943
      %v5190 = vsel %vm5177, %v5073, %v4944
      %v5191 = vsel %vm5177, %v5076, %v4945
      %v5192 = vsel %vm5177, %v5080, %v4946
      %v5193 = vsel %vm5177, %v5083, %v4947
      %v5194 = vsel %vm5177, %v5087, %v4948
      %v5195 = vsel %vm5177, %v5090, %v4949
      %v5196 = vsel %vm5177, %v5094, %v4950
      %v5197 = vsel %vm5177, %v5097, %v4951
      %v5198 = vsel %vm5177, %v5101, %v4952
      %v5199 = vsel %vm5177, %v5104, %v4953
      %v5200 = vsel %vm5177, %v5108, %v4954
      %v5201 = vsel %vm5177, %v5111, %v4955
      %v5202 = vsel %vm5177, %v5115, %v4956
      %v5203 = vsel %vm5177, %v5118, %v4957
      %v5204 = vsel %vm5177, %v5122, %v4958
      %v5205 = vsel %vm5177, %v5125, %v4959
      %v5206 = vsel %vm5177, %v5129, %v4960
      %v5207 = vsel %vm5177, %v5132, %v4961
      %v5208 = vsel %vm5177, %v5136, %v4962
      %v5209 = vsel %vm5177, %v5139, %v4963
      %v5210 = vld [vmem:[%s2104] sm:$0xf]
      %v5211 = vld [vmem:[%s2104 + $0x4] sm:$0xf]
      %v5212 = vld [vmem:[%s2104 + $0xc] sm:$0xf]
      %v5213 = vld [vmem:[%s2104 + $0x10] sm:$0xf]
      %v5214 = vld [vmem:[%s2104 + $0x18] sm:$0xf]
      %v5215 = vld [vmem:[%s2104 + $0x1c] sm:$0xf]
      %v5216 = vld [vmem:[%s2104 + $0x24] sm:$0xf]
      %v5217 = vld [vmem:[%s2104 + $0x28] sm:$0xf]
      %v5218 = vld [vmem:[%s2104 + $0x30] sm:$0xf]
      %v5219 = vld [vmem:[%s2104 + $0x34] sm:$0xf]
      %v5220 = vld [vmem:[%s2104 + $0x3c] sm:$0xf]
      %v5221 = vld [vmem:[%s2104 + $0x40] sm:$0xf]
      %v5222 = vld [vmem:[%s2104 + $0x48] sm:$0xf]
      %v5223 = vld [vmem:[%s2104 + $0x4c] sm:$0xf]
      %v5224 = vld [vmem:[%s2104 + $0x54] sm:$0xf]
      %v5225 = vld [vmem:[%s2104 + $0x58] sm:$0xf]
      %v5226 = vld [vmem:[%s2104 + $0x60] sm:$0xf]
      %v5227 = vld [vmem:[%s2104 + $0x64] sm:$0xf]
      %v5228 = vld [vmem:[%s2104 + $0x6c] sm:$0xf]
      %v5229 = vld [vmem:[%s2104 + $0x70] sm:$0xf]
      %v5230 = vld [vmem:[%s2104 + $0x78] sm:$0xf]
      %v5231 = vld [vmem:[%s2104 + $0x7c] sm:$0xf]
      %v5232 = vld [vmem:[%s2104 + $0x84] sm:$0xf]
      %v5233 = vld [vmem:[%s2104 + $0x88] sm:$0xf]
      %v5234 = vld [vmem:[%s2104 + $0x90] sm:$0xf]
      %v5235 = vld [vmem:[%s2104 + $0x94] sm:$0xf]
      %v5236 = vld [vmem:[%s2104 + $0x9c] sm:$0xf]
      %v5237 = vld [vmem:[%s2104 + $0xa0] sm:$0xf]
      %v5238 = vld [vmem:[%s2104 + $0xa8] sm:$0xf]
      %v5239 = vld [vmem:[%s2104 + $0xac] sm:$0xf]
      %v5240 = vld [vmem:[%s2104 + $0xb4] sm:$0xf]
      %v5241 = vld [vmem:[%s2104 + $0xb8] sm:$0xf]
      %vm5242 = vcmp.ge.s32.totalorder %v254, 48
      %vm5243 = vcmp.lt.s32.totalorder %v254, 56
      %vm5244 = vmand %vm5242, %vm5243
      %v5245 = vsel %vm5244, 1, 0
      %vm5246 = vcmp.eq.s32.totalorder %v5245, 1
      %vm5247 = vmpackc.low %vm5246, %vm5246
      %v5248 = vsel %vm5247, %v5210, %v5178
      %v5249 = vsel %vm5247, %v5211, %v5179
      %v5250 = vsel %vm5247, %v5212, %v5180
      %v5251 = vsel %vm5247, %v5213, %v5181
      %v5252 = vsel %vm5247, %v5214, %v5182
      %v5253 = vsel %vm5247, %v5215, %v5183
      %v5254 = vsel %vm5247, %v5216, %v5184
      %v5255 = vsel %vm5247, %v5217, %v5185
      %v5256 = vsel %vm5247, %v5218, %v5186
      %v5257 = vsel %vm5247, %v5219, %v5187
      %v5258 = vsel %vm5247, %v5220, %v5188
      %v5259 = vsel %vm5247, %v5221, %v5189
      %v5260 = vsel %vm5247, %v5222, %v5190
      %v5261 = vsel %vm5247, %v5223, %v5191
      %v5262 = vsel %vm5247, %v5224, %v5192
      %v5263 = vsel %vm5247, %v5225, %v5193
      %v5264 = vsel %vm5247, %v5226, %v5194
      %v5265 = vsel %vm5247, %v5227, %v5195
      %v5266 = vsel %vm5247, %v5228, %v5196
      %v5267 = vsel %vm5247, %v5229, %v5197
      %v5268 = vsel %vm5247, %v5230, %v5198
      %v5269 = vsel %vm5247, %v5231, %v5199
      %v5270 = vsel %vm5247, %v5232, %v5200
      %v5271 = vsel %vm5247, %v5233, %v5201
      %v5272 = vsel %vm5247, %v5234, %v5202
      %v5273 = vsel %vm5247, %v5235, %v5203
      %v5274 = vsel %vm5247, %v5236, %v5204
      %v5275 = vsel %vm5247, %v5237, %v5205
      %v5276 = vsel %vm5247, %v5238, %v5206
      %v5277 = vsel %vm5247, %v5239, %v5207
      %v5278 = vsel %vm5247, %v5240, %v5208
      %v5279 = vsel %vm5247, %v5241, %v5209
      %v5280 = vld [vmem:[%s2104 + $0x8] sm:$0x1]
      %v5281 = vld [vmem:[%s2104 + $0x14] sm:$0x1]
      %v5282 = vld [vmem:[%s2104 + $0x20] sm:$0x1]
      %v5283 = vld [vmem:[%s2104 + $0x2c] sm:$0x1]
      %v5284 = vld [vmem:[%s2104 + $0x38] sm:$0x1]
      %v5285 = vld [vmem:[%s2104 + $0x44] sm:$0x1]
      %v5286 = vld [vmem:[%s2104 + $0x50] sm:$0x1]
      %v5287 = vld [vmem:[%s2104 + $0x5c] sm:$0x1]
      %v5288 = vld [vmem:[%s2104 + $0x68] sm:$0x1]
      %v5289 = vld [vmem:[%s2104 + $0x74] sm:$0x1]
      %v5290 = vld [vmem:[%s2104 + $0x80] sm:$0x1]
      %v5291 = vld [vmem:[%s2104 + $0x8c] sm:$0x1]
      %v5292 = vld [vmem:[%s2104 + $0x98] sm:$0x1]
      %v5293 = vld [vmem:[%s2104 + $0xa4] sm:$0x1]
      %v5294 = vld [vmem:[%s2104 + $0xb0] sm:$0x1]
      %v5295 = vld [vmem:[%s2104 + $0xbc] sm:$0x1]
      %v5297 = vshrl.u32 %v5210, 16
      %v5299 = vrot.slane %v5297, 4
      %v5300 = vshll.u32 %v5210, 16
      %v5302 = vrot.slane %v5300, 5
      %v5303 = vor.u32 %v5299, %v5302
      %v5304 = vrot.slane %v5303, 4
      %v5306 = vshll.u32 %v5211, 16
      %v5308 = vrot.slane %v5306, 5
      %v5309 = vsel %vm613, %v5304, %v5308
      %v5310 = vshrl.u32 %v5211, 16
      %v5312 = vrot.slane %v5310, 4
      %v5313 = vor.u32 %v5312, %v5308
      %v5314 = vrot.slane %v5313, 4
      %v5316 = vshll.u32 %v5280, 16
      %v5318 = vrot.slane %v5316, 5
      %v5319 = vsel %vm613, %v5314, %v5318
      %v5321 = vshrl.u32 %v5212, 16
      %v5323 = vrot.slane %v5321, 4
      %v5324 = vshll.u32 %v5212, 16
      %v5326 = vrot.slane %v5324, 5
      %v5327 = vor.u32 %v5323, %v5326
      %v5328 = vrot.slane %v5327, 4
      %v5330 = vshll.u32 %v5213, 16
      %v5332 = vrot.slane %v5330, 5
      %v5333 = vsel %vm613, %v5328, %v5332
      %v5334 = vshrl.u32 %v5213, 16
      %v5336 = vrot.slane %v5334, 4
      %v5337 = vor.u32 %v5336, %v5332
      %v5338 = vrot.slane %v5337, 4
      %v5340 = vshll.u32 %v5281, 16
      %v5342 = vrot.slane %v5340, 5
      %v5343 = vsel %vm613, %v5338, %v5342
      %v5345 = vshrl.u32 %v5214, 16
      %v5347 = vrot.slane %v5345, 4
      %v5348 = vshll.u32 %v5214, 16
      %v5350 = vrot.slane %v5348, 5
      %v5351 = vor.u32 %v5347, %v5350
      %v5352 = vrot.slane %v5351, 4
      %v5354 = vshll.u32 %v5215, 16
      %v5356 = vrot.slane %v5354, 5
      %v5357 = vsel %vm613, %v5352, %v5356
      %v5358 = vshrl.u32 %v5215, 16
      %v5360 = vrot.slane %v5358, 4
      %v5361 = vor.u32 %v5360, %v5356
      %v5362 = vrot.slane %v5361, 4
      %v5364 = vshll.u32 %v5282, 16
      %v5366 = vrot.slane %v5364, 5
      %v5367 = vsel %vm613, %v5362, %v5366
      %v5369 = vshrl.u32 %v5216, 16
      %v5371 = vrot.slane %v5369, 4
      %v5372 = vshll.u32 %v5216, 16
      %v5374 = vrot.slane %v5372, 5
      %v5375 = vor.u32 %v5371, %v5374
      %v5376 = vrot.slane %v5375, 4
      %v5378 = vshll.u32 %v5217, 16
      %v5380 = vrot.slane %v5378, 5
      %v5381 = vsel %vm613, %v5376, %v5380
      %v5382 = vshrl.u32 %v5217, 16
      %v5384 = vrot.slane %v5382, 4
      %v5385 = vor.u32 %v5384, %v5380
      %v5386 = vrot.slane %v5385, 4
      %v5388 = vshll.u32 %v5283, 16
      %v5390 = vrot.slane %v5388, 5
      %v5391 = vsel %vm613, %v5386, %v5390
      %v5393 = vshrl.u32 %v5218, 16
      %v5395 = vrot.slane %v5393, 4
      %v5396 = vshll.u32 %v5218, 16
      %v5398 = vrot.slane %v5396, 5
      %v5399 = vor.u32 %v5395, %v5398
      %v5400 = vrot.slane %v5399, 4
      %v5402 = vshll.u32 %v5219, 16
      %v5404 = vrot.slane %v5402, 5
      %v5405 = vsel %vm613, %v5400, %v5404
      %v5406 = vshrl.u32 %v5219, 16
      %v5408 = vrot.slane %v5406, 4
      %v5409 = vor.u32 %v5408, %v5404
      %v5410 = vrot.slane %v5409, 4
      %v5412 = vshll.u32 %v5284, 16
      %v5414 = vrot.slane %v5412, 5
      %v5415 = vsel %vm613, %v5410, %v5414
      %v5417 = vshrl.u32 %v5220, 16
      %v5419 = vrot.slane %v5417, 4
      %v5420 = vshll.u32 %v5220, 16
      %v5422 = vrot.slane %v5420, 5
      %v5423 = vor.u32 %v5419, %v5422
      %v5424 = vrot.slane %v5423, 4
      %v5426 = vshll.u32 %v5221, 16
      %v5428 = vrot.slane %v5426, 5
      %v5429 = vsel %vm613, %v5424, %v5428
      %v5430 = vshrl.u32 %v5221, 16
      %v5432 = vrot.slane %v5430, 4
      %v5433 = vor.u32 %v5432, %v5428
      %v5434 = vrot.slane %v5433, 4
      %v5436 = vshll.u32 %v5285, 16
      %v5438 = vrot.slane %v5436, 5
      %v5439 = vsel %vm613, %v5434, %v5438
      %v5441 = vshrl.u32 %v5222, 16
      %v5443 = vrot.slane %v5441, 4
      %v5444 = vshll.u32 %v5222, 16
      %v5446 = vrot.slane %v5444, 5
      %v5447 = vor.u32 %v5443, %v5446
      %v5448 = vrot.slane %v5447, 4
      %v5450 = vshll.u32 %v5223, 16
      %v5452 = vrot.slane %v5450, 5
      %v5453 = vsel %vm613, %v5448, %v5452
      %v5454 = vshrl.u32 %v5223, 16
      %v5456 = vrot.slane %v5454, 4
      %v5457 = vor.u32 %v5456, %v5452
      %v5458 = vrot.slane %v5457, 4
      %v5460 = vshll.u32 %v5286, 16
      %v5462 = vrot.slane %v5460, 5
      %v5463 = vsel %vm613, %v5458, %v5462
      %v5465 = vshrl.u32 %v5224, 16
      %v5467 = vrot.slane %v5465, 4
      %v5468 = vshll.u32 %v5224, 16
      %v5470 = vrot.slane %v5468, 5
      %v5471 = vor.u32 %v5467, %v5470
      %v5472 = vrot.slane %v5471, 4
      %v5474 = vshll.u32 %v5225, 16
      %v5476 = vrot.slane %v5474, 5
      %v5477 = vsel %vm613, %v5472, %v5476
      %v5478 = vshrl.u32 %v5225, 16
      %v5480 = vrot.slane %v5478, 4
      %v5481 = vor.u32 %v5480, %v5476
      %v5482 = vrot.slane %v5481, 4
      %v5484 = vshll.u32 %v5287, 16
      %v5486 = vrot.slane %v5484, 5
      %v5487 = vsel %vm613, %v5482, %v5486
      %v5489 = vshrl.u32 %v5226, 16
      %v5491 = vrot.slane %v5489, 4
      %v5492 = vshll.u32 %v5226, 16
      %v5494 = vrot.slane %v5492, 5
      %v5495 = vor.u32 %v5491, %v5494
      %v5496 = vrot.slane %v5495, 4
      %v5498 = vshll.u32 %v5227, 16
      %v5500 = vrot.slane %v5498, 5
      %v5501 = vsel %vm613, %v5496, %v5500
      %v5502 = vshrl.u32 %v5227, 16
      %v5504 = vrot.slane %v5502, 4
      %v5505 = vor.u32 %v5504, %v5500
      %v5506 = vrot.slane %v5505, 4
      %v5508 = vshll.u32 %v5288, 16
      %v5510 = vrot.slane %v5508, 5
      %v5511 = vsel %vm613, %v5506, %v5510
      %v5513 = vshrl.u32 %v5228, 16
      %v5515 = vrot.slane %v5513, 4
      %v5516 = vshll.u32 %v5228, 16
      %v5518 = vrot.slane %v5516, 5
      %v5519 = vor.u32 %v5515, %v5518
      %v5520 = vrot.slane %v5519, 4
      %v5522 = vshll.u32 %v5229, 16
      %v5524 = vrot.slane %v5522, 5
      %v5525 = vsel %vm613, %v5520, %v5524
      %v5526 = vshrl.u32 %v5229, 16
      %v5528 = vrot.slane %v5526, 4
      %v5529 = vor.u32 %v5528, %v5524
      %v5530 = vrot.slane %v5529, 4
      %v5532 = vshll.u32 %v5289, 16
      %v5534 = vrot.slane %v5532, 5
      %v5535 = vsel %vm613, %v5530, %v5534
      %v5537 = vshrl.u32 %v5230, 16
      %v5539 = vrot.slane %v5537, 4
      %v5540 = vshll.u32 %v5230, 16
      %v5542 = vrot.slane %v5540, 5
      %v5543 = vor.u32 %v5539, %v5542
      %v5544 = vrot.slane %v5543, 4
      %v5546 = vshll.u32 %v5231, 16
      %v5548 = vrot.slane %v5546, 5
      %v5549 = vsel %vm613, %v5544, %v5548
      %v5550 = vshrl.u32 %v5231, 16
      %v5552 = vrot.slane %v5550, 4
      %v5553 = vor.u32 %v5552, %v5548
      %v5554 = vrot.slane %v5553, 4
      %v5556 = vshll.u32 %v5290, 16
      %v5558 = vrot.slane %v5556, 5
      %v5559 = vsel %vm613, %v5554, %v5558
      %v5561 = vshrl.u32 %v5232, 16
      %v5563 = vrot.slane %v5561, 4
      %v5564 = vshll.u32 %v5232, 16
      %v5566 = vrot.slane %v5564, 5
      %v5567 = vor.u32 %v5563, %v5566
      %v5568 = vrot.slane %v5567, 4
      %v5570 = vshll.u32 %v5233, 16
      %v5572 = vrot.slane %v5570, 5
      %v5573 = vsel %vm613, %v5568, %v5572
      %v5574 = vshrl.u32 %v5233, 16
      %v5576 = vrot.slane %v5574, 4
      %v5577 = vor.u32 %v5576, %v5572
      %v5578 = vrot.slane %v5577, 4
      %v5580 = vshll.u32 %v5291, 16
      %v5582 = vrot.slane %v5580, 5
      %v5583 = vsel %vm613, %v5578, %v5582
      %v5585 = vshrl.u32 %v5234, 16
      %v5587 = vrot.slane %v5585, 4
      %v5588 = vshll.u32 %v5234, 16
      %v5590 = vrot.slane %v5588, 5
      %v5591 = vor.u32 %v5587, %v5590
      %v5592 = vrot.slane %v5591, 4
      %v5594 = vshll.u32 %v5235, 16
      %v5596 = vrot.slane %v5594, 5
      %v5597 = vsel %vm613, %v5592, %v5596
      %v5598 = vshrl.u32 %v5235, 16
      %v5600 = vrot.slane %v5598, 4
      %v5601 = vor.u32 %v5600, %v5596
      %v5602 = vrot.slane %v5601, 4
      %v5604 = vshll.u32 %v5292, 16
      %v5606 = vrot.slane %v5604, 5
      %v5607 = vsel %vm613, %v5602, %v5606
      %v5609 = vshrl.u32 %v5236, 16
      %v5611 = vrot.slane %v5609, 4
      %v5612 = vshll.u32 %v5236, 16
      %v5614 = vrot.slane %v5612, 5
      %v5615 = vor.u32 %v5611, %v5614
      %v5616 = vrot.slane %v5615, 4
      %v5618 = vshll.u32 %v5237, 16
      %v5620 = vrot.slane %v5618, 5
      %v5621 = vsel %vm613, %v5616, %v5620
      %v5622 = vshrl.u32 %v5237, 16
      %v5624 = vrot.slane %v5622, 4
      %v5625 = vor.u32 %v5624, %v5620
      %v5626 = vrot.slane %v5625, 4
      %v5628 = vshll.u32 %v5293, 16
      %v5630 = vrot.slane %v5628, 5
      %v5631 = vsel %vm613, %v5626, %v5630
      %v5633 = vshrl.u32 %v5238, 16
      %v5635 = vrot.slane %v5633, 4
      %v5636 = vshll.u32 %v5238, 16
      %v5638 = vrot.slane %v5636, 5
      %v5639 = vor.u32 %v5635, %v5638
      %v5640 = vrot.slane %v5639, 4
      %v5642 = vshll.u32 %v5239, 16
      %v5644 = vrot.slane %v5642, 5
      %v5645 = vsel %vm613, %v5640, %v5644
      %v5646 = vshrl.u32 %v5239, 16
      %v5648 = vrot.slane %v5646, 4
      %v5649 = vor.u32 %v5648, %v5644
      %v5650 = vrot.slane %v5649, 4
      %v5652 = vshll.u32 %v5294, 16
      %v5654 = vrot.slane %v5652, 5
      %v5655 = vsel %vm613, %v5650, %v5654
      %v5657 = vshrl.u32 %v5240, 16
      %v5659 = vrot.slane %v5657, 4
      %v5660 = vshll.u32 %v5240, 16
      %v5662 = vrot.slane %v5660, 5
      %v5663 = vor.u32 %v5659, %v5662
      %v5664 = vrot.slane %v5663, 4
      %v5666 = vshll.u32 %v5241, 16
      %v5668 = vrot.slane %v5666, 5
      %v5669 = vsel %vm613, %v5664, %v5668
      %v5670 = vshrl.u32 %v5241, 16
      %v5672 = vrot.slane %v5670, 4
      %v5673 = vor.u32 %v5672, %v5668
      %v5674 = vrot.slane %v5673, 4
      %v5676 = vshll.u32 %v5295, 16
      %v5678 = vrot.slane %v5676, 5
      %v5679 = vsel %vm613, %v5674, %v5678
      %vm5712 = vcmp.ge.s32.totalorder %v254, 56
      %vm5713 = vcmp.lt.s32.totalorder %v254, 64
      %vm5714 = vmand %vm5712, %vm5713
      %v5715 = vsel %vm5714, 1, 0
      %vm5716 = vcmp.eq.s32.totalorder %v5715, 1
      %vm5717 = vmpackc.low %vm5716, %vm5716
      %v5718 = vsel %vm5717, %v5309, %v5248
      %v5719 = vsel %vm5717, %v5319, %v5249
      %v5720 = vsel %vm5717, %v5333, %v5250
      %v5721 = vsel %vm5717, %v5343, %v5251
      %v5722 = vsel %vm5717, %v5357, %v5252
      %v5723 = vsel %vm5717, %v5367, %v5253
      %v5724 = vsel %vm5717, %v5381, %v5254
      %v5725 = vsel %vm5717, %v5391, %v5255
      %v5726 = vsel %vm5717, %v5405, %v5256
      %v5727 = vsel %vm5717, %v5415, %v5257
      %v5728 = vsel %vm5717, %v5429, %v5258
      %v5729 = vsel %vm5717, %v5439, %v5259
      %v5730 = vsel %vm5717, %v5453, %v5260
      %v5731 = vsel %vm5717, %v5463, %v5261
      %v5732 = vsel %vm5717, %v5477, %v5262
      %v5733 = vsel %vm5717, %v5487, %v5263
      %v5734 = vsel %vm5717, %v5501, %v5264
      %v5735 = vsel %vm5717, %v5511, %v5265
      %v5736 = vsel %vm5717, %v5525, %v5266
      %v5737 = vsel %vm5717, %v5535, %v5267
      %v5738 = vsel %vm5717, %v5549, %v5268
      %v5739 = vsel %vm5717, %v5559, %v5269
      %v5740 = vsel %vm5717, %v5573, %v5270
      %v5741 = vsel %vm5717, %v5583, %v5271
      %v5742 = vsel %vm5717, %v5597, %v5272
      %v5743 = vsel %vm5717, %v5607, %v5273
      %v5744 = vsel %vm5717, %v5621, %v5274
      %v5745 = vsel %vm5717, %v5631, %v5275
      %v5746 = vsel %vm5717, %v5645, %v5276
      %v5747 = vsel %vm5717, %v5655, %v5277
      %v5748 = vsel %vm5717, %v5669, %v5278
      %v5749 = vsel %vm5717, %v5679, %v5279
      %v5750 = vld [vmem:[%s2104] sm:$0xe]
      %v5751 = vld [vmem:[%s2104 + $0xc] sm:$0xe]
      %v5752 = vld [vmem:[%s2104 + $0x18] sm:$0xe]
      %v5753 = vld [vmem:[%s2104 + $0x24] sm:$0xe]
      %v5754 = vld [vmem:[%s2104 + $0x30] sm:$0xe]
      %v5755 = vld [vmem:[%s2104 + $0x3c] sm:$0xe]
      %v5756 = vld [vmem:[%s2104 + $0x48] sm:$0xe]
      %v5757 = vld [vmem:[%s2104 + $0x54] sm:$0xe]
      %v5758 = vld [vmem:[%s2104 + $0x60] sm:$0xe]
      %v5759 = vld [vmem:[%s2104 + $0x6c] sm:$0xe]
      %v5760 = vld [vmem:[%s2104 + $0x78] sm:$0xe]
      %v5761 = vld [vmem:[%s2104 + $0x84] sm:$0xe]
      %v5762 = vld [vmem:[%s2104 + $0x90] sm:$0xe]
      %v5763 = vld [vmem:[%s2104 + $0x9c] sm:$0xe]
      %v5764 = vld [vmem:[%s2104 + $0xa8] sm:$0xe]
      %v5765 = vld [vmem:[%s2104 + $0xb4] sm:$0xe]
      %v5814 = vrot.slane %v5750, 5
      %v5815 = vrot.slane %v5814, 4
      %v5816 = vrot.slane %v5211, 5
      %v5817 = vsel %vm1134, %v5815, %v5816
      %v5818 = vrot.slane %v5816, 4
      %v5819 = vrot.slane %v5280, 5
      %v5820 = vsel %vm1134, %v5818, %v5819
      %v5821 = vrot.slane %v5751, 5
      %v5822 = vrot.slane %v5821, 4
      %v5823 = vrot.slane %v5213, 5
      %v5824 = vsel %vm1134, %v5822, %v5823
      %v5825 = vrot.slane %v5823, 4
      %v5826 = vrot.slane %v5281, 5
      %v5827 = vsel %vm1134, %v5825, %v5826
      %v5828 = vrot.slane %v5752, 5
      %v5829 = vrot.slane %v5828, 4
      %v5830 = vrot.slane %v5215, 5
      %v5831 = vsel %vm1134, %v5829, %v5830
      %v5832 = vrot.slane %v5830, 4
      %v5833 = vrot.slane %v5282, 5
      %v5834 = vsel %vm1134, %v5832, %v5833
      %v5835 = vrot.slane %v5753, 5
      %v5836 = vrot.slane %v5835, 4
      %v5837 = vrot.slane %v5217, 5
      %v5838 = vsel %vm1134, %v5836, %v5837
      %v5839 = vrot.slane %v5837, 4
      %v5840 = vrot.slane %v5283, 5
      %v5841 = vsel %vm1134, %v5839, %v5840
      %v5842 = vrot.slane %v5754, 5
      %v5843 = vrot.slane %v5842, 4
      %v5844 = vrot.slane %v5219, 5
      %v5845 = vsel %vm1134, %v5843, %v5844
      %v5846 = vrot.slane %v5844, 4
      %v5847 = vrot.slane %v5284, 5
      %v5848 = vsel %vm1134, %v5846, %v5847
      %v5849 = vrot.slane %v5755, 5
      %v5850 = vrot.slane %v5849, 4
      %v5851 = vrot.slane %v5221, 5
      %v5852 = vsel %vm1134, %v5850, %v5851
      %v5853 = vrot.slane %v5851, 4
      %v5854 = vrot.slane %v5285, 5
      %v5855 = vsel %vm1134, %v5853, %v5854
      %v5856 = vrot.slane %v5756, 5
      %v5857 = vrot.slane %v5856, 4
      %v5858 = vrot.slane %v5223, 5
      %v5859 = vsel %vm1134, %v5857, %v5858
      %v5860 = vrot.slane %v5858, 4
      %v5861 = vrot.slane %v5286, 5
      %v5862 = vsel %vm1134, %v5860, %v5861
      %v5863 = vrot.slane %v5757, 5
      %v5864 = vrot.slane %v5863, 4
      %v5865 = vrot.slane %v5225, 5
      %v5866 = vsel %vm1134, %v5864, %v5865
      %v5867 = vrot.slane %v5865, 4
      %v5868 = vrot.slane %v5287, 5
      %v5869 = vsel %vm1134, %v5867, %v5868
      %v5870 = vrot.slane %v5758, 5
      %v5871 = vrot.slane %v5870, 4
      %v5872 = vrot.slane %v5227, 5
      %v5873 = vsel %vm1134, %v5871, %v5872
      %v5874 = vrot.slane %v5872, 4
      %v5875 = vrot.slane %v5288, 5
      %v5876 = vsel %vm1134, %v5874, %v5875
      %v5877 = vrot.slane %v5759, 5
      %v5878 = vrot.slane %v5877, 4
      %v5879 = vrot.slane %v5229, 5
      %v5880 = vsel %vm1134, %v5878, %v5879
      %v5881 = vrot.slane %v5879, 4
      %v5882 = vrot.slane %v5289, 5
      %v5883 = vsel %vm1134, %v5881, %v5882
      %v5884 = vrot.slane %v5760, 5
      %v5885 = vrot.slane %v5884, 4
      %v5886 = vrot.slane %v5231, 5
      %v5887 = vsel %vm1134, %v5885, %v5886
      %v5888 = vrot.slane %v5886, 4
      %v5889 = vrot.slane %v5290, 5
      %v5890 = vsel %vm1134, %v5888, %v5889
      %v5891 = vrot.slane %v5761, 5
      %v5892 = vrot.slane %v5891, 4
      %v5893 = vrot.slane %v5233, 5
      %v5894 = vsel %vm1134, %v5892, %v5893
      %v5895 = vrot.slane %v5893, 4
      %v5896 = vrot.slane %v5291, 5
      %v5897 = vsel %vm1134, %v5895, %v5896
      %v5898 = vrot.slane %v5762, 5
      %v5899 = vrot.slane %v5898, 4
      %v5900 = vrot.slane %v5235, 5
      %v5901 = vsel %vm1134, %v5899, %v5900
      %v5902 = vrot.slane %v5900, 4
      %v5903 = vrot.slane %v5292, 5
      %v5904 = vsel %vm1134, %v5902, %v5903
      %v5905 = vrot.slane %v5763, 5
      %v5906 = vrot.slane %v5905, 4
      %v5907 = vrot.slane %v5237, 5
      %v5908 = vsel %vm1134, %v5906, %v5907
      %v5909 = vrot.slane %v5907, 4
      %v5910 = vrot.slane %v5293, 5
      %v5911 = vsel %vm1134, %v5909, %v5910
      %v5912 = vrot.slane %v5764, 5
      %v5913 = vrot.slane %v5912, 4
      %v5914 = vrot.slane %v5239, 5
      %v5915 = vsel %vm1134, %v5913, %v5914
      %v5916 = vrot.slane %v5914, 4
      %v5917 = vrot.slane %v5294, 5
      %v5918 = vsel %vm1134, %v5916, %v5917
      %v5919 = vrot.slane %v5765, 5
      %v5920 = vrot.slane %v5919, 4
      %v5921 = vrot.slane %v5241, 5
      %v5922 = vsel %vm1134, %v5920, %v5921
      %v5923 = vrot.slane %v5921, 4
      %v5924 = vrot.slane %v5295, 5
      %v5925 = vsel %vm1134, %v5923, %v5924
      %vm5958 = vcmp.ge.s32.totalorder %v254, 64
      %vm5959 = vcmp.lt.s32.totalorder %v254, 72
      %vm5960 = vmand %vm5958, %vm5959
      %v5961 = vsel %vm5960, 1, 0
      %vm5962 = vcmp.eq.s32.totalorder %v5961, 1
      %vm5963 = vmpackc.low %vm5962, %vm5962
      %v5964 = vsel %vm5963, %v5817, %v5718
      %v5965 = vsel %vm5963, %v5820, %v5719
      %v5966 = vsel %vm5963, %v5824, %v5720
      %v5967 = vsel %vm5963, %v5827, %v5721
      %v5968 = vsel %vm5963, %v5831, %v5722
      %v5969 = vsel %vm5963, %v5834, %v5723
      %v5970 = vsel %vm5963, %v5838, %v5724
      %v5971 = vsel %vm5963, %v5841, %v5725
      %v5972 = vsel %vm5963, %v5845, %v5726
      %v5973 = vsel %vm5963, %v5848, %v5727
      %v5974 = vsel %vm5963, %v5852, %v5728
      %v5975 = vsel %vm5963, %v5855, %v5729
      %v5976 = vsel %vm5963, %v5859, %v5730
      %v5977 = vsel %vm5963, %v5862, %v5731
      %v5978 = vsel %vm5963, %v5866, %v5732
      %v5979 = vsel %vm5963, %v5869, %v5733
      %v5980 = vsel %vm5963, %v5873, %v5734
      %v5981 = vsel %vm5963, %v5876, %v5735
      %v5982 = vsel %vm5963, %v5880, %v5736
      %v5983 = vsel %vm5963, %v5883, %v5737
      %v5984 = vsel %vm5963, %v5887, %v5738
      %v5985 = vsel %vm5963, %v5890, %v5739
      %v5986 = vsel %vm5963, %v5894, %v5740
      %v5987 = vsel %vm5963, %v5897, %v5741
      %v5988 = vsel %vm5963, %v5901, %v5742
      %v5989 = vsel %vm5963, %v5904, %v5743
      %v5990 = vsel %vm5963, %v5908, %v5744
      %v5991 = vsel %vm5963, %v5911, %v5745
      %v5992 = vsel %vm5963, %v5915, %v5746
      %v5993 = vsel %vm5963, %v5918, %v5747
      %v5994 = vsel %vm5963, %v5922, %v5748
      %v5995 = vsel %vm5963, %v5925, %v5749
      %v5996 = vld [vmem:[%s3] sm:$0xf]
      %v5997 = vld [vmem:[%s3 + $0x4] sm:$0xf]
      %v5998 = vld [vmem:[%s3 + $0x8] sm:$0xf]
      %v5999 = vld [vmem:[%s3 + $0xc] sm:$0xf]
      %v6000 = vld [vmem:[%s3 + $0x10] sm:$0xf]
      %v6001 = vld [vmem:[%s3 + $0x14] sm:$0xf]
      %v6002 = vld [vmem:[%s3 + $0x18] sm:$0xf]
      %v6003 = vld [vmem:[%s3 + $0x1c] sm:$0xf]
      %v6004 = vld [vmem:[%s3 + $0x20] sm:$0xf]
      %v6005 = vld [vmem:[%s3 + $0x24] sm:$0xf]
      %v6006 = vld [vmem:[%s3 + $0x28] sm:$0xf]
      %v6007 = vld [vmem:[%s3 + $0x2c] sm:$0xf]
      %v6008 = vld [vmem:[%s3 + $0x30] sm:$0xf]
      %v6009 = vld [vmem:[%s3 + $0x34] sm:$0xf]
      %v6010 = vld [vmem:[%s3 + $0x38] sm:$0xf]
      %v6011 = vld [vmem:[%s3 + $0x3c] sm:$0xf]
      %s6012 = scalar_lea.vmem %s246, 12
      %v6013 = vld [vmem:[%s6012] sm:$0xf]
      %v6014 = vld [vmem:[%s6012 + $0x4] sm:$0xf]
      %v6015 = vld [vmem:[%s6012 + $0x8] sm:$0x1]
      %v6016 = vld [vmem:[%s6012 + $0xc] sm:$0xf]
      %v6017 = vld [vmem:[%s6012 + $0x10] sm:$0xf]
      %v6018 = vld [vmem:[%s6012 + $0x14] sm:$0x1]
      %v6019 = vld [vmem:[%s6012 + $0x18] sm:$0xf]
      %v6020 = vld [vmem:[%s6012 + $0x1c] sm:$0xf]
      %v6021 = vld [vmem:[%s6012 + $0x20] sm:$0x1]
      %v6022 = vld [vmem:[%s6012 + $0x24] sm:$0xf]
      %v6023 = vld [vmem:[%s6012 + $0x28] sm:$0xf]
      %v6024 = vld [vmem:[%s6012 + $0x2c] sm:$0x1]
      %v6025 = vld [vmem:[%s6012 + $0x30] sm:$0xf]
      %v6026 = vld [vmem:[%s6012 + $0x34] sm:$0xf]
      %v6027 = vld [vmem:[%s6012 + $0x38] sm:$0x1]
      %v6028 = vld [vmem:[%s6012 + $0x3c] sm:$0xf]
      %v6029 = vld [vmem:[%s6012 + $0x40] sm:$0xf]
      %v6030 = vld [vmem:[%s6012 + $0x44] sm:$0x1]
      %v6031 = vld [vmem:[%s6012 + $0x48] sm:$0xf]
      %v6032 = vld [vmem:[%s6012 + $0x4c] sm:$0xf]
      %v6033 = vld [vmem:[%s6012 + $0x50] sm:$0x1]
      %v6034 = vld [vmem:[%s6012 + $0x54] sm:$0xf]
      %v6035 = vld [vmem:[%s6012 + $0x58] sm:$0xf]
      %v6036 = vld [vmem:[%s6012 + $0x5c] sm:$0x1]
      %v6037 = vld [vmem:[%s6012 + $0x60] sm:$0xf]
      %v6038 = vld [vmem:[%s6012 + $0x64] sm:$0xf]
      %v6039 = vld [vmem:[%s6012 + $0x68] sm:$0x1]
      %v6040 = vld [vmem:[%s6012 + $0x6c] sm:$0xf]
      %v6041 = vld [vmem:[%s6012 + $0x70] sm:$0xf]
      %v6042 = vld [vmem:[%s6012 + $0x74] sm:$0x1]
      %v6043 = vld [vmem:[%s6012 + $0x78] sm:$0xf]
      %v6044 = vld [vmem:[%s6012 + $0x7c] sm:$0xf]
      %v6045 = vld [vmem:[%s6012 + $0x80] sm:$0x1]
      %v6046 = vld [vmem:[%s6012 + $0x84] sm:$0xf]
      %v6047 = vld [vmem:[%s6012 + $0x88] sm:$0xf]
      %v6048 = vld [vmem:[%s6012 + $0x8c] sm:$0x1]
      %v6049 = vld [vmem:[%s6012 + $0x90] sm:$0xf]
      %v6050 = vld [vmem:[%s6012 + $0x94] sm:$0xf]
      %v6051 = vld [vmem:[%s6012 + $0x98] sm:$0x1]
      %v6052 = vld [vmem:[%s6012 + $0x9c] sm:$0xf]
      %v6053 = vld [vmem:[%s6012 + $0xa0] sm:$0xf]
      %v6054 = vld [vmem:[%s6012 + $0xa4] sm:$0x1]
      %v6055 = vld [vmem:[%s6012 + $0xa8] sm:$0xf]
      %v6056 = vld [vmem:[%s6012 + $0xac] sm:$0xf]
      %v6057 = vld [vmem:[%s6012 + $0xb0] sm:$0x1]
      %v6058 = vld [vmem:[%s6012 + $0xb4] sm:$0xf]
      %v6059 = vld [vmem:[%s6012 + $0xb8] sm:$0xf]
      %v6060 = vld [vmem:[%s6012 + $0xbc] sm:$0x1]
      %v6062 = vshrl.u32 %v6013, 16
      %v6064 = vrot.slane %v6062, 4
      %v6065 = vshll.u32 %v6013, 16
      %v6067 = vrot.slane %v6065, 5
      %v6068 = vor.u32 %v6064, %v6067
      %v6069 = vrot.slane %v6068, 4
      %v6071 = vshll.u32 %v6014, 16
      %v6073 = vrot.slane %v6071, 5
      %v6074 = vsel %vm613, %v6069, %v6073
      %v6075 = vshrl.u32 %v6014, 16
      %v6077 = vrot.slane %v6075, 4
      %v6078 = vor.u32 %v6077, %v6073
      %v6079 = vrot.slane %v6078, 4
      %v6081 = vshll.u32 %v6015, 16
      %v6083 = vrot.slane %v6081, 5
      %v6084 = vsel %vm613, %v6079, %v6083
      %v6086 = vshrl.u32 %v6016, 16
      %v6088 = vrot.slane %v6086, 4
      %v6089 = vshll.u32 %v6016, 16
      %v6091 = vrot.slane %v6089, 5
      %v6092 = vor.u32 %v6088, %v6091
      %v6093 = vrot.slane %v6092, 4
      %v6095 = vshll.u32 %v6017, 16
      %v6097 = vrot.slane %v6095, 5
      %v6098 = vsel %vm613, %v6093, %v6097
      %v6099 = vshrl.u32 %v6017, 16
      %v6101 = vrot.slane %v6099, 4
      %v6102 = vor.u32 %v6101, %v6097
      %v6103 = vrot.slane %v6102, 4
      %v6105 = vshll.u32 %v6018, 16
      %v6107 = vrot.slane %v6105, 5
      %v6108 = vsel %vm613, %v6103, %v6107
      %v6110 = vshrl.u32 %v6019, 16
      %v6112 = vrot.slane %v6110, 4
      %v6113 = vshll.u32 %v6019, 16
      %v6115 = vrot.slane %v6113, 5
      %v6116 = vor.u32 %v6112, %v6115
      %v6117 = vrot.slane %v6116, 4
      %v6119 = vshll.u32 %v6020, 16
      %v6121 = vrot.slane %v6119, 5
      %v6122 = vsel %vm613, %v6117, %v6121
      %v6123 = vshrl.u32 %v6020, 16
      %v6125 = vrot.slane %v6123, 4
      %v6126 = vor.u32 %v6125, %v6121
      %v6127 = vrot.slane %v6126, 4
      %v6129 = vshll.u32 %v6021, 16
      %v6131 = vrot.slane %v6129, 5
      %v6132 = vsel %vm613, %v6127, %v6131
      %v6134 = vshrl.u32 %v6022, 16
      %v6136 = vrot.slane %v6134, 4
      %v6137 = vshll.u32 %v6022, 16
      %v6139 = vrot.slane %v6137, 5
      %v6140 = vor.u32 %v6136, %v6139
      %v6141 = vrot.slane %v6140, 4
      %v6143 = vshll.u32 %v6023, 16
      %v6145 = vrot.slane %v6143, 5
      %v6146 = vsel %vm613, %v6141, %v6145
      %v6147 = vshrl.u32 %v6023, 16
      %v6149 = vrot.slane %v6147, 4
      %v6150 = vor.u32 %v6149, %v6145
      %v6151 = vrot.slane %v6150, 4
      %v6153 = vshll.u32 %v6024, 16
      %v6155 = vrot.slane %v6153, 5
      %v6156 = vsel %vm613, %v6151, %v6155
      %v6158 = vshrl.u32 %v6025, 16
      %v6160 = vrot.slane %v6158, 4
      %v6161 = vshll.u32 %v6025, 16
      %v6163 = vrot.slane %v6161, 5
      %v6164 = vor.u32 %v6160, %v6163
      %v6165 = vrot.slane %v6164, 4
      %v6167 = vshll.u32 %v6026, 16
      %v6169 = vrot.slane %v6167, 5
      %v6170 = vsel %vm613, %v6165, %v6169
      %v6171 = vshrl.u32 %v6026, 16
      %v6173 = vrot.slane %v6171, 4
      %v6174 = vor.u32 %v6173, %v6169
      %v6175 = vrot.slane %v6174, 4
      %v6177 = vshll.u32 %v6027, 16
      %v6179 = vrot.slane %v6177, 5
      %v6180 = vsel %vm613, %v6175, %v6179
      %v6182 = vshrl.u32 %v6028, 16
      %v6184 = vrot.slane %v6182, 4
      %v6185 = vshll.u32 %v6028, 16
      %v6187 = vrot.slane %v6185, 5
      %v6188 = vor.u32 %v6184, %v6187
      %v6189 = vrot.slane %v6188, 4
      %v6191 = vshll.u32 %v6029, 16
      %v6193 = vrot.slane %v6191, 5
      %v6194 = vsel %vm613, %v6189, %v6193
      %v6195 = vshrl.u32 %v6029, 16
      %v6197 = vrot.slane %v6195, 4
      %v6198 = vor.u32 %v6197, %v6193
      %v6199 = vrot.slane %v6198, 4
      %v6201 = vshll.u32 %v6030, 16
      %v6203 = vrot.slane %v6201, 5
      %v6204 = vsel %vm613, %v6199, %v6203
      %v6206 = vshrl.u32 %v6031, 16
      %v6208 = vrot.slane %v6206, 4
      %v6209 = vshll.u32 %v6031, 16
      %v6211 = vrot.slane %v6209, 5
      %v6212 = vor.u32 %v6208, %v6211
      %v6213 = vrot.slane %v6212, 4
      %v6215 = vshll.u32 %v6032, 16
      %v6217 = vrot.slane %v6215, 5
      %v6218 = vsel %vm613, %v6213, %v6217
      %v6219 = vshrl.u32 %v6032, 16
      %v6221 = vrot.slane %v6219, 4
      %v6222 = vor.u32 %v6221, %v6217
      %v6223 = vrot.slane %v6222, 4
      %v6225 = vshll.u32 %v6033, 16
      %v6227 = vrot.slane %v6225, 5
      %v6228 = vsel %vm613, %v6223, %v6227
      %v6230 = vshrl.u32 %v6034, 16
      %v6232 = vrot.slane %v6230, 4
      %v6233 = vshll.u32 %v6034, 16
      %v6235 = vrot.slane %v6233, 5
      %v6236 = vor.u32 %v6232, %v6235
      %v6237 = vrot.slane %v6236, 4
      %v6239 = vshll.u32 %v6035, 16
      %v6241 = vrot.slane %v6239, 5
      %v6242 = vsel %vm613, %v6237, %v6241
      %v6243 = vshrl.u32 %v6035, 16
      %v6245 = vrot.slane %v6243, 4
      %v6246 = vor.u32 %v6245, %v6241
      %v6247 = vrot.slane %v6246, 4
      %v6249 = vshll.u32 %v6036, 16
      %v6251 = vrot.slane %v6249, 5
      %v6252 = vsel %vm613, %v6247, %v6251
      %v6254 = vshrl.u32 %v6037, 16
      %v6256 = vrot.slane %v6254, 4
      %v6257 = vshll.u32 %v6037, 16
      %v6259 = vrot.slane %v6257, 5
      %v6260 = vor.u32 %v6256, %v6259
      %v6261 = vrot.slane %v6260, 4
      %v6263 = vshll.u32 %v6038, 16
      %v6265 = vrot.slane %v6263, 5
      %v6266 = vsel %vm613, %v6261, %v6265
      %v6267 = vshrl.u32 %v6038, 16
      %v6269 = vrot.slane %v6267, 4
      %v6270 = vor.u32 %v6269, %v6265
      %v6271 = vrot.slane %v6270, 4
      %v6273 = vshll.u32 %v6039, 16
      %v6275 = vrot.slane %v6273, 5
      %v6276 = vsel %vm613, %v6271, %v6275
      %v6278 = vshrl.u32 %v6040, 16
      %v6280 = vrot.slane %v6278, 4
      %v6281 = vshll.u32 %v6040, 16
      %v6283 = vrot.slane %v6281, 5
      %v6284 = vor.u32 %v6280, %v6283
      %v6285 = vrot.slane %v6284, 4
      %v6287 = vshll.u32 %v6041, 16
      %v6289 = vrot.slane %v6287, 5
      %v6290 = vsel %vm613, %v6285, %v6289
      %v6291 = vshrl.u32 %v6041, 16
      %v6293 = vrot.slane %v6291, 4
      %v6294 = vor.u32 %v6293, %v6289
      %v6295 = vrot.slane %v6294, 4
      %v6297 = vshll.u32 %v6042, 16
      %v6299 = vrot.slane %v6297, 5
      %v6300 = vsel %vm613, %v6295, %v6299
      %v6302 = vshrl.u32 %v6043, 16
      %v6304 = vrot.slane %v6302, 4
      %v6305 = vshll.u32 %v6043, 16
      %v6307 = vrot.slane %v6305, 5
      %v6308 = vor.u32 %v6304, %v6307
      %v6309 = vrot.slane %v6308, 4
      %v6311 = vshll.u32 %v6044, 16
      %v6313 = vrot.slane %v6311, 5
      %v6314 = vsel %vm613, %v6309, %v6313
      %v6315 = vshrl.u32 %v6044, 16
      %v6317 = vrot.slane %v6315, 4
      %v6318 = vor.u32 %v6317, %v6313
      %v6319 = vrot.slane %v6318, 4
      %v6321 = vshll.u32 %v6045, 16
      %v6323 = vrot.slane %v6321, 5
      %v6324 = vsel %vm613, %v6319, %v6323
      %v6326 = vshrl.u32 %v6046, 16
      %v6328 = vrot.slane %v6326, 4
      %v6329 = vshll.u32 %v6046, 16
      %v6331 = vrot.slane %v6329, 5
      %v6332 = vor.u32 %v6328, %v6331
      %v6333 = vrot.slane %v6332, 4
      %v6335 = vshll.u32 %v6047, 16
      %v6337 = vrot.slane %v6335, 5
      %v6338 = vsel %vm613, %v6333, %v6337
      %v6339 = vshrl.u32 %v6047, 16
      %v6341 = vrot.slane %v6339, 4
      %v6342 = vor.u32 %v6341, %v6337
      %v6343 = vrot.slane %v6342, 4
      %v6345 = vshll.u32 %v6048, 16
      %v6347 = vrot.slane %v6345, 5
      %v6348 = vsel %vm613, %v6343, %v6347
      %v6350 = vshrl.u32 %v6049, 16
      %v6352 = vrot.slane %v6350, 4
      %v6353 = vshll.u32 %v6049, 16
      %v6355 = vrot.slane %v6353, 5
      %v6356 = vor.u32 %v6352, %v6355
      %v6357 = vrot.slane %v6356, 4
      %v6359 = vshll.u32 %v6050, 16
      %v6361 = vrot.slane %v6359, 5
      %v6362 = vsel %vm613, %v6357, %v6361
      %v6363 = vshrl.u32 %v6050, 16
      %v6365 = vrot.slane %v6363, 4
      %v6366 = vor.u32 %v6365, %v6361
      %v6367 = vrot.slane %v6366, 4
      %v6369 = vshll.u32 %v6051, 16
      %v6371 = vrot.slane %v6369, 5
      %v6372 = vsel %vm613, %v6367, %v6371
      %v6374 = vshrl.u32 %v6052, 16
      %v6376 = vrot.slane %v6374, 4
      %v6377 = vshll.u32 %v6052, 16
      %v6379 = vrot.slane %v6377, 5
      %v6380 = vor.u32 %v6376, %v6379
      %v6381 = vrot.slane %v6380, 4
      %v6383 = vshll.u32 %v6053, 16
      %v6385 = vrot.slane %v6383, 5
      %v6386 = vsel %vm613, %v6381, %v6385
      %v6387 = vshrl.u32 %v6053, 16
      %v6389 = vrot.slane %v6387, 4
      %v6390 = vor.u32 %v6389, %v6385
      %v6391 = vrot.slane %v6390, 4
      %v6393 = vshll.u32 %v6054, 16
      %v6395 = vrot.slane %v6393, 5
      %v6396 = vsel %vm613, %v6391, %v6395
      %v6398 = vshrl.u32 %v6055, 16
      %v6400 = vrot.slane %v6398, 4
      %v6401 = vshll.u32 %v6055, 16
      %v6403 = vrot.slane %v6401, 5
      %v6404 = vor.u32 %v6400, %v6403
      %v6405 = vrot.slane %v6404, 4
      %v6407 = vshll.u32 %v6056, 16
      %v6409 = vrot.slane %v6407, 5
      %v6410 = vsel %vm613, %v6405, %v6409
      %v6411 = vshrl.u32 %v6056, 16
      %v6413 = vrot.slane %v6411, 4
      %v6414 = vor.u32 %v6413, %v6409
      %v6415 = vrot.slane %v6414, 4
      %v6417 = vshll.u32 %v6057, 16
      %v6419 = vrot.slane %v6417, 5
      %v6420 = vsel %vm613, %v6415, %v6419
      %v6422 = vshrl.u32 %v6058, 16
      %v6424 = vrot.slane %v6422, 4
      %v6425 = vshll.u32 %v6058, 16
      %v6427 = vrot.slane %v6425, 5
      %v6428 = vor.u32 %v6424, %v6427
      %v6429 = vrot.slane %v6428, 4
      %v6431 = vshll.u32 %v6059, 16
      %v6433 = vrot.slane %v6431, 5
      %v6434 = vsel %vm613, %v6429, %v6433
      %v6435 = vshrl.u32 %v6059, 16
      %v6437 = vrot.slane %v6435, 4
      %v6438 = vor.u32 %v6437, %v6433
      %v6439 = vrot.slane %v6438, 4
      %v6441 = vshll.u32 %v6060, 16
      %v6443 = vrot.slane %v6441, 5
      %v6444 = vsel %vm613, %v6439, %v6443
      %v6445 = vld [vmem:[%s4] sm:$0xf]
      %v6446 = vld [vmem:[%s4 + $0x4] sm:$0xf]
      %v6447 = vld [vmem:[%s4 + $0x8] sm:$0xf]
      %v6448 = vld [vmem:[%s4 + $0xc] sm:$0xf]
      %v6449 = vld [vmem:[%s4 + $0x10] sm:$0xf]
      %v6450 = vld [vmem:[%s4 + $0x14] sm:$0xf]
      %v6451 = vld [vmem:[%s4 + $0x18] sm:$0xf]
      %v6452 = vld [vmem:[%s4 + $0x1c] sm:$0xf]
      %v6453 = vld [vmem:[%s4 + $0x20] sm:$0xf]
      %v6454 = vld [vmem:[%s4 + $0x24] sm:$0xf]
      %v6455 = vld [vmem:[%s4 + $0x28] sm:$0xf]
      %v6456 = vld [vmem:[%s4 + $0x2c] sm:$0xf]
      %v6457 = vld [vmem:[%s4 + $0x30] sm:$0xf]
      %v6458 = vld [vmem:[%s4 + $0x34] sm:$0xf]
      %v6459 = vld [vmem:[%s4 + $0x38] sm:$0xf]
      %v6460 = vld [vmem:[%s4 + $0x3c] sm:$0xf]
      %v6461 = vunpack.c.l.b16 %v6074
      %v6462 = vunpack.c.l.b16 %v6084
      %v6463 = vunpack.c.l.b16 %v6098
      %v6464 = vunpack.c.l.b16 %v6108
      %v6465 = vunpack.c.l.b16 %v6122
      %v6466 = vunpack.c.l.b16 %v6132
      %v6467 = vunpack.c.l.b16 %v6146
      %v6468 = vunpack.c.l.b16 %v6156
      %v6469 = vunpack.c.l.b16 %v6170
      %v6470 = vunpack.c.l.b16 %v6180
      %v6471 = vunpack.c.l.b16 %v6194
      %v6472 = vunpack.c.l.b16 %v6204
      %v6473 = vunpack.c.l.b16 %v6218
      %v6474 = vunpack.c.l.b16 %v6228
      %v6475 = vunpack.c.l.b16 %v6242
      %v6476 = vunpack.c.l.b16 %v6252
      %v6477 = vunpack.c.l.b16 %v6266
      %v6478 = vunpack.c.l.b16 %v6276
      %v6479 = vunpack.c.l.b16 %v6290
      %v6480 = vunpack.c.l.b16 %v6300
      %v6481 = vunpack.c.l.b16 %v6314
      %v6482 = vunpack.c.l.b16 %v6324
      %v6483 = vunpack.c.l.b16 %v6338
      %v6484 = vunpack.c.l.b16 %v6348
      %v6485 = vunpack.c.l.b16 %v6362
      %v6486 = vunpack.c.l.b16 %v6372
      %v6487 = vunpack.c.l.b16 %v6386
      %v6488 = vunpack.c.l.b16 %v6396
      %v6489 = vunpack.c.l.b16 %v6410
      %v6490 = vunpack.c.l.b16 %v6420
      %v6491 = vunpack.c.l.b16 %v6434
      %v6492 = vunpack.c.l.b16 %v6444
      %v6493 = vpack.c.b16 %v6462, %v6461
      %v6494 = vpack.c.b16 %v6464, %v6463
      %v6495 = vpack.c.b16 %v6466, %v6465
      %v6496 = vpack.c.b16 %v6468, %v6467
      %v6497 = vpack.c.b16 %v6470, %v6469
      %v6498 = vpack.c.b16 %v6472, %v6471
      %v6499 = vpack.c.b16 %v6474, %v6473
      %v6500 = vpack.c.b16 %v6476, %v6475
      %v6501 = vpack.c.b16 %v6478, %v6477
      %v6502 = vpack.c.b16 %v6480, %v6479
      %v6503 = vpack.c.b16 %v6482, %v6481
      %v6504 = vpack.c.b16 %v6484, %v6483
      %v6505 = vpack.c.b16 %v6486, %v6485
      %v6506 = vpack.c.b16 %v6488, %v6487
      %v6507 = vpack.c.b16 %v6490, %v6489
      %v6508 = vpack.c.b16 %v6492, %v6491
      %v6541 = vunpack.c.l.b16 %v6445
      %v6542 = vunpack.c.l.b16 %v6446
      %v6543 = vunpack.c.l.b16 %v6447
      %v6544 = vunpack.c.l.b16 %v6448
      %v6545 = vunpack.c.l.b16 %v6449
      %v6546 = vunpack.c.l.b16 %v6450
      %v6547 = vunpack.c.l.b16 %v6451
      %v6548 = vunpack.c.l.b16 %v6452
      %v6549 = vunpack.c.l.b16 %v6453
      %v6550 = vunpack.c.l.b16 %v6454
      %v6551 = vunpack.c.l.b16 %v6455
      %v6552 = vunpack.c.l.b16 %v6456
      %v6553 = vunpack.c.l.b16 %v6457
      %v6554 = vunpack.c.l.b16 %v6458
      %v6555 = vunpack.c.l.b16 %v6459
      %v6556 = vunpack.c.l.b16 %v6460
      %v6557 = vpack.c.b16 %v6542, %v6541
      %v6558 = vpack.c.b16 %v6544, %v6543
      %v6559 = vpack.c.b16 %v6546, %v6545
      %v6560 = vpack.c.b16 %v6548, %v6547
      %v6561 = vpack.c.b16 %v6550, %v6549
      %v6562 = vpack.c.b16 %v6552, %v6551
      %v6563 = vpack.c.b16 %v6554, %v6553
      %v6564 = vpack.c.b16 %v6556, %v6555
      %6573 = vmatpush.bf16.msra.mxu0 %v6564
      %6574 = vmatpush.bf16.msra.mxu0 %v6563
      %6575 = vmatpush.bf16.msra.mxu0 %v6562
      %6576 = vmatpush.bf16.msra.mxu0 %v6561
      %6577 = vmatpush.bf16.msra.mxu0 %v6560
      %6578 = vmatpush.bf16.msra.mxu0 %v6559
      %6579 = vmatpush.bf16.msra.mxu0 %v6558
      %6580 = vmatpush.bf16.msra.mxu0 %v6557
      %6581 = vmatmul.bf16.gmra.mxu0 %v6493
      %v6582 = vpop.f32.mrf.mxu0
      %v6583 = vadd.f32 0.0, %v6582
      %v6584 = vpop.f32.mrf.mxu0
      %v6585 = vadd.f32 0.0, %v6584
      %6586 = vmatmul.bf16.gmra.mxu0 %v6494
      %v6587 = vpop.f32.mrf.mxu0
      %v6588 = vadd.f32 0.0, %v6587
      %v6589 = vpop.f32.mrf.mxu0
      %v6590 = vadd.f32 0.0, %v6589
      %6591 = vmatmul.bf16.gmra.mxu0 %v6495
      %v6592 = vpop.f32.mrf.mxu0
      %v6593 = vadd.f32 0.0, %v6592
      %v6594 = vpop.f32.mrf.mxu0
      %v6595 = vadd.f32 0.0, %v6594
      %6596 = vmatmul.bf16.gmra.mxu0 %v6496
      %v6597 = vpop.f32.mrf.mxu0
      %v6598 = vadd.f32 0.0, %v6597
      %v6599 = vpop.f32.mrf.mxu0
      %v6600 = vadd.f32 0.0, %v6599
      %6601 = vmatmul.bf16.gmra.mxu0 %v6497
      %v6602 = vpop.f32.mrf.mxu0
      %v6603 = vadd.f32 0.0, %v6602
      %v6604 = vpop.f32.mrf.mxu0
      %v6605 = vadd.f32 0.0, %v6604
      %6606 = vmatmul.bf16.gmra.mxu0 %v6498
      %v6607 = vpop.f32.mrf.mxu0
      %v6608 = vadd.f32 0.0, %v6607
      %v6609 = vpop.f32.mrf.mxu0
      %v6610 = vadd.f32 0.0, %v6609
      %6611 = vmatmul.bf16.gmra.mxu0 %v6499
      %v6612 = vpop.f32.mrf.mxu0
      %v6613 = vadd.f32 0.0, %v6612
      %v6614 = vpop.f32.mrf.mxu0
      %v6615 = vadd.f32 0.0, %v6614
      %6616 = vmatmul.bf16.gmra.mxu0 %v6500
      %v6617 = vpop.f32.mrf.mxu0
      %v6618 = vadd.f32 0.0, %v6617
      %v6619 = vpop.f32.mrf.mxu0
      %v6620 = vadd.f32 0.0, %v6619
      %6621 = vmatmul.bf16.gmra.mxu0 %v6501
      %v6622 = vpop.f32.mrf.mxu0
      %v6623 = vadd.f32 0.0, %v6622
      %v6624 = vpop.f32.mrf.mxu0
      %v6625 = vadd.f32 0.0, %v6624
      %6626 = vmatmul.bf16.gmra.mxu0 %v6502
      %v6627 = vpop.f32.mrf.mxu0
      %v6628 = vadd.f32 0.0, %v6627
      %v6629 = vpop.f32.mrf.mxu0
      %v6630 = vadd.f32 0.0, %v6629
      %6631 = vmatmul.bf16.gmra.mxu0 %v6503
      %v6632 = vpop.f32.mrf.mxu0
      %v6633 = vadd.f32 0.0, %v6632
      %v6634 = vpop.f32.mrf.mxu0
      %v6635 = vadd.f32 0.0, %v6634
      %6636 = vmatmul.bf16.gmra.mxu0 %v6504
      %v6637 = vpop.f32.mrf.mxu0
      %v6638 = vadd.f32 0.0, %v6637
      %v6639 = vpop.f32.mrf.mxu0
      %v6640 = vadd.f32 0.0, %v6639
      %6641 = vmatmul.bf16.gmra.mxu0 %v6505
      %v6642 = vpop.f32.mrf.mxu0
      %v6643 = vadd.f32 0.0, %v6642
      %v6644 = vpop.f32.mrf.mxu0
      %v6645 = vadd.f32 0.0, %v6644
      %6646 = vmatmul.bf16.gmra.mxu0 %v6506
      %v6647 = vpop.f32.mrf.mxu0
      %v6648 = vadd.f32 0.0, %v6647
      %v6649 = vpop.f32.mrf.mxu0
      %v6650 = vadd.f32 0.0, %v6649
      %6651 = vmatmul.bf16.gmra.mxu0 %v6507
      %v6652 = vpop.f32.mrf.mxu0
      %v6653 = vadd.f32 0.0, %v6652
      %v6654 = vpop.f32.mrf.mxu0
      %v6655 = vadd.f32 0.0, %v6654
      %6656 = vmatmul.bf16.gmra.mxu0 %v6508
      %v6657 = vpop.f32.mrf.mxu0
      %v6658 = vadd.f32 0.0, %v6657
      %v6659 = vpop.f32.mrf.mxu0
      %v6660 = vadd.f32 0.0, %v6659
      %6661 = vdwg.mxu0
      %v6694 = vunpack.c.l.b16 %v5964
      %v6695 = vunpack.c.l.b16 %v5965
      %v6696 = vunpack.c.l.b16 %v5966
      %v6697 = vunpack.c.l.b16 %v5967
      %v6698 = vunpack.c.l.b16 %v5968
      %v6699 = vunpack.c.l.b16 %v5969
      %v6700 = vunpack.c.l.b16 %v5970
      %v6701 = vunpack.c.l.b16 %v5971
      %v6702 = vunpack.c.l.b16 %v5972
      %v6703 = vunpack.c.l.b16 %v5973
      %v6704 = vunpack.c.l.b16 %v5974
      %v6705 = vunpack.c.l.b16 %v5975
      %v6706 = vunpack.c.l.b16 %v5976
      %v6707 = vunpack.c.l.b16 %v5977
      %v6708 = vunpack.c.l.b16 %v5978
      %v6709 = vunpack.c.l.b16 %v5979
      %v6710 = vunpack.c.l.b16 %v5980
      %v6711 = vunpack.c.l.b16 %v5981
      %v6712 = vunpack.c.l.b16 %v5982
      %v6713 = vunpack.c.l.b16 %v5983
      %v6714 = vunpack.c.l.b16 %v5984
      %v6715 = vunpack.c.l.b16 %v5985
      %v6716 = vunpack.c.l.b16 %v5986
      %v6717 = vunpack.c.l.b16 %v5987
      %v6718 = vunpack.c.l.b16 %v5988
      %v6719 = vunpack.c.l.b16 %v5989
      %v6720 = vunpack.c.l.b16 %v5990
      %v6721 = vunpack.c.l.b16 %v5991
      %v6722 = vunpack.c.l.b16 %v5992
      %v6723 = vunpack.c.l.b16 %v5993
      %v6724 = vunpack.c.l.b16 %v5994
      %v6725 = vunpack.c.l.b16 %v5995
      %v6726 = vpack.c.b16 %v6695, %v6694
      %v6727 = vpack.c.b16 %v6697, %v6696
      %v6728 = vpack.c.b16 %v6699, %v6698
      %v6729 = vpack.c.b16 %v6701, %v6700
      %v6730 = vpack.c.b16 %v6703, %v6702
      %v6731 = vpack.c.b16 %v6705, %v6704
      %v6732 = vpack.c.b16 %v6707, %v6706
      %v6733 = vpack.c.b16 %v6709, %v6708
      %v6734 = vpack.c.b16 %v6711, %v6710
      %v6735 = vpack.c.b16 %v6713, %v6712
      %v6736 = vpack.c.b16 %v6715, %v6714
      %v6737 = vpack.c.b16 %v6717, %v6716
      %v6738 = vpack.c.b16 %v6719, %v6718
      %v6739 = vpack.c.b16 %v6721, %v6720
      %v6740 = vpack.c.b16 %v6723, %v6722
      %v6741 = vpack.c.b16 %v6725, %v6724
      %v6774 = vunpack.c.l.b16 %v5996
      %v6775 = vunpack.c.l.b16 %v5997
      %v6776 = vunpack.c.l.b16 %v5998
      %v6777 = vunpack.c.l.b16 %v5999
      %v6778 = vunpack.c.l.b16 %v6000
      %v6779 = vunpack.c.l.b16 %v6001
      %v6780 = vunpack.c.l.b16 %v6002
      %v6781 = vunpack.c.l.b16 %v6003
      %v6782 = vunpack.c.l.b16 %v6004
      %v6783 = vunpack.c.l.b16 %v6005
      %v6784 = vunpack.c.l.b16 %v6006
      %v6785 = vunpack.c.l.b16 %v6007
      %v6786 = vunpack.c.l.b16 %v6008
      %v6787 = vunpack.c.l.b16 %v6009
      %v6788 = vunpack.c.l.b16 %v6010
      %v6789 = vunpack.c.l.b16 %v6011
      %v6790 = vpack.c.b16 %v6775, %v6774
      %v6791 = vpack.c.b16 %v6777, %v6776
      %v6792 = vpack.c.b16 %v6779, %v6778
      %v6793 = vpack.c.b16 %v6781, %v6780
      %v6794 = vpack.c.b16 %v6783, %v6782
      %v6795 = vpack.c.b16 %v6785, %v6784
      %v6796 = vpack.c.b16 %v6787, %v6786
      %v6797 = vpack.c.b16 %v6789, %v6788
      %6806 = vmatpush.bf16.msra.mxu0 %v6797
      %6807 = vmatpush.bf16.msra.mxu0 %v6796
      %6808 = vmatpush.bf16.msra.mxu0 %v6795
      %6809 = vmatpush.bf16.msra.mxu0 %v6794
      %6810 = vmatpush.bf16.msra.mxu0 %v6793
      %6811 = vmatpush.bf16.msra.mxu0 %v6792
      %6812 = vmatpush.bf16.msra.mxu0 %v6791
      %6813 = vmatpush.bf16.msra.mxu0 %v6790
      %6814 = vmatmul.bf16.gmra.mxu0 %v6726
      %v6815 = vpop.f32.mrf.mxu0
      %v6816 = vadd.f32 %v6583, %v6815
      %v6817 = vpop.f32.mrf.mxu0
      %v6818 = vadd.f32 %v6585, %v6817
      %6819 = vmatmul.bf16.gmra.mxu0 %v6727
      %v6820 = vpop.f32.mrf.mxu0
      %v6821 = vadd.f32 %v6588, %v6820
      %v6822 = vpop.f32.mrf.mxu0
      %v6823 = vadd.f32 %v6590, %v6822
      %6824 = vmatmul.bf16.gmra.mxu0 %v6728
      %v6825 = vpop.f32.mrf.mxu0
      %v6826 = vadd.f32 %v6593, %v6825
      %v6827 = vpop.f32.mrf.mxu0
      %v6828 = vadd.f32 %v6595, %v6827
      %6829 = vmatmul.bf16.gmra.mxu0 %v6729
      %v6830 = vpop.f32.mrf.mxu0
      %v6831 = vadd.f32 %v6598, %v6830
      %v6832 = vpop.f32.mrf.mxu0
      %v6833 = vadd.f32 %v6600, %v6832
      %6834 = vmatmul.bf16.gmra.mxu0 %v6730
      %v6835 = vpop.f32.mrf.mxu0
      %v6836 = vadd.f32 %v6603, %v6835
      %v6837 = vpop.f32.mrf.mxu0
      %v6838 = vadd.f32 %v6605, %v6837
      %6839 = vmatmul.bf16.gmra.mxu0 %v6731
      %v6840 = vpop.f32.mrf.mxu0
      %v6841 = vadd.f32 %v6608, %v6840
      %v6842 = vpop.f32.mrf.mxu0
      %v6843 = vadd.f32 %v6610, %v6842
      %6844 = vmatmul.bf16.gmra.mxu0 %v6732
      %v6845 = vpop.f32.mrf.mxu0
      %v6846 = vadd.f32 %v6613, %v6845
      %v6847 = vpop.f32.mrf.mxu0
      %v6848 = vadd.f32 %v6615, %v6847
      %6849 = vmatmul.bf16.gmra.mxu0 %v6733
      %v6850 = vpop.f32.mrf.mxu0
      %v6851 = vadd.f32 %v6618, %v6850
      %v6852 = vpop.f32.mrf.mxu0
      %v6853 = vadd.f32 %v6620, %v6852
      %6854 = vmatmul.bf16.gmra.mxu0 %v6734
      %v6855 = vpop.f32.mrf.mxu0
      %v6856 = vadd.f32 %v6623, %v6855
      %v6857 = vpop.f32.mrf.mxu0
      %v6858 = vadd.f32 %v6625, %v6857
      %6859 = vmatmul.bf16.gmra.mxu0 %v6735
      %v6860 = vpop.f32.mrf.mxu0
      %v6861 = vadd.f32 %v6628, %v6860
      %v6862 = vpop.f32.mrf.mxu0
      %v6863 = vadd.f32 %v6630, %v6862
      %6864 = vmatmul.bf16.gmra.mxu0 %v6736
      %v6865 = vpop.f32.mrf.mxu0
      %v6866 = vadd.f32 %v6633, %v6865
      %v6867 = vpop.f32.mrf.mxu0
      %v6868 = vadd.f32 %v6635, %v6867
      %6869 = vmatmul.bf16.gmra.mxu0 %v6737
      %v6870 = vpop.f32.mrf.mxu0
      %v6871 = vadd.f32 %v6638, %v6870
      %v6872 = vpop.f32.mrf.mxu0
      %v6873 = vadd.f32 %v6640, %v6872
      %6874 = vmatmul.bf16.gmra.mxu0 %v6738
      %v6875 = vpop.f32.mrf.mxu0
      %v6876 = vadd.f32 %v6643, %v6875
      %v6877 = vpop.f32.mrf.mxu0
      %v6878 = vadd.f32 %v6645, %v6877
      %6879 = vmatmul.bf16.gmra.mxu0 %v6739
      %v6880 = vpop.f32.mrf.mxu0
      %v6881 = vadd.f32 %v6648, %v6880
      %v6882 = vpop.f32.mrf.mxu0
      %v6883 = vadd.f32 %v6650, %v6882
      %6884 = vmatmul.bf16.gmra.mxu0 %v6740
      %v6885 = vpop.f32.mrf.mxu0
      %v6886 = vadd.f32 %v6653, %v6885
      %v6887 = vpop.f32.mrf.mxu0
      %v6888 = vadd.f32 %v6655, %v6887
      %6889 = vmatmul.bf16.gmra.mxu0 %v6741
      %v6890 = vpop.f32.mrf.mxu0
      %v6891 = vadd.f32 %v6658, %v6890
      %v6892 = vpop.f32.mrf.mxu0
      %v6893 = vadd.f32 %v6660, %v6892
      %6894 = vdwg.mxu0
      %v6895 = vld [vmem:[%s5] sm:$0x1]
      %v6897 = vperm.slane %v6895, 0
      %v6899 = vadd.f32 %v6816, %v6897
      %v6900 = vadd.f32 %v6818, %v6897
      %v6901 = vadd.f32 %v6821, %v6897
      %v6902 = vadd.f32 %v6823, %v6897
      %v6903 = vadd.f32 %v6826, %v6897
      %v6904 = vadd.f32 %v6828, %v6897
      %v6905 = vadd.f32 %v6831, %v6897
      %v6906 = vadd.f32 %v6833, %v6897
      %v6907 = vadd.f32 %v6836, %v6897
      %v6908 = vadd.f32 %v6838, %v6897
      %v6909 = vadd.f32 %v6841, %v6897
      %v6910 = vadd.f32 %v6843, %v6897
      %v6911 = vadd.f32 %v6846, %v6897
      %v6912 = vadd.f32 %v6848, %v6897
      %v6913 = vadd.f32 %v6851, %v6897
      %v6914 = vadd.f32 %v6853, %v6897
      %v6915 = vadd.f32 %v6856, %v6897
      %v6916 = vadd.f32 %v6858, %v6897
      %v6917 = vadd.f32 %v6861, %v6897
      %v6918 = vadd.f32 %v6863, %v6897
      %v6919 = vadd.f32 %v6866, %v6897
      %v6920 = vadd.f32 %v6868, %v6897
      %v6921 = vadd.f32 %v6871, %v6897
      %v6922 = vadd.f32 %v6873, %v6897
      %v6923 = vadd.f32 %v6876, %v6897
      %v6924 = vadd.f32 %v6878, %v6897
      %v6925 = vadd.f32 %v6881, %v6897
      %v6926 = vadd.f32 %v6883, %v6897
      %v6927 = vadd.f32 %v6886, %v6897
      %v6928 = vadd.f32 %v6888, %v6897
      %v6929 = vadd.f32 %v6891, %v6897
      %v6930 = vadd.f32 %v6893, %v6897
      %6931 = vst [vmem:[%s251] sm:$0xff] %v6899
      %6932 = vst [vmem:[%s251 + $0x8] sm:$0xff] %v6900
      %6933 = vst [vmem:[%s251 + $0x10] sm:$0xff] %v6901
      %6934 = vst [vmem:[%s251 + $0x18] sm:$0xff] %v6902
      %6935 = vst [vmem:[%s251 + $0x20] sm:$0xff] %v6903
      %6936 = vst [vmem:[%s251 + $0x28] sm:$0xff] %v6904
      %6937 = vst [vmem:[%s251 + $0x30] sm:$0xff] %v6905
      %6938 = vst [vmem:[%s251 + $0x38] sm:$0xff] %v6906
      %6939 = vst [vmem:[%s251 + $0x40] sm:$0xff] %v6907
      %6940 = vst [vmem:[%s251 + $0x48] sm:$0xff] %v6908
      %6941 = vst [vmem:[%s251 + $0x50] sm:$0xff] %v6909
      %6942 = vst [vmem:[%s251 + $0x58] sm:$0xff] %v6910
      %6943 = vst [vmem:[%s251 + $0x60] sm:$0xff] %v6911
      %6944 = vst [vmem:[%s251 + $0x68] sm:$0xff] %v6912
      %6945 = vst [vmem:[%s251 + $0x70] sm:$0xff] %v6913
      %6946 = vst [vmem:[%s251 + $0x78] sm:$0xff] %v6914
      %6947 = vst [vmem:[%s251 + $0x80] sm:$0xff] %v6915
      %6948 = vst [vmem:[%s251 + $0x88] sm:$0xff] %v6916
      %6949 = vst [vmem:[%s251 + $0x90] sm:$0xff] %v6917
      %6950 = vst [vmem:[%s251 + $0x98] sm:$0xff] %v6918
      %6951 = vst [vmem:[%s251 + $0xa0] sm:$0xff] %v6919
      %6952 = vst [vmem:[%s251 + $0xa8] sm:$0xff] %v6920
      %6953 = vst [vmem:[%s251 + $0xb0] sm:$0xff] %v6921
      %6954 = vst [vmem:[%s251 + $0xb8] sm:$0xff] %v6922
      %6955 = vst [vmem:[%s251 + $0xc0] sm:$0xff] %v6923
      %6956 = vst [vmem:[%s251 + $0xc8] sm:$0xff] %v6924
      %6957 = vst [vmem:[%s251 + $0xd0] sm:$0xff] %v6925
      %6958 = vst [vmem:[%s251 + $0xd8] sm:$0xff] %v6926
      %6959 = vst [vmem:[%s251 + $0xe0] sm:$0xff] %v6927
      %6960 = vst [vmem:[%s251 + $0xe8] sm:$0xff] %v6928
      %6961 = vst [vmem:[%s251 + $0xf0] sm:$0xff] %v6929
      %6962 = vst [vmem:[%s251 + $0xf8] sm:$0xff] %v6930
      %p6963 = scmp.lt.s32.totalorder %s17, 1
      %s6964 = scalar_select %p6963, %s17, 1
      %s6965 = smul.addr %s6964, 32
      %s6966 = smul.addr %s6965, 8
      %s6967 = scalar_lea.vmem %s6, %s6966
      // Predicated region
      $region45: #{preact_resblock_pallas.1} parent=43 // pred_check
        %p6968 = pneg %p166
      $region46: #{preact_resblock_pallas.1} parent=43 // pred_check_branch
        %6970 = sbr.rel (%p6968) target = $region48
      $region47: #{preact_resblock_pallas.1} parent=43 // pred_region
        _
      $region48: #{preact_resblock_pallas.1} parent=43 // pred_fallthru
        _
    $region44: #{preact_resblock_pallas.1} parent=5 // pred_fallthru
      _
    %p6971 = scmp.le.s32.totalorder 2, %s12
    // Predicated region
    $region49: #{preact_resblock_pallas.1} parent=5 // pred_check
      %p6972 = pneg %p6971
    $region50: #{preact_resblock_pallas.1} parent=5 // pred_check_branch
      %6974 = sbr.rel (%p6972) target = $region52
    $region51: #{preact_resblock_pallas.1} parent=5 // pred_region
      %s6975 = ssub.s32 %s12, 2
      // Predicated region
      $region53: #{preact_resblock_pallas.1} parent=51 // pred_check
        %p6976 = pneg %p172
      $region54: #{preact_resblock_pallas.1} parent=51 // pred_check_branch
        %6978 = sbr.rel (%p6976) target = $region56
      $region55: #{preact_resblock_pallas.1} parent=51 // pred_region
        %p6979 = scmp.lt.s32.totalorder %s18, 1
        %s6980 = scalar_select %p6979, %s18, 1
        %s6981 = smul.addr %s6980, 32
        %s6982 = smul.addr %s6981, 8
        %s6983 = scalar_lea.vmem %s6, %s6982
      $region56: #{preact_resblock_pallas.1} parent=51 // pred_fallthru
        _
    $region52: #{preact_resblock_pallas.1} parent=5 // pred_fallthru
      _
  $region6: #{preact_resblock_pallas.1} parent=0 // loop_footer
    %s16 = sadd.s32 1, %s12
  $region7: #{preact_resblock_pallas.1} parent=0 // loop_footer_branch
    %11 = sbr.rel target = $region3
  $region8: #{preact_resblock_pallas.1} parent=0 // loop_exit
    _

</llo_original>
